<compile_context>
chip_gen: v6e
topology: v6e:2x2x1
jax: 0.10.0
libtpu: 0.0.40
codegen_flags: <defaults>
</compile_context>

<pallas_src>
import functools
import math

import jax
import jax.numpy as jnp
from jax import lax
from jax.experimental import pallas as pl
from jax.experimental.pallas import tpu as pltpu

_LRELU_SLOPE = 0.2
_FUSED_SCALE = math.sqrt(2.0)  # FusedLeakyReLU default scale = 2 ** 0.5


# ---------------------------------------------------------------------------
# Kernel
# ---------------------------------------------------------------------------
def _fused_chain_kernel(*refs, n_layer, m_rows, out_h, acts):
    """Whole conv chain, single program, activations resident in VMEM.

    refs = (x0, w0, b0, ..., w{L-1}, b{L-1}, out, buf1, ..., buf{L-1})

      x0  : (M, K0)            bf16  wrapper-built row-form im2col of layer 0
      w0  : (K0, W*C1)         bf16  banded weight (kh folded into K0)
      wl  : (3, W*Cin, W*Cout) bf16  banded weight, one slab per kernel row kh
      bl  : (1, W*Cout)        f32   bias tiled across output columns
      out : (M, W*C_last)      f32   lane-dense row-form result
      bufl: (M+2, W*Cin_l)     bf16  layer-l input rows with a 1-row halo
    """
    x0_ref = refs[0]
    w_refs = [refs[1 + 2 * l] for l in range(n_layer)]
    b_refs = [refs[2 + 2 * l] for l in range(n_layer)]
    o_ref = refs[1 + 2 * n_layer]
    buf_refs = list(refs[2 + 2 * n_layer:])

    # Row-validity masks for the kh=0 / kh=2 shifted slabs.  A slab shifted by
    # -1/+1 rows is invalid on the first/last output row of each image (it
    # would otherwise read the neighbouring image or the never-written halo
    # row).  Masked with a select, so halo rows never need zeroing.
    row = lax.broadcasted_iota(jnp.int32, (m_rows, 1), 0)
    oh = row % out_h
    top_ok = oh != 0              # kh = 0 reads output row - 1
    bot_ok = oh != out_h - 1      # kh = 2 reads output row + 1

    # ---- layer 0: single dense matmul on wrapper-prepared patches ---------
    y = jnp.dot(x0_ref[...], w_refs[0][...],
                preferred_element_type=jnp.float32)            # (M, W*C1) f32
    y = y + b_refs[0][...]
    if acts[0]:  # FusedLeakyReLU (its bias already folded into the conv bias)
        y = jnp.where(y >= 0.0, y, _LRELU_SLOPE * y) * _FUSED_SCALE

    # ---- layers 1..L-1: three accumulating banded matmuls per layer -------
    for l in range(1, n_layer):
        buf = buf_refs[l - 1]
        y16 = y.astype(jnp.bfloat16)           # one bf16 cast per layer
        buf[1:m_rows + 1, :] = y16             # interior rows; halo untouched
        wl = w_refs[l]
        # kh = 1 (no row shift): reuse y16 directly, no buffer read, no mask.
        acc = jnp.dot(y16, wl[1], preferred_element_type=jnp.float32)
        p0 = jnp.dot(buf[0:m_rows, :], wl[0],
                     preferred_element_type=jnp.float32)
        acc = acc + jnp.where(top_ok, p0, 0.0)
        p2 = jnp.dot(buf[2:m_rows + 2, :], wl[2],
                     preferred_element_type=jnp.float32)
        acc = acc + jnp.where(bot_ok, p2, 0.0)
        y = acc + b_refs[l][...]
        if acts[l]:
            y = jnp.where(y >= 0.0, y, _LRELU_SLOPE * y) * _FUSED_SCALE

    o_ref[...] = y.astype(o_ref.dtype)         # lane-dense (M, W*C_last) store


# ---------------------------------------------------------------------------
# Wrapper-side weight preparation (block-banded matrices)
# ---------------------------------------------------------------------------
def _band(n_in, n_out, stride, off):
    """(n_in, n_out) 0/1 selector: S[i, o] = 1 iff i == stride*o + off."""
    i = jnp.arange(n_in)[:, None]
    o = jnp.arange(n_out)[None, :]
    return (i == stride * o + off).astype(jnp.float32)


def _banded_weight_l0(w, wp, wo, stride):
    """Layer-0 banded weight; rows indexed by (kh, padded col, cin)."""
    parts = []
    for kh in range(3):
        acc = 0.0
        for kw in range(3):
            acc = acc + jnp.kron(_band(wp, wo, stride, kw), w[kh, kw])
        parts.append(acc)
    return jnp.concatenate(parts, axis=0).astype(jnp.bfloat16)  # (3*wp*cin, wo*cout)


def _banded_weight(w, wo):
    """Stride-1 banded weight: one (W*Cin, W*Cout) slab per kernel row kh."""
    parts = []
    for kh in range(3):
        acc = 0.0
        for kw in range(3):
            acc = acc + jnp.kron(_band(wo, wo, 1, kw - 1), w[kh, kw])
        parts.append(acc)
    return jnp.stack(parts, axis=0).astype(jnp.bfloat16)        # (3, wo*cin, wo*cout)


# ---------------------------------------------------------------------------
# Forward
# ---------------------------------------------------------------------------
def gradual_content_block_forward(x_nchw, layers):
    n, cin0, h0, w0sp = x_nchw.shape
    n_layer = len(layers)
    s0 = int(layers[0]["s"])
    # TODO(synk): only the first conv may be strided (num_pools <= 1) and only
    # a single trailing upsample stage is fused; that covers this module config.
    assert all(int(l["s"]) == 1 for l in layers[1:])
    assert all(not l["ps"] for l in layers[:-1])

    ho = (h0 + 2 - 3) // s0 + 1
    wo = (w0sp + 2 - 3) // s0 + 1
    m = n * ho

    # Layer-0 row-form im2col in the wrapper (tiny; removes the strided
    # in-kernel slices).  Row r = (image, output row); K = kh*(Wp*Cin)+col*Cin+ci.
    x = jnp.transpose(x_nchw, (0, 2, 3, 1))                     # NHWC
    xpad = jnp.pad(x, ((0, 0), (1, 1), (1, 1), (0, 0)))
    wp = w0sp + 2
    slabs = [xpad[:, kh: kh + s0 * (ho - 1) + 1: s0, :, :].reshape(m, wp * cin0)
             for kh in range(3)]
    x0 = jnp.concatenate(slabs, axis=1).astype(jnp.bfloat16)    # (M, 3*Wp*Cin0)

    args = [x0]
    acts = []
    buf_lanes = []
    for l, layer in enumerate(layers):
        w = layer["w"]
        b = layer["b"]
        cin, cout = int(w.shape[2]), int(w.shape[3])
        if layer["ps"]:
            # Pre-permute output channels c*4 + a*2 + b -> a*2C + b*C + c so
            # the PixelShuffle collapses into the single wrapper transpose.
            c = cout // 4
            w = (w.reshape(3, 3, cin, c, 2, 2)
                  .transpose(0, 1, 2, 4, 5, 3).reshape(3, 3, cin, cout))
            b = b.reshape(c, 2, 2).transpose(1, 2, 0).reshape(cout)
        if l == 0:
            args.append(_banded_weight_l0(w, wp, wo, s0))
        else:
            args.append(_banded_weight(w, wo))
            buf_lanes.append(wo * cin)
        args.append(jnp.tile(b, wo)[None, :].astype(jnp.float32))
        acts.append(bool(layer["act"]))
    cout_last = int(layers[-1]["w"].shape[-1])

    kernel = functools.partial(_fused_chain_kernel, n_layer=n_layer,
                               m_rows=m, out_h=ho, acts=tuple(acts))
    # Single program (no grid): batch is folded into the matmul M dimension,
    # all operands/outputs are whole-array VMEM blocks (total ~1.5 MiB).
    out = pl.pallas_call(
        kernel,
        out_shape=jax.ShapeDtypeStruct((m, wo * cout_last), jnp.float32),
        scratch_shapes=[pltpu.VMEM((m + 2, ln), jnp.bfloat16)
                        for ln in buf_lanes],
    )(*args)

    if layers[-1]["ps"]:
        c = cout_last // 4
        y6 = out.reshape(n, ho, wo, 2, 2, c)        # [n, oh, ow, a, b, c]
        # ONE fused (pixel-shuffle + NHWC->NCHW) transpose.
        return jnp.transpose(y6, (0, 5, 1, 3, 2, 4)).reshape(n, c, 2 * ho, 2 * wo)
    y = out.reshape(n, ho, wo, cout_last)
    return jnp.transpose(y, (0, 3, 1, 2))


# ---------------------------------------------------------------------------
# Synthetic parameters + pure-JAX reference
# ---------------------------------------------------------------------------
def build_params(key, in_c, out_c, num_pools=0, mid_c=64, num_layer=4, upsample=0):
    """Deterministic synthetic parameters mirroring GradualContentBlock.__init__."""
    layers = []
    for i in range(num_layer):
        if num_pools > 0:
            num_pools -= 1
            strid = 2
        else:
            strid = 1
        if i > 0:
            in_c = mid_c
        if i == num_layer - 1:
            mid_c = out_c
        key, kw, kb1, kb2 = jax.random.split(key, 4)
        w = jax.random.normal(kw, (3, 3, in_c, mid_c), jnp.float32) / math.sqrt(9 * in_c)
        conv_b = 0.1 * jax.random.normal(kb1, (mid_c,), jnp.float32)
        # FusedLeakyReLU's bias adds before the nonlinearity -> fold into conv bias.
        fl_b = 0.1 * jax.random.normal(kb2, (mid_c,), jnp.float32)
        layers.append(dict(w=w, b=conv_b + fl_b, s=strid, act=True, ps=False))
    for _ in range(upsample // 2):
        key, kw, kb = jax.random.split(key, 3)
        w = jax.random.normal(kw, (3, 3, mid_c, 4 * mid_c), jnp.float32) / math.sqrt(9 * mid_c)
        b = 0.1 * jax.random.normal(kb, (4 * mid_c,), jnp.float32)
        layers.append(dict(w=w, b=b, s=1, act=False, ps=True))
    return layers


def pixel_shuffle_nhwc(x, r=2):
    # PyTorch PixelShuffle: channel c*r*r + a*r + b -> output pixel (h*r+a, w*r+b, c).
    n, h, w, c4 = x.shape
    c = c4 // (r * r)
    x = x.reshape(n, h, w, c, r, r)
    x = jnp.transpose(x, (0, 1, 4, 2, 5, 3))
    return x.reshape(n, h * r, w * r, c)


def _reference_forward(x_nchw, layers):
    """Pure-JAX reference (lax.conv).  Inputs/weights quantized to bf16 exactly
    as in the Pallas kernel (f32 accumulation) so the comparison is tight."""
    x = jnp.transpose(x_nchw, (0, 2, 3, 1))
    for layer in layers:
        y = lax.conv_general_dilated(
            x.astype(jnp.bfloat16), layer["w"].astype(jnp.bfloat16),
            (layer["s"], layer["s"]), ((1, 1), (1, 1)),
            dimension_numbers=("NHWC", "HWIO", "NHWC"),
            preferred_element_type=jnp.float32)
        y = y + layer["b"][None, None, None, :]
        if layer["act"]:
            y = jnp.where(y >= 0.0, y, _LRELU_SLOPE * y) * _FUSED_SCALE
        if layer["ps"]:
            y = pixel_shuffle_nhwc(y, 2)
        x = y
    return jnp.transpose(x, (0, 3, 1, 2))


if __name__ == "__main__":
    key = jax.random.PRNGKey(0)
    key, kx = jax.random.split(key)
    # GradualContentBlock(in_c=4, out_c=16, num_pools=1, mid_c=32, num_layer=4, upsample=2)
    x = jax.random.normal(kx, (2, 4, 16, 16), jnp.float32)  # NCHW, like PyTorch
    layers = build_params(key, in_c=4, out_c=16, num_pools=1, mid_c=32,
                          num_layer=4, upsample=2)

    out = jax.block_until_ready(gradual_content_block_forward(x, layers))
    ref = jax.block_until_ready(_reference_forward(x, layers))

    assert out.shape == ref.shape == (2, 16, 16, 16), (out.shape, ref.shape)
    max_err = float(jnp.max(jnp.abs(out - ref)))
    assert jnp.allclose(out, ref, atol=1e-2, rtol=1e-2), max_err
    print("KERNEL_OK")
</pallas_src>

<mosaic_0001>
module attributes {stable_mosaic.version = 11 : i64} {
  func.func @_fused_chain_kernel(%arg0: memref<16x216xbf16, #tpu.memory_space<vmem>>, %arg1: memref<216x256xbf16, #tpu.memory_space<vmem>>, %arg2: memref<1x256xf32, #tpu.memory_space<vmem>>, %arg3: memref<3x256x256xbf16, #tpu.memory_space<vmem>>, %arg4: memref<1x256xf32, #tpu.memory_space<vmem>>, %arg5: memref<3x256x256xbf16, #tpu.memory_space<vmem>>, %arg6: memref<1x256xf32, #tpu.memory_space<vmem>>, %arg7: memref<3x256x128xbf16, #tpu.memory_space<vmem>>, %arg8: memref<1x128xf32, #tpu.memory_space<vmem>>, %arg9: memref<3x128x512xbf16, #tpu.memory_space<vmem>>, %arg10: memref<1x512xf32, #tpu.memory_space<vmem>>, %arg11: memref<16x512xf32, #tpu.memory_space<vmem>>, %arg12: memref<18x256xbf16, #tpu.memory_space<vmem>>, %arg13: memref<18x256xbf16, #tpu.memory_space<vmem>>, %arg14: memref<18x256xbf16, #tpu.memory_space<vmem>>, %arg15: memref<18x128xbf16, #tpu.memory_space<vmem>>) attributes {dimension_semantics = [], scalar_prefetch = 0 : i64, scratch_operands = 4 : i64, tpu.core_type = #tpu.core_type<tc>} {
    %0 = tpu.iota {dimensions = array<i32: 0>} : vector<16x1xi32>
    %c8_i32 = arith.constant 8 : i32
    %c0_i32 = arith.constant 0 : i32
    %1 = arith.cmpi eq, %c8_i32, %c0_i32 : i32
    %c1_i32 = arith.constant 1 : i32
    %2 = arith.select %1, %c1_i32, %c8_i32 : i32
    %3 = vector.broadcast %2 : i32 to vector<16x1xi32>
    %4 = arith.remsi %0, %3 : vector<16x1xi32>
    %c0_i32_0 = arith.constant 0 : i32
    %5 = vector.broadcast %c0_i32_0 : i32 to vector<16x1xi32>
    %6 = arith.cmpi ne, %4, %5 : vector<16x1xi32>
    %c0_i32_1 = arith.constant 0 : i32
    %7 = vector.broadcast %c0_i32_1 : i32 to vector<16x1xi32>
    %8 = arith.cmpi slt, %4, %7 : vector<16x1xi32>
    %c0_i32_2 = arith.constant 0 : i32
    %9 = arith.cmpi slt, %2, %c0_i32_2 : i32
    %10 = vector.broadcast %9 : i1 to vector<16x1xi1>
    %11 = vector.broadcast %10 : vector<16x1xi1> to vector<16x1xi1>
    %12 = arith.xori %8, %11 : vector<16x1xi1>
    %13 = arith.andi %12, %6 : vector<16x1xi1>
    %14 = vector.broadcast %2 : i32 to vector<16x1xi32>
    %15 = arith.addi %4, %14 : vector<16x1xi32>
    %16 = arith.select %13, %15, %4 : vector<16x1xi1>, vector<16x1xi32>
    %c0_i32_3 = arith.constant 0 : i32
    %17 = vector.broadcast %c0_i32_3 : i32 to vector<16x1xi32>
    %18 = arith.cmpi ne, %16, %17 : vector<16x1xi32>
    %c7_i32 = arith.constant 7 : i32
    %19 = vector.broadcast %c7_i32 : i32 to vector<16x1xi32>
    %20 = arith.cmpi ne, %16, %19 : vector<16x1xi32>
    %c0 = arith.constant 0 : index
    %c0_4 = arith.constant 0 : index
    %21 = vector.load %arg0[%c0, %c0_4] : memref<16x216xbf16, #tpu.memory_space<vmem>>, vector<16x216xbf16>
    %c0_5 = arith.constant 0 : index
    %c0_6 = arith.constant 0 : index
    %22 = vector.load %arg1[%c0_5, %c0_6] : memref<216x256xbf16, #tpu.memory_space<vmem>>, vector<216x256xbf16>
    %cst = arith.constant dense<0.000000e+00> : vector<16x256xf32>
    %23 = tpu.matmul %21, %22, %cst {dimension_numbers = #tpu.dot_dimension_numbers<[1], [0], [0], [1], [0, 0, 1, 1], [], []>} : vector<16x216xbf16>, vector<216x256xbf16>, vector<16x256xf32> -> vector<16x256xf32>
    %c0_7 = arith.constant 0 : index
    %c0_8 = arith.constant 0 : index
    %24 = vector.load %arg2[%c0_7, %c0_8] : memref<1x256xf32, #tpu.memory_space<vmem>>, vector<1x256xf32>
    %25 = vector.broadcast %24 : vector<1x256xf32> to vector<16x256xf32>
    %26 = arith.addf %23, %25 : vector<16x256xf32>
    %cst_9 = arith.constant 0.000000e+00 : f32
    %27 = vector.broadcast %cst_9 : f32 to vector<16x256xf32>
    %28 = arith.cmpf oge, %26, %27 : vector<16x256xf32>
    %cst_10 = arith.constant 2.000000e-01 : f32
    %29 = vector.broadcast %cst_10 : f32 to vector<16x256xf32>
    %30 = arith.mulf %29, %26 : vector<16x256xf32>
    %31 = arith.select %28, %26, %30 : vector<16x256xi1>, vector<16x256xf32>
    %cst_11 = arith.constant 1.41421354 : f32
    %32 = vector.broadcast %cst_11 : f32 to vector<16x256xf32>
    %33 = arith.mulf %31, %32 : vector<16x256xf32>
    %34 = arith.truncf %33 : vector<16x256xf32> to vector<16x256xbf16>
    %c1 = arith.constant 1 : index
    %c0_12 = arith.constant 0 : index
    %35 = vector.load %arg12[%c1, %c0_12] : memref<18x256xbf16, #tpu.memory_space<vmem>>, vector<16x256xbf16>
    tpu.vector_store %arg12[%c1, %c0_12], %34 {strides = array<i32>} : memref<18x256xbf16, #tpu.memory_space<vmem>>, vector<16x256xbf16>,
    %c1_13 = arith.constant 1 : index
    %c0_14 = arith.constant 0 : index
    %c0_15 = arith.constant 0 : index
    %36 = vector.load %arg3[%c1_13, %c0_14, %c0_15] : memref<3x256x256xbf16, #tpu.memory_space<vmem>>, vector<1x256x256xbf16>
    %37 = vector.shape_cast %36 : vector<1x256x256xbf16> to vector<256x256xbf16>
    %cst_16 = arith.constant dense<0.000000e+00> : vector<16x256xf32>
    %38 = tpu.matmul %34, %37, %cst_16 {dimension_numbers = #tpu.dot_dimension_numbers<[1], [0], [0], [1], [0, 0, 1, 1], [], []>} : vector<16x256xbf16>, vector<256x256xbf16>, vector<16x256xf32> -> vector<16x256xf32>
    %c0_17 = arith.constant 0 : index
    %c0_18 = arith.constant 0 : index
    %39 = vector.load %arg12[%c0_17, %c0_18] : memref<18x256xbf16, #tpu.memory_space<vmem>>, vector<16x256xbf16>
    %c0_19 = arith.constant 0 : index
    %c0_20 = arith.constant 0 : index
    %c0_21 = arith.constant 0 : index
    %40 = vector.load %arg3[%c0_19, %c0_20, %c0_21] : memref<3x256x256xbf16, #tpu.memory_space<vmem>>, vector<1x256x256xbf16>
    %41 = vector.shape_cast %40 : vector<1x256x256xbf16> to vector<256x256xbf16>
    %cst_22 = arith.constant dense<0.000000e+00> : vector<16x256xf32>
    %42 = tpu.matmul %39, %41, %cst_22 {dimension_numbers = #tpu.dot_dimension_numbers<[1], [0], [0], [1], [0, 0, 1, 1], [], []>} : vector<16x256xbf16>, vector<256x256xbf16>, vector<16x256xf32> -> vector<16x256xf32>
    %cst_23 = arith.constant 0.000000e+00 : f32
    %43 = vector.shape_cast %18 : vector<16x1xi1> to vector<16x1xi1>
    %44 = vector.broadcast %43 : vector<16x1xi1> to vector<16x256xi1>
    %45 = vector.broadcast %cst_23 : f32 to vector<16x256xf32>
    %46 = arith.select %44, %42, %45 : vector<16x256xi1>, vector<16x256xf32>
    %47 = arith.addf %38, %46 : vector<16x256xf32>
    %c2 = arith.constant 2 : index
    %c0_24 = arith.constant 0 : index
    %48 = vector.load %arg12[%c2, %c0_24] : memref<18x256xbf16, #tpu.memory_space<vmem>>, vector<16x256xbf16>
    %c2_25 = arith.constant 2 : index
    %c0_26 = arith.constant 0 : index
    %c0_27 = arith.constant 0 : index
    %49 = vector.load %arg3[%c2_25, %c0_26, %c0_27] : memref<3x256x256xbf16, #tpu.memory_space<vmem>>, vector<1x256x256xbf16>
    %50 = vector.shape_cast %49 : vector<1x256x256xbf16> to vector<256x256xbf16>
    %cst_28 = arith.constant dense<0.000000e+00> : vector<16x256xf32>
    %51 = tpu.matmul %48, %50, %cst_28 {dimension_numbers = #tpu.dot_dimension_numbers<[1], [0], [0], [1], [0, 0, 1, 1], [], []>} : vector<16x256xbf16>, vector<256x256xbf16>, vector<16x256xf32> -> vector<16x256xf32>
    %cst_29 = arith.constant 0.000000e+00 : f32
    %52 = vector.shape_cast %20 : vector<16x1xi1> to vector<16x1xi1>
    %53 = vector.broadcast %52 : vector<16x1xi1> to vector<16x256xi1>
    %54 = vector.broadcast %cst_29 : f32 to vector<16x256xf32>
    %55 = arith.select %53, %51, %54 : vector<16x256xi1>, vector<16x256xf32>
    %56 = arith.addf %47, %55 : vector<16x256xf32>
    %c0_30 = arith.constant 0 : index
    %c0_31 = arith.constant 0 : index
    %57 = vector.load %arg4[%c0_30, %c0_31] : memref<1x256xf32, #tpu.memory_space<vmem>>, vector<1x256xf32>
    %58 = vector.broadcast %57 : vector<1x256xf32> to vector<16x256xf32>
    %59 = arith.addf %56, %58 : vector<16x256xf32>
    %cst_32 = arith.constant 0.000000e+00 : f32
    %60 = vector.broadcast %cst_32 : f32 to vector<16x256xf32>
    %61 = arith.cmpf oge, %59, %60 : vector<16x256xf32>
    %cst_33 = arith.constant 2.000000e-01 : f32
    %62 = vector.broadcast %cst_33 : f32 to vector<16x256xf32>
    %63 = arith.mulf %62, %59 : vector<16x256xf32>
    %64 = arith.select %61, %59, %63 : vector<16x256xi1>, vector<16x256xf32>
    %cst_34 = arith.constant 1.41421354 : f32
    %65 = vector.broadcast %cst_34 : f32 to vector<16x256xf32>
    %66 = arith.mulf %64, %65 : vector<16x256xf32>
    %67 = arith.truncf %66 : vector<16x256xf32> to vector<16x256xbf16>
    %c1_35 = arith.constant 1 : index
    %c0_36 = arith.constant 0 : index
    %68 = vector.load %arg13[%c1_35, %c0_36] : memref<18x256xbf16, #tpu.memory_space<vmem>>, vector<16x256xbf16>
    tpu.vector_store %arg13[%c1_35, %c0_36], %67 {strides = array<i32>} : memref<18x256xbf16, #tpu.memory_space<vmem>>, vector<16x256xbf16>,
    %c1_37 = arith.constant 1 : index
    %c0_38 = arith.constant 0 : index
    %c0_39 = arith.constant 0 : index
    %69 = vector.load %arg5[%c1_37, %c0_38, %c0_39] : memref<3x256x256xbf16, #tpu.memory_space<vmem>>, vector<1x256x256xbf16>
    %70 = vector.shape_cast %69 : vector<1x256x256xbf16> to vector<256x256xbf16>
    %cst_40 = arith.constant dense<0.000000e+00> : vector<16x256xf32>
    %71 = tpu.matmul %67, %70, %cst_40 {dimension_numbers = #tpu.dot_dimension_numbers<[1], [0], [0], [1], [0, 0, 1, 1], [], []>} : vector<16x256xbf16>, vector<256x256xbf16>, vector<16x256xf32> -> vector<16x256xf32>
    %c0_41 = arith.constant 0 : index
    %c0_42 = arith.constant 0 : index
    %72 = vector.load %arg13[%c0_41, %c0_42] : memref<18x256xbf16, #tpu.memory_space<vmem>>, vector<16x256xbf16>
    %c0_43 = arith.constant 0 : index
    %c0_44 = arith.constant 0 : index
    %c0_45 = arith.constant 0 : index
    %73 = vector.load %arg5[%c0_43, %c0_44, %c0_45] : memref<3x256x256xbf16, #tpu.memory_space<vmem>>, vector<1x256x256xbf16>
    %74 = vector.shape_cast %73 : vector<1x256x256xbf16> to vector<256x256xbf16>
    %cst_46 = arith.constant dense<0.000000e+00> : vector<16x256xf32>
    %75 = tpu.matmul %72, %74, %cst_46 {dimension_numbers = #tpu.dot_dimension_numbers<[1], [0], [0], [1], [0, 0, 1, 1], [], []>} : vector<16x256xbf16>, vector<256x256xbf16>, vector<16x256xf32> -> vector<16x256xf32>
    %cst_47 = arith.constant 0.000000e+00 : f32
    %76 = vector.shape_cast %18 : vector<16x1xi1> to vector<16x1xi1>
    %77 = vector.broadcast %76 : vector<16x1xi1> to vector<16x256xi1>
    %78 = vector.broadcast %cst_47 : f32 to vector<16x256xf32>
    %79 = arith.select %77, %75, %78 : vector<16x256xi1>, vector<16x256xf32>
    %80 = arith.addf %71, %79 : vector<16x256xf32>
    %c2_48 = arith.constant 2 : index
    %c0_49 = arith.constant 0 : index
    %81 = vector.load %arg13[%c2_48, %c0_49] : memref<18x256xbf16, #tpu.memory_space<vmem>>, vector<16x256xbf16>
    %c2_50 = arith.constant 2 : index
    %c0_51 = arith.constant 0 : index
    %c0_52 = arith.constant 0 : index
    %82 = vector.load %arg5[%c2_50, %c0_51, %c0_52] : memref<3x256x256xbf16, #tpu.memory_space<vmem>>, vector<1x256x256xbf16>
    %83 = vector.shape_cast %82 : vector<1x256x256xbf16> to vector<256x256xbf16>
    %cst_53 = arith.constant dense<0.000000e+00> : vector<16x256xf32>
    %84 = tpu.matmul %81, %83, %cst_53 {dimension_numbers = #tpu.dot_dimension_numbers<[1], [0], [0], [1], [0, 0, 1, 1], [], []>} : vector<16x256xbf16>, vector<256x256xbf16>, vector<16x256xf32> -> vector<16x256xf32>
    %cst_54 = arith.constant 0.000000e+00 : f32
    %85 = vector.shape_cast %20 : vector<16x1xi1> to vector<16x1xi1>
    %86 = vector.broadcast %85 : vector<16x1xi1> to vector<16x256xi1>
    %87 = vector.broadcast %cst_54 : f32 to vector<16x256xf32>
    %88 = arith.select %86, %84, %87 : vector<16x256xi1>, vector<16x256xf32>
    %89 = arith.addf %80, %88 : vector<16x256xf32>
    %c0_55 = arith.constant 0 : index
    %c0_56 = arith.constant 0 : index
    %90 = vector.load %arg6[%c0_55, %c0_56] : memref<1x256xf32, #tpu.memory_space<vmem>>, vector<1x256xf32>
    %91 = vector.broadcast %90 : vector<1x256xf32> to vector<16x256xf32>
    %92 = arith.addf %89, %91 : vector<16x256xf32>
    %cst_57 = arith.constant 0.000000e+00 : f32
    %93 = vector.broadcast %cst_57 : f32 to vector<16x256xf32>
    %94 = arith.cmpf oge, %92, %93 : vector<16x256xf32>
    %cst_58 = arith.constant 2.000000e-01 : f32
    %95 = vector.broadcast %cst_58 : f32 to vector<16x256xf32>
    %96 = arith.mulf %95, %92 : vector<16x256xf32>
    %97 = arith.select %94, %92, %96 : vector<16x256xi1>, vector<16x256xf32>
    %cst_59 = arith.constant 1.41421354 : f32
    %98 = vector.broadcast %cst_59 : f32 to vector<16x256xf32>
    %99 = arith.mulf %97, %98 : vector<16x256xf32>
    %100 = arith.truncf %99 : vector<16x256xf32> to vector<16x256xbf16>
    %c1_60 = arith.constant 1 : index
    %c0_61 = arith.constant 0 : index
    %101 = vector.load %arg14[%c1_60, %c0_61] : memref<18x256xbf16, #tpu.memory_space<vmem>>, vector<16x256xbf16>
    tpu.vector_store %arg14[%c1_60, %c0_61], %100 {strides = array<i32>} : memref<18x256xbf16, #tpu.memory_space<vmem>>, vector<16x256xbf16>,
    %c1_62 = arith.constant 1 : index
    %c0_63 = arith.constant 0 : index
    %c0_64 = arith.constant 0 : index
    %102 = vector.load %arg7[%c1_62, %c0_63, %c0_64] : memref<3x256x128xbf16, #tpu.memory_space<vmem>>, vector<1x256x128xbf16>
    %103 = vector.shape_cast %102 : vector<1x256x128xbf16> to vector<256x128xbf16>
    %cst_65 = arith.constant dense<0.000000e+00> : vector<16x128xf32>
    %104 = tpu.matmul %100, %103, %cst_65 {dimension_numbers = #tpu.dot_dimension_numbers<[1], [0], [0], [1], [0, 0, 1, 1], [], []>} : vector<16x256xbf16>, vector<256x128xbf16>, vector<16x128xf32> -> vector<16x128xf32>
    %c0_66 = arith.constant 0 : index
    %c0_67 = arith.constant 0 : index
    %105 = vector.load %arg14[%c0_66, %c0_67] : memref<18x256xbf16, #tpu.memory_space<vmem>>, vector<16x256xbf16>
    %c0_68 = arith.constant 0 : index
    %c0_69 = arith.constant 0 : index
    %c0_70 = arith.constant 0 : index
    %106 = vector.load %arg7[%c0_68, %c0_69, %c0_70] : memref<3x256x128xbf16, #tpu.memory_space<vmem>>, vector<1x256x128xbf16>
    %107 = vector.shape_cast %106 : vector<1x256x128xbf16> to vector<256x128xbf16>
    %cst_71 = arith.constant dense<0.000000e+00> : vector<16x128xf32>
    %108 = tpu.matmul %105, %107, %cst_71 {dimension_numbers = #tpu.dot_dimension_numbers<[1], [0], [0], [1], [0, 0, 1, 1], [], []>} : vector<16x256xbf16>, vector<256x128xbf16>, vector<16x128xf32> -> vector<16x128xf32>
    %cst_72 = arith.constant 0.000000e+00 : f32
    %109 = vector.shape_cast %18 : vector<16x1xi1> to vector<16x1xi1>
    %110 = vector.broadcast %109 : vector<16x1xi1> to vector<16x128xi1>
    %111 = vector.broadcast %cst_72 : f32 to vector<16x128xf32>
    %112 = arith.select %110, %108, %111 : vector<16x128xi1>, vector<16x128xf32>
    %113 = arith.addf %104, %112 : vector<16x128xf32>
    %c2_73 = arith.constant 2 : index
    %c0_74 = arith.constant 0 : index
    %114 = vector.load %arg14[%c2_73, %c0_74] : memref<18x256xbf16, #tpu.memory_space<vmem>>, vector<16x256xbf16>
    %c2_75 = arith.constant 2 : index
    %c0_76 = arith.constant 0 : index
    %c0_77 = arith.constant 0 : index
    %115 = vector.load %arg7[%c2_75, %c0_76, %c0_77] : memref<3x256x128xbf16, #tpu.memory_space<vmem>>, vector<1x256x128xbf16>
    %116 = vector.shape_cast %115 : vector<1x256x128xbf16> to vector<256x128xbf16>
    %cst_78 = arith.constant dense<0.000000e+00> : vector<16x128xf32>
    %117 = tpu.matmul %114, %116, %cst_78 {dimension_numbers = #tpu.dot_dimension_numbers<[1], [0], [0], [1], [0, 0, 1, 1], [], []>} : vector<16x256xbf16>, vector<256x128xbf16>, vector<16x128xf32> -> vector<16x128xf32>
    %cst_79 = arith.constant 0.000000e+00 : f32
    %118 = vector.shape_cast %20 : vector<16x1xi1> to vector<16x1xi1>
    %119 = vector.broadcast %118 : vector<16x1xi1> to vector<16x128xi1>
    %120 = vector.broadcast %cst_79 : f32 to vector<16x128xf32>
    %121 = arith.select %119, %117, %120 : vector<16x128xi1>, vector<16x128xf32>
    %122 = arith.addf %113, %121 : vector<16x128xf32>
    %c0_80 = arith.constant 0 : index
    %c0_81 = arith.constant 0 : index
    %123 = vector.load %arg8[%c0_80, %c0_81] : memref<1x128xf32, #tpu.memory_space<vmem>>, vector<1x128xf32>
    %124 = vector.broadcast %123 : vector<1x128xf32> to vector<16x128xf32>
    %125 = arith.addf %122, %124 : vector<16x128xf32>
    %cst_82 = arith.constant 0.000000e+00 : f32
    %126 = vector.broadcast %cst_82 : f32 to vector<16x128xf32>
    %127 = arith.cmpf oge, %125, %126 : vector<16x128xf32>
    %cst_83 = arith.constant 2.000000e-01 : f32
    %128 = vector.broadcast %cst_83 : f32 to vector<16x128xf32>
    %129 = arith.mulf %128, %125 : vector<16x128xf32>
    %130 = arith.select %127, %125, %129 : vector<16x128xi1>, vector<16x128xf32>
    %cst_84 = arith.constant 1.41421354 : f32
    %131 = vector.broadcast %cst_84 : f32 to vector<16x128xf32>
    %132 = arith.mulf %130, %131 : vector<16x128xf32>
    %133 = arith.truncf %132 : vector<16x128xf32> to vector<16x128xbf16>
    %c1_85 = arith.constant 1 : index
    %c0_86 = arith.constant 0 : index
    %134 = vector.load %arg15[%c1_85, %c0_86] : memref<18x128xbf16, #tpu.memory_space<vmem>>, vector<16x128xbf16>
    tpu.vector_store %arg15[%c1_85, %c0_86], %133 {strides = array<i32>} : memref<18x128xbf16, #tpu.memory_space<vmem>>, vector<16x128xbf16>,
    %c1_87 = arith.constant 1 : index
    %c0_88 = arith.constant 0 : index
    %c0_89 = arith.constant 0 : index
    %135 = vector.load %arg9[%c1_87, %c0_88, %c0_89] : memref<3x128x512xbf16, #tpu.memory_space<vmem>>, vector<1x128x512xbf16>
    %136 = vector.shape_cast %135 : vector<1x128x512xbf16> to vector<128x512xbf16>
    %cst_90 = arith.constant dense<0.000000e+00> : vector<16x512xf32>
    %137 = tpu.matmul %133, %136, %cst_90 {dimension_numbers = #tpu.dot_dimension_numbers<[1], [0], [0], [1], [0, 0, 1, 1], [], []>} : vector<16x128xbf16>, vector<128x512xbf16>, vector<16x512xf32> -> vector<16x512xf32>
    %c0_91 = arith.constant 0 : index
    %c0_92 = arith.constant 0 : index
    %138 = vector.load %arg15[%c0_91, %c0_92] : memref<18x128xbf16, #tpu.memory_space<vmem>>, vector<16x128xbf16>
    %c0_93 = arith.constant 0 : index
    %c0_94 = arith.constant 0 : index
    %c0_95 = arith.constant 0 : index
    %139 = vector.load %arg9[%c0_93, %c0_94, %c0_95] : memref<3x128x512xbf16, #tpu.memory_space<vmem>>, vector<1x128x512xbf16>
    %140 = vector.shape_cast %139 : vector<1x128x512xbf16> to vector<128x512xbf16>
    %cst_96 = arith.constant dense<0.000000e+00> : vector<16x512xf32>
    %141 = tpu.matmul %138, %140, %cst_96 {dimension_numbers = #tpu.dot_dimension_numbers<[1], [0], [0], [1], [0, 0, 1, 1], [], []>} : vector<16x128xbf16>, vector<128x512xbf16>, vector<16x512xf32> -> vector<16x512xf32>
    %cst_97 = arith.constant 0.000000e+00 : f32
    %142 = vector.shape_cast %18 : vector<16x1xi1> to vector<16x1xi1>
    %143 = vector.broadcast %142 : vector<16x1xi1> to vector<16x512xi1>
    %144 = vector.broadcast %cst_97 : f32 to vector<16x512xf32>
    %145 = arith.select %143, %141, %144 : vector<16x512xi1>, vector<16x512xf32>
    %146 = arith.addf %137, %145 : vector<16x512xf32>
    %c2_98 = arith.constant 2 : index
    %c0_99 = arith.constant 0 : index
    %147 = vector.load %arg15[%c2_98, %c0_99] : memref<18x128xbf16, #tpu.memory_space<vmem>>, vector<16x128xbf16>
    %c2_100 = arith.constant 2 : index
    %c0_101 = arith.constant 0 : index
    %c0_102 = arith.constant 0 : index
    %148 = vector.load %arg9[%c2_100, %c0_101, %c0_102] : memref<3x128x512xbf16, #tpu.memory_space<vmem>>, vector<1x128x512xbf16>
    %149 = vector.shape_cast %148 : vector<1x128x512xbf16> to vector<128x512xbf16>
    %cst_103 = arith.constant dense<0.000000e+00> : vector<16x512xf32>
    %150 = tpu.matmul %147, %149, %cst_103 {dimension_numbers = #tpu.dot_dimension_numbers<[1], [0], [0], [1], [0, 0, 1, 1], [], []>} : vector<16x128xbf16>, vector<128x512xbf16>, vector<16x512xf32> -> vector<16x512xf32>
    %cst_104 = arith.constant 0.000000e+00 : f32
    %151 = vector.shape_cast %20 : vector<16x1xi1> to vector<16x1xi1>
    %152 = vector.broadcast %151 : vector<16x1xi1> to vector<16x512xi1>
    %153 = vector.broadcast %cst_104 : f32 to vector<16x512xf32>
    %154 = arith.select %152, %150, %153 : vector<16x512xi1>, vector<16x512xf32>
    %155 = arith.addf %146, %154 : vector<16x512xf32>
    %c0_105 = arith.constant 0 : index
    %c0_106 = arith.constant 0 : index
    %156 = vector.load %arg10[%c0_105, %c0_106] : memref<1x512xf32, #tpu.memory_space<vmem>>, vector<1x512xf32>
    %157 = vector.broadcast %156 : vector<1x512xf32> to vector<16x512xf32>
    %158 = arith.addf %155, %157 : vector<16x512xf32>
    %c0_107 = arith.constant 0 : index
    %c0_108 = arith.constant 0 : index
    %159 = vector.load %arg11[%c0_107, %c0_108] : memref<16x512xf32, #tpu.memory_space<vmem>>, vector<16x512xf32>
    tpu.vector_store %arg11[%c0_107, %c0_108], %158 {strides = array<i32>} : memref<16x512xf32, #tpu.memory_space<vmem>>, vector<16x512xf32>,
    return
  }
}

</mosaic_0001>

<llo_original>
// kernel: tpu_custom_call.1
$region0: #{tpu_custom_call.1}
  #allocation0 [shape = 'u32[]', space=smem, size = 0x4, offset = 0x4, fixed_abs, tag = 'smem constant byte address 0x4 - core index']
  #allocation1 [shape = 'u32[144,128]{1,0:T(1,128)}', space=vmem, size = 0x12000, scoped, tag = 'internal scratch']
  #allocation2 [shape = 'bf16[18,256]{1,0:T(8,128)(2,1)}', space=vmem, size = 0x3000, scoped, tag = 'scratch operand']
  #allocation3 [shape = 'bf16[18,256]{1,0:T(8,128)(2,1)}', space=vmem, size = 0x3000, scoped, tag = 'scratch operand']
  #allocation4 [shape = 'bf16[18,256]{1,0:T(8,128)(2,1)}', space=vmem, size = 0x3000, scoped, tag = 'scratch operand']
  #allocation5 [shape = 'bf16[18,128]{1,0:T(8,128)(2,1)}', space=vmem, size = 0x1800, scoped, tag = 'scratch operand']
  %s0 = inlined_call_operand.hbm [shape: bf16[16,216], index: 0, kind: input, shape index: {}]
  %s1 = inlined_call_operand.hbm [shape: bf16[216,256], index: 1, kind: input, shape index: {}]
  %s2 = inlined_call_operand.vmem [shape: f32[1,256], index: 2, kind: input, shape index: {}]
  %s3 = inlined_call_operand.hbm [shape: bf16[3,256,256], index: 3, kind: input, shape index: {}]
  %s4 = inlined_call_operand.hbm [shape: f32[1,256], index: 4, kind: input, shape index: {}]
  %s5 = inlined_call_operand.hbm [shape: bf16[3,256,256], index: 5, kind: input, shape index: {}]
  %s6 = inlined_call_operand.vmem [shape: f32[1,256], index: 6, kind: input, shape index: {}]
  %s7 = inlined_call_operand.hbm [shape: bf16[3,256,128], index: 7, kind: input, shape index: {}]
  %s8 = inlined_call_operand.vmem [shape: f32[1,128], index: 8, kind: input, shape index: {}]
  %s9 = inlined_call_operand.hbm [shape: bf16[3,128,512], index: 9, kind: input, shape index: {}]
  %s10 = inlined_call_operand.vmem [shape: f32[1,512], index: 10, kind: input, shape index: {}]
  %s11 = inlined_call_operand.hbm [shape: f32[16,512], index: 11, kind: output, shape index: {}]
  %s12 = sld [smem:[#allocation0]]
  $region82: #{tpu_custom_call.1} parent=0
    _
  %s14 = ssub.s32 1, %s12
  %s15 = scalar_select 0, %s14, %s12
  $region1: #{tpu_custom_call.1} parent=0
    #allocation6 [shape = 'u8[8192]{0}', space=vmem, size = 0x2000, scoped, tag = 'input window, operand 0, single buffered']
    #allocation7 [shape = 's32[1]{0}', space=sflag, size = 0x4, scoped, tag = 'scoped memory for tpu_custom_call.1']
    #allocation8 [shape = 's32[1]{0}', space=sflag, size = 0x4, scoped, tag = 'scoped memory for tpu_custom_call.1']
    #allocation9 [shape = 'u8[110592]{0}', space=vmem, size = 0x1b000, scoped, tag = 'input window, operand 1, single buffered']
    #allocation10 [shape = 's32[1]{0}', space=sflag, size = 0x4, scoped, tag = 'scoped memory for tpu_custom_call.1']
    #allocation11 [shape = 'u8[393216]{0}', space=vmem, size = 0x60000, scoped, tag = 'input window, operand 3, single buffered']
    #allocation12 [shape = 'u8[1024]{0}', space=vmem, size = 0x400, scoped, tag = 'input window, operand 4, single buffered']
    #allocation13 [shape = 's32[1]{0}', space=sflag, size = 0x4, scoped, tag = 'scoped memory for tpu_custom_call.1']
    #allocation14 [shape = 'u8[393216]{0}', space=vmem, size = 0x60000, scoped, tag = 'input window, operand 5, single buffered']
    #allocation15 [shape = 'u8[196608]{0}', space=vmem, size = 0x30000, scoped, tag = 'input window, operand 7, single buffered']
    #allocation16 [shape = 's32[1]{0}', space=sflag, size = 0x4, scoped, tag = 'scoped memory for tpu_custom_call.1']
    #allocation17 [shape = 'u8[393216]{0}', space=vmem, size = 0x60000, scoped, tag = 'input window, operand 9, single buffered']
    #allocation18 [shape = 'u8[32768]{0}', space=vmem, size = 0x8000, scoped, tag = 'output window, operand 0, single buffered']
    %16 = vsyncpa [#allocation7], 0
    %17 = vsyncpa [#allocation10], 0
    %18 = vsyncpa [#allocation13], 0
    %19 = vsyncpa [#allocation16], 0
    %20 = vsyncpa [#allocation8], 0
    // Predicated region
    $region2: #{tpu_custom_call.1} parent=1 // pred_check
      _
    $region3: #{tpu_custom_call.1} parent=1 // pred_check_branch
      %22 = sbr.rel (0) target = $region5
    $region4: #{tpu_custom_call.1} parent=1 // pred_region
      %s24 = ssub.s32 256, 256
      %25 = vsyncadd [#allocation7], %s24
      %s26 = sshll.u32 [#allocation6], 4
      %s27 = int_to_ptr.vmem [resolvable:$true] %s26
      %32 = dma.hbm_to_vmem [thread:$0]  %s0, 256, %s27, [#allocation7], 128, 128, 8
    $region5: #{tpu_custom_call.1} parent=1 // pred_fallthru
      _
    // Predicated region
    $region6: #{tpu_custom_call.1} parent=1 // pred_check
      _
    $region7: #{tpu_custom_call.1} parent=1 // pred_check_branch
      %34 = sbr.rel (0) target = $region9
    $region8: #{tpu_custom_call.1} parent=1 // pred_region
      %s36 = ssub.s32 3456, 3456
      %37 = vsyncadd [#allocation10], %s36
      %s38 = sshll.u32 [#allocation9], 4
      %s39 = int_to_ptr.vmem [resolvable:$true] %s38
      %44 = dma.hbm_to_vmem [thread:$0]  %s1, 3456, %s39, [#allocation10], 128, 128, 8
    $region9: #{tpu_custom_call.1} parent=1 // pred_fallthru
      _
    // Predicated region
    $region10: #{tpu_custom_call.1} parent=1 // pred_check
      _
    $region11: #{tpu_custom_call.1} parent=1 // pred_check_branch
      %46 = sbr.rel (0) target = $region13
    $region12: #{tpu_custom_call.1} parent=1 // pred_region
      _
    $region13: #{tpu_custom_call.1} parent=1 // pred_fallthru
      _
    // Predicated region
    $region14: #{tpu_custom_call.1} parent=1 // pred_check
      _
    $region15: #{tpu_custom_call.1} parent=1 // pred_check_branch
      %48 = sbr.rel (0) target = $region17
    $region16: #{tpu_custom_call.1} parent=1 // pred_region
      %s50 = ssub.s32 12288, 12288
      %51 = vsyncadd [#allocation10], %s50
      %s52 = sshll.u32 [#allocation11], 4
      %s53 = int_to_ptr.vmem [resolvable:$true] %s52
      %58 = dma.hbm_to_vmem [thread:$0]  %s3, 12288, %s53, [#allocation10], 128, 128, 8
    $region17: #{tpu_custom_call.1} parent=1 // pred_fallthru
      _
    // Predicated region
    $region18: #{tpu_custom_call.1} parent=1 // pred_check
      _
    $region19: #{tpu_custom_call.1} parent=1 // pred_check_branch
      %60 = sbr.rel (0) target = $region21
    $region20: #{tpu_custom_call.1} parent=1 // pred_region
      %s62 = ssub.s32 32, 32
      %63 = vsyncadd [#allocation13], %s62
      %s65 = sshll.u32 [#allocation12], 4
      %s66 = int_to_ptr.vmem [resolvable:$true] %s65
      %68 = dma.hbm_to_vmem [thread:$0]  %s4, 32, %s66, [#allocation13]
    $region21: #{tpu_custom_call.1} parent=1 // pred_fallthru
      _
    // Predicated region
    $region22: #{tpu_custom_call.1} parent=1 // pred_check
      _
    $region23: #{tpu_custom_call.1} parent=1 // pred_check_branch
      %70 = sbr.rel (0) target = $region25
    $region24: #{tpu_custom_call.1} parent=1 // pred_region
      %s72 = ssub.s32 12288, 12288
      %73 = vsyncadd [#allocation13], %s72
      %s74 = sshll.u32 [#allocation14], 4
      %s75 = int_to_ptr.vmem [resolvable:$true] %s74
      %80 = dma.hbm_to_vmem [thread:$0]  %s5, 12288, %s75, [#allocation13], 128, 128, 8
    $region25: #{tpu_custom_call.1} parent=1 // pred_fallthru
      _
    // Predicated region
    $region26: #{tpu_custom_call.1} parent=1 // pred_check
      _
    $region27: #{tpu_custom_call.1} parent=1 // pred_check_branch
      %82 = sbr.rel (0) target = $region29
    $region28: #{tpu_custom_call.1} parent=1 // pred_region
      _
    $region29: #{tpu_custom_call.1} parent=1 // pred_fallthru
      _
    // Predicated region
    $region30: #{tpu_custom_call.1} parent=1 // pred_check
      _
    $region31: #{tpu_custom_call.1} parent=1 // pred_check_branch
      %84 = sbr.rel (0) target = $region33
    $region32: #{tpu_custom_call.1} parent=1 // pred_region
      %s86 = ssub.s32 6144, 6144
      %87 = vsyncadd [#allocation16], %s86
      %s88 = sshll.u32 [#allocation15], 4
      %s89 = int_to_ptr.vmem [resolvable:$true] %s88
      %94 = dma.hbm_to_vmem [thread:$0]  %s7, 6144, %s89, [#allocation16], 64, 64, 4
    $region33: #{tpu_custom_call.1} parent=1 // pred_fallthru
      _
    // Predicated region
    $region34: #{tpu_custom_call.1} parent=1 // pred_check
      _
    $region35: #{tpu_custom_call.1} parent=1 // pred_check_branch
      %96 = sbr.rel (0) target = $region37
    $region36: #{tpu_custom_call.1} parent=1 // pred_region
      _
    $region37: #{tpu_custom_call.1} parent=1 // pred_fallthru
      _
    // Predicated region
    $region38: #{tpu_custom_call.1} parent=1 // pred_check
      _
    $region39: #{tpu_custom_call.1} parent=1 // pred_check_branch
      %98 = sbr.rel (0) target = $region41
    $region40: #{tpu_custom_call.1} parent=1 // pred_region
      %s100 = ssub.s32 12288, 12288
      %101 = vsyncadd [#allocation16], %s100
      %s102 = sshll.u32 [#allocation17], 4
      %s103 = int_to_ptr.vmem [resolvable:$true] %s102
      %108 = dma.hbm_to_vmem [thread:$0]  %s9, 12288, %s103, [#allocation16], 256, 256, 16
    $region41: #{tpu_custom_call.1} parent=1 // pred_fallthru
      _
    // Predicated region
    $region42: #{tpu_custom_call.1} parent=1 // pred_check
      _
    $region43: #{tpu_custom_call.1} parent=1 // pred_check_branch
      %110 = sbr.rel (0) target = $region45
    $region44: #{tpu_custom_call.1} parent=1 // pred_region
      _
    $region45: #{tpu_custom_call.1} parent=1 // pred_fallthru
      _
    // Predicated region
    $region46: #{tpu_custom_call.1} parent=1 // pred_check
      _
    $region47: #{tpu_custom_call.1} parent=1 // pred_check_branch
      %112 = sbr.rel (0) target = $region49
    $region48: #{tpu_custom_call.1} parent=1 // pred_region
      %113 = dma.done [#allocation7], 256
    $region49: #{tpu_custom_call.1} parent=1 // pred_fallthru
      _
    // Predicated region
    $region50: #{tpu_custom_call.1} parent=1 // pred_check
      _
    $region51: #{tpu_custom_call.1} parent=1 // pred_check_branch
      %115 = sbr.rel (0) target = $region53
    $region52: #{tpu_custom_call.1} parent=1 // pred_region
      %116 = dma.done [#allocation10], 3456
    $region53: #{tpu_custom_call.1} parent=1 // pred_fallthru
      _
    // Predicated region
    $region54: #{tpu_custom_call.1} parent=1 // pred_check
      _
    $region55: #{tpu_custom_call.1} parent=1 // pred_check_branch
      %118 = sbr.rel (0) target = $region57
    $region56: #{tpu_custom_call.1} parent=1 // pred_region
      %119 = dma.done [#allocation10], 12288
    $region57: #{tpu_custom_call.1} parent=1 // pred_fallthru
      _
    // Predicated region
    $region58: #{tpu_custom_call.1} parent=1 // pred_check
      _
    $region59: #{tpu_custom_call.1} parent=1 // pred_check_branch
      %121 = sbr.rel (0) target = $region61
    $region60: #{tpu_custom_call.1} parent=1 // pred_region
      %122 = dma.done [#allocation13], 32
    $region61: #{tpu_custom_call.1} parent=1 // pred_fallthru
      _
    // Predicated region
    $region62: #{tpu_custom_call.1} parent=1 // pred_check
      _
    $region63: #{tpu_custom_call.1} parent=1 // pred_check_branch
      %124 = sbr.rel (0) target = $region65
    $region64: #{tpu_custom_call.1} parent=1 // pred_region
      %125 = dma.done [#allocation13], 12288
    $region65: #{tpu_custom_call.1} parent=1 // pred_fallthru
      _
    // Predicated region
    $region66: #{tpu_custom_call.1} parent=1 // pred_check
      _
    $region67: #{tpu_custom_call.1} parent=1 // pred_check_branch
      %127 = sbr.rel (0) target = $region69
    $region68: #{tpu_custom_call.1} parent=1 // pred_region
      %128 = dma.done [#allocation16], 6144
    $region69: #{tpu_custom_call.1} parent=1 // pred_fallthru
      _
    // Predicated region
    $region70: #{tpu_custom_call.1} parent=1 // pred_check
      _
    $region71: #{tpu_custom_call.1} parent=1 // pred_check_branch
      %130 = sbr.rel (0) target = $region73
    $region72: #{tpu_custom_call.1} parent=1 // pred_region
      %131 = dma.done [#allocation16], 12288
    $region73: #{tpu_custom_call.1} parent=1 // pred_fallthru
      _
    %v133 = vlaneseq
    %v134 = vshrl.u32 %v133, 7
    %v135 = vadd.s32 %v134, 8
    %vm136 = vcmp.lt.s32.totalorder %v134, 0
    %v137 = vsub.s32 0, %v134
    %v138 = vsel %vm136, %v137, %v134
    %v139 = vshrl.u32 %v138, 3
    %v140 = vand.u32 %v138, 7
    %v141 = vsub.s32 0, %v140
    %v142 = vsel %vm136, %v141, %v140
    %vm143 = vcmp.lt.s32.totalorder %v135, 0
    %v144 = vsub.s32 0, %v135
    %v145 = vsel %vm143, %v144, %v135
    %v146 = vshrl.u32 %v145, 3
    %v147 = vand.u32 %v145, 7
    %v148 = vsub.s32 0, %v147
    %v149 = vsel %vm143, %v148, %v147
    %vm150 = vcmp.ne.s32.totalorder %v142, 0
    %vm151 = vcmp.ne.s32.totalorder %v149, 0
    %vm152 = vcmp.lt.s32.totalorder %v142, 0
    %vm153 = vcmp.lt.s32.totalorder %v149, 0
    %vm154 = vmand %vm152, %vm150
    %vm155 = vmand %vm153, %vm151
    %v156 = vadd.s32 %v142, 8
    %v157 = vadd.s32 %v149, 8
    %v158 = vsel %vm154, %v156, %v142
    %v159 = vsel %vm155, %v157, %v149
    %vm160 = vcmp.ne.s32.totalorder %v158, 0
    %vm161 = vcmp.ne.s32.totalorder %v159, 0
    %vm162 = vcmp.ne.s32.totalorder %v158, 7
    %vm163 = vcmp.ne.s32.totalorder %v159, 7
    %v164 = vld [vmem:[#allocation6] sm:$0xff]
    %v165 = vld [vmem:[#allocation6 + $0x8] sm:$0xff]
    %v166 = vld [vmem:[#allocation9] sm:$0xff]
    %v167 = vld [vmem:[#allocation9 + $0x8] sm:$0xff]
    %v168 = vld [vmem:[#allocation9 + $0x10] sm:$0xff]
    %v169 = vld [vmem:[#allocation9 + $0x18] sm:$0xff]
    %v170 = vld [vmem:[#allocation9 + $0x20] sm:$0xff]
    %v171 = vld [vmem:[#allocation9 + $0x28] sm:$0xff]
    %v172 = vld [vmem:[#allocation9 + $0x30] sm:$0xff]
    %v173 = vld [vmem:[#allocation9 + $0x38] sm:$0xff]
    %v174 = vld [vmem:[#allocation9 + $0x40] sm:$0xff]
    %v175 = vld [vmem:[#allocation9 + $0x48] sm:$0xff]
    %v176 = vld [vmem:[#allocation9 + $0x50] sm:$0xff]
    %v177 = vld [vmem:[#allocation9 + $0x58] sm:$0xff]
    %v178 = vld [vmem:[#allocation9 + $0x60] sm:$0xff]
    %v179 = vld [vmem:[#allocation9 + $0x68] sm:$0xff]
    %v180 = vld [vmem:[#allocation9 + $0x70] sm:$0xff]
    %v181 = vld [vmem:[#allocation9 + $0x78] sm:$0xff]
    %v182 = vld [vmem:[#allocation9 + $0x80] sm:$0xff]
    %v183 = vld [vmem:[#allocation9 + $0x88] sm:$0xff]
    %v184 = vld [vmem:[#allocation9 + $0x90] sm:$0xff]
    %v185 = vld [vmem:[#allocation9 + $0x98] sm:$0xff]
    %v186 = vld [vmem:[#allocation9 + $0xa0] sm:$0xff]
    %v187 = vld [vmem:[#allocation9 + $0xa8] sm:$0xff]
    %v188 = vld [vmem:[#allocation9 + $0xb0] sm:$0xff]
    %v189 = vld [vmem:[#allocation9 + $0xb8] sm:$0xff]
    %v190 = vld [vmem:[#allocation9 + $0xc0] sm:$0xff]
    %v191 = vld [vmem:[#allocation9 + $0xc8] sm:$0xff]
    %v192 = vld [vmem:[#allocation9 + $0xd0] sm:$0xff]
    %v193 = vld [vmem:[%s2] sm:$0x3]
    %v195 = vlaneseq
    %v196 = vshrl.u32 %v195, 7
    %v197 = vsub.s32 0, %v196
    %v198 = vrot.slane %v193, %v197
    %v199 = vlaneseq
    %v200 = vshrl.u32 %v199, 7
    %v201 = vsub.s32 1, %v200
    %v202 = vrot.slane %v193, %v201
    %v207 = vunpack.c.l.b16 %v164
    %v208 = vunpack.c.h.b16 %v164
    %v209 = vunpack.c.l.b16 %v165
    %v210 = vunpack.c.h.b16 %v165
    %v211 = vpack.c.b16 %v209, %v207
    %v212 = vpack.c.b16 %v210, %v208
    %v241 = vunpack.c.l.b16 %v166
    %v242 = vunpack.c.h.b16 %v166
    %v243 = vunpack.c.l.b16 %v167
    %v244 = vunpack.c.h.b16 %v167
    %v245 = vunpack.c.l.b16 %v168
    %v246 = vunpack.c.h.b16 %v168
    %v247 = vunpack.c.l.b16 %v169
    %v248 = vunpack.c.h.b16 %v169
    %v249 = vunpack.c.l.b16 %v170
    %v250 = vunpack.c.h.b16 %v170
    %v251 = vunpack.c.l.b16 %v171
    %v252 = vunpack.c.h.b16 %v171
    %v253 = vunpack.c.l.b16 %v172
    %v254 = vunpack.c.h.b16 %v172
    %v255 = vunpack.c.l.b16 %v173
    %v256 = vunpack.c.h.b16 %v173
    %v257 = vunpack.c.l.b16 %v174
    %v258 = vunpack.c.h.b16 %v174
    %v259 = vunpack.c.l.b16 %v175
    %v260 = vunpack.c.h.b16 %v175
    %v261 = vunpack.c.l.b16 %v176
    %v262 = vunpack.c.h.b16 %v176
    %v263 = vunpack.c.l.b16 %v177
    %v264 = vunpack.c.h.b16 %v177
    %v265 = vunpack.c.l.b16 %v178
    %v266 = vunpack.c.h.b16 %v178
    %v267 = vunpack.c.l.b16 %v179
    %v268 = vunpack.c.h.b16 %v179
    %v269 = vunpack.c.l.b16 %v180
    %v270 = vunpack.c.h.b16 %v180
    %v271 = vunpack.c.l.b16 %v181
    %v272 = vunpack.c.h.b16 %v181
    %v273 = vunpack.c.l.b16 %v182
    %v274 = vunpack.c.h.b16 %v182
    %v275 = vunpack.c.l.b16 %v183
    %v276 = vunpack.c.h.b16 %v183
    %v277 = vunpack.c.l.b16 %v184
    %v278 = vunpack.c.h.b16 %v184
    %v279 = vunpack.c.l.b16 %v185
    %v280 = vunpack.c.h.b16 %v185
    %v281 = vunpack.c.l.b16 %v186
    %v282 = vunpack.c.h.b16 %v186
    %v283 = vunpack.c.l.b16 %v187
    %v284 = vunpack.c.h.b16 %v187
    %v285 = vunpack.c.l.b16 %v188
    %v286 = vunpack.c.h.b16 %v188
    %v287 = vunpack.c.l.b16 %v189
    %v288 = vunpack.c.h.b16 %v189
    %v289 = vunpack.c.l.b16 %v190
    %v290 = vunpack.c.h.b16 %v190
    %v291 = vunpack.c.l.b16 %v191
    %v292 = vunpack.c.h.b16 %v191
    %v293 = vunpack.c.l.b16 %v192
    %v294 = vunpack.c.h.b16 %v192
    %v295 = vpack.c.b16 %v243, %v241
    %v296 = vpack.c.b16 %v244, %v242
    %v297 = vpack.c.b16 %v247, %v245
    %v298 = vpack.c.b16 %v248, %v246
    %v299 = vpack.c.b16 %v251, %v249
    %v300 = vpack.c.b16 %v252, %v250
    %v301 = vpack.c.b16 %v255, %v253
    %v302 = vpack.c.b16 %v256, %v254
    %v303 = vpack.c.b16 %v259, %v257
    %v304 = vpack.c.b16 %v260, %v258
    %v305 = vpack.c.b16 %v263, %v261
    %v306 = vpack.c.b16 %v264, %v262
    %v307 = vpack.c.b16 %v267, %v265
    %v308 = vpack.c.b16 %v268, %v266
    %v309 = vpack.c.b16 %v271, %v269
    %v310 = vpack.c.b16 %v272, %v270
    %v311 = vpack.c.b16 %v275, %v273
    %v312 = vpack.c.b16 %v276, %v274
    %v313 = vpack.c.b16 %v279, %v277
    %v314 = vpack.c.b16 %v280, %v278
    %v315 = vpack.c.b16 %v283, %v281
    %v316 = vpack.c.b16 %v284, %v282
    %v317 = vpack.c.b16 %v287, %v285
    %v318 = vpack.c.b16 %v288, %v286
    %v319 = vpack.c.b16 %v291, %v289
    %v320 = vpack.c.b16 %v292, %v290
    %v321 = vpack.c.b16 %v293, %v293
    %v322 = vpack.c.b16 %v294, %v294
    %vm349 = vcmask 719872
    %v351 = vsel %vm349, %v212, 0
    %vm353 = vcmask 1043456
    %v355 = vsel %vm353, %v321, 0
    %v358 = vsel %vm353, %v322, 0
    %360 = vmatprep.subr.bf16.mxu0 %v310
    %361 = vmatpush1.bf16.msra.mxu0 %v309
    %362 = vmatprep.subr.bf16.mxu0 %v308
    %363 = vmatpush1.bf16.msra.mxu0 %v307
    %364 = vmatprep.subr.bf16.mxu0 %v306
    %365 = vmatpush1.bf16.msra.mxu0 %v305
    %366 = vmatprep.subr.bf16.mxu0 %v304
    %367 = vmatpush1.bf16.msra.mxu0 %v303
    %368 = vmatprep.subr.bf16.mxu0 %v302
    %369 = vmatpush1.bf16.msra.mxu0 %v301
    %370 = vmatprep.subr.bf16.mxu0 %v300
    %371 = vmatpush1.bf16.msra.mxu0 %v299
    %372 = vmatprep.subr.bf16.mxu0 %v298
    %373 = vmatpush1.bf16.msra.mxu0 %v297
    %374 = vmatprep.subr.bf16.mxu0 %v296
    %375 = vmatpush1.bf16.msra.mxu0 %v295
    %376 = vmatprep.subr.bf16.mxu0 0
    %377 = vmatpush2.bf16.msra.mxu0 0
    %378 = vmatprep.subr.bf16.mxu0 0
    %379 = vmatpush2.bf16.msra.mxu0 0
    %380 = vmatprep.subr.bf16.mxu0 %v358
    %381 = vmatpush2.bf16.msra.mxu0 %v355
    %382 = vmatprep.subr.bf16.mxu0 %v320
    %383 = vmatpush2.bf16.msra.mxu0 %v319
    %384 = vmatprep.subr.bf16.mxu0 %v318
    %385 = vmatpush2.bf16.msra.mxu0 %v317
    %386 = vmatprep.subr.bf16.mxu0 %v316
    %387 = vmatpush2.bf16.msra.mxu0 %v315
    %388 = vmatprep.subr.bf16.mxu0 %v314
    %389 = vmatpush2.bf16.msra.mxu0 %v313
    %390 = vmatprep.subr.bf16.mxu0 %v312
    %391 = vmatpush2.bf16.msra.mxu0 %v311
    %392 = vmatprep.mubr.bf16.mxu0 %v351
    %393 = vmatmul.mubr.bf16.gmra.mxu0 %v211
    %v394 = vpop.f32.mrf.mxu0
    %v395 = vadd.f32 %v198, %v394
    %v396 = vpop.f32.mrf.mxu0
    %v397 = vadd.f32 %v202, %v396
    %v398 = vpop.f32.mrf.mxu0
    %v399 = vadd.f32 %v198, %v398
    %v400 = vpop.f32.mrf.mxu0
    %v401 = vadd.f32 %v202, %v400
    %402 = vdwg.mxu0
    %vm403 = vcmp.ge.f32.partialorder %v395, 0.0
    %vm404 = vcmp.ge.f32.partialorder %v397, 0.0
    %vm405 = vcmp.ge.f32.partialorder %v399, 0.0
    %vm406 = vcmp.ge.f32.partialorder %v401, 0.0
    %v407 = vmul.f32 %v395, 0.2
    %v408 = vmul.f32 %v397, 0.2
    %v409 = vmul.f32 %v399, 0.2
    %v410 = vmul.f32 %v401, 0.2
    %v411 = vsel %vm403, %v395, %v407
    %v412 = vsel %vm404, %v397, %v408
    %v413 = vsel %vm405, %v399, %v409
    %v414 = vsel %vm406, %v401, %v410
    %v415 = vmul.f32 %v411, 1.4142135
    %v416 = vmul.f32 %v412, 1.4142135
    %v417 = vmul.f32 %v413, 1.4142135
    %v418 = vmul.f32 %v414, 1.4142135
    %v419 = vpack.c.bf16 %v417, %v415
    %v420 = vpack.c.bf16 %v418, %v416
    %v423 = vunpack.c.l.b16 %v419
    %v424 = vunpack.c.l.b16 %v420
    %v425 = vunpack.c.h.b16 %v419
    %v426 = vunpack.c.h.b16 %v420
    %v427 = vpack.c.b16 %v424, %v423
    %v428 = vpack.c.b16 %v426, %v425
    %vm429 = vsmask.f32 256
    %vm430 = vsmask.f32 4368
    %vm431 = vmor %vm429, %vm430
    %v433 = vshrl.u32 %v427, 16
    %v435 = vrot.slane %v433, 7
    %v436 = vshll.u32 %v427, 16
    %v438 = vor.u32 %v435, %v436
    %v439 = vrot.slane %v435, 4
    %v441 = vshrl.u32 %v428, 16
    %v443 = vrot.slane %v441, 7
    %v444 = vshll.u32 %v428, 16
    %v446 = vor.u32 %v443, %v444
    %v447 = vsel %vm431, %v439, %v446
    %v448 = vrot.slane %v443, 4
    %vm452 = vcmask 1043456
    %vm453 = vsmask.f32 7938
    %vm454 = vmand %vm452, %vm453
    %vm455 = vcmask 1047556
    %vm456 = vsmask.f32 7954
    %vm457 = vmand %vm455, %vm456
    %vm458 = vmor %vm457, %vm454
    %v459 = vld [vmem:[#allocation2] sm:$0xff]
    %v460 = vsel %vm458, %v438, %v459
    %461 = vst [vmem:[#allocation2] sm:$0xff] %v460
    %462 = vst [vmem:[#allocation2 + $0x8] sm:$0xff] %v447
    %vm463 = vcmask 1040384
    %vm464 = vmand %vm463, %vm429
    %vm465 = vcmask 1044484
    %vm466 = vsmask.f32 4352
    %vm467 = vmand %vm465, %vm466
    %vm468 = vmor %vm467, %vm464
    %v469 = vld [vmem:[#allocation2 + $0x10] sm:$0x11]
    %v470 = vsel %vm468, %v448, %v469
    %471 = vst [vmem:[#allocation2 + $0x10] sm:$0x11] %v470
    %s472 = scalar_lea.vmem [#allocation11], 256
    %v473 = vld [vmem:[%s472] sm:$0xff]
    %v474 = vld [vmem:[%s472 + $0x8] sm:$0xff]
    %v475 = vld [vmem:[%s472 + $0x10] sm:$0xff]
    %v476 = vld [vmem:[%s472 + $0x18] sm:$0xff]
    %v477 = vld [vmem:[%s472 + $0x20] sm:$0xff]
    %v478 = vld [vmem:[%s472 + $0x28] sm:$0xff]
    %v479 = vld [vmem:[%s472 + $0x30] sm:$0xff]
    %v480 = vld [vmem:[%s472 + $0x38] sm:$0xff]
    %v481 = vld [vmem:[%s472 + $0x40] sm:$0xff]
    %v482 = vld [vmem:[%s472 + $0x48] sm:$0xff]
    %v483 = vld [vmem:[%s472 + $0x50] sm:$0xff]
    %v484 = vld [vmem:[%s472 + $0x58] sm:$0xff]
    %v485 = vld [vmem:[%s472 + $0x60] sm:$0xff]
    %v486 = vld [vmem:[%s472 + $0x68] sm:$0xff]
    %v487 = vld [vmem:[%s472 + $0x70] sm:$0xff]
    %v488 = vld [vmem:[%s472 + $0x78] sm:$0xff]
    %v489 = vld [vmem:[%s472 + $0x80] sm:$0xff]
    %v490 = vld [vmem:[%s472 + $0x88] sm:$0xff]
    %v491 = vld [vmem:[%s472 + $0x90] sm:$0xff]
    %v492 = vld [vmem:[%s472 + $0x98] sm:$0xff]
    %v493 = vld [vmem:[%s472 + $0xa0] sm:$0xff]
    %v494 = vld [vmem:[%s472 + $0xa8] sm:$0xff]
    %v495 = vld [vmem:[%s472 + $0xb0] sm:$0xff]
    %v496 = vld [vmem:[%s472 + $0xb8] sm:$0xff]
    %v497 = vld [vmem:[%s472 + $0xc0] sm:$0xff]
    %v498 = vld [vmem:[%s472 + $0xc8] sm:$0xff]
    %v499 = vld [vmem:[%s472 + $0xd0] sm:$0xff]
    %v500 = vld [vmem:[%s472 + $0xd8] sm:$0xff]
    %v501 = vld [vmem:[%s472 + $0xe0] sm:$0xff]
    %v502 = vld [vmem:[%s472 + $0xe8] sm:$0xff]
    %v503 = vld [vmem:[%s472 + $0xf0] sm:$0xff]
    %v504 = vld [vmem:[%s472 + $0xf8] sm:$0xff]
    %v505 = vld [vmem:[#allocation2] sm:$0xff]
    %v506 = vld [vmem:[#allocation2 + $0x8] sm:$0xff]
    %v507 = vld [vmem:[#allocation11] sm:$0xff]
    %v508 = vld [vmem:[#allocation11 + $0x8] sm:$0xff]
    %v509 = vld [vmem:[#allocation11 + $0x10] sm:$0xff]
    %v510 = vld [vmem:[#allocation11 + $0x18] sm:$0xff]
    %v511 = vld [vmem:[#allocation11 + $0x20] sm:$0xff]
    %v512 = vld [vmem:[#allocation11 + $0x28] sm:$0xff]
    %v513 = vld [vmem:[#allocation11 + $0x30] sm:$0xff]
    %v514 = vld [vmem:[#allocation11 + $0x38] sm:$0xff]
    %v515 = vld [vmem:[#allocation11 + $0x40] sm:$0xff]
    %v516 = vld [vmem:[#allocation11 + $0x48] sm:$0xff]
    %v517 = vld [vmem:[#allocation11 + $0x50] sm:$0xff]
    %v518 = vld [vmem:[#allocation11 + $0x58] sm:$0xff]
    %v519 = vld [vmem:[#allocation11 + $0x60] sm:$0xff]
    %v520 = vld [vmem:[#allocation11 + $0x68] sm:$0xff]
    %v521 = vld [vmem:[#allocation11 + $0x70] sm:$0xff]
    %v522 = vld [vmem:[#allocation11 + $0x78] sm:$0xff]
    %v523 = vld [vmem:[#allocation11 + $0x80] sm:$0xff]
    %v524 = vld [vmem:[#allocation11 + $0x88] sm:$0xff]
    %v525 = vld [vmem:[#allocation11 + $0x90] sm:$0xff]
    %v526 = vld [vmem:[#allocation11 + $0x98] sm:$0xff]
    %v527 = vld [vmem:[#allocation11 + $0xa0] sm:$0xff]
    %v528 = vld [vmem:[#allocation11 + $0xa8] sm:$0xff]
    %v529 = vld [vmem:[#allocation11 + $0xb0] sm:$0xff]
    %v530 = vld [vmem:[#allocation11 + $0xb8] sm:$0xff]
    %v531 = vld [vmem:[#allocation11 + $0xc0] sm:$0xff]
    %v532 = vld [vmem:[#allocation11 + $0xc8] sm:$0xff]
    %v533 = vld [vmem:[#allocation11 + $0xd0] sm:$0xff]
    %v534 = vld [vmem:[#allocation11 + $0xd8] sm:$0xff]
    %v535 = vld [vmem:[#allocation11 + $0xe0] sm:$0xff]
    %v536 = vld [vmem:[#allocation11 + $0xe8] sm:$0xff]
    %v537 = vld [vmem:[#allocation11 + $0xf0] sm:$0xff]
    %v538 = vld [vmem:[#allocation11 + $0xf8] sm:$0xff]
    %v541 = vunpack.c.l.b16 %v505
    %v542 = vunpack.c.h.b16 %v505
    %v543 = vunpack.c.l.b16 %v506
    %v544 = vunpack.c.h.b16 %v506
    %v545 = vpack.c.b16 %v543, %v541
    %v546 = vpack.c.b16 %v544, %v542
    %v581 = vunpack.c.l.b16 %v507
    %v582 = vunpack.c.h.b16 %v507
    %v583 = vunpack.c.l.b16 %v508
    %v584 = vunpack.c.h.b16 %v508
    %v585 = vunpack.c.l.b16 %v509
    %v586 = vunpack.c.h.b16 %v509
    %v587 = vunpack.c.l.b16 %v510
    %v588 = vunpack.c.h.b16 %v510
    %v589 = vunpack.c.l.b16 %v511
    %v590 = vunpack.c.h.b16 %v511
    %v591 = vunpack.c.l.b16 %v512
    %v592 = vunpack.c.h.b16 %v512
    %v593 = vunpack.c.l.b16 %v513
    %v594 = vunpack.c.h.b16 %v513
    %v595 = vunpack.c.l.b16 %v514
    %v596 = vunpack.c.h.b16 %v514
    %v597 = vunpack.c.l.b16 %v515
    %v598 = vunpack.c.h.b16 %v515
    %v599 = vunpack.c.l.b16 %v516
    %v600 = vunpack.c.h.b16 %v516
    %v601 = vunpack.c.l.b16 %v517
    %v602 = vunpack.c.h.b16 %v517
    %v603 = vunpack.c.l.b16 %v518
    %v604 = vunpack.c.h.b16 %v518
    %v605 = vunpack.c.l.b16 %v519
    %v606 = vunpack.c.h.b16 %v519
    %v607 = vunpack.c.l.b16 %v520
    %v608 = vunpack.c.h.b16 %v520
    %v609 = vunpack.c.l.b16 %v521
    %v610 = vunpack.c.h.b16 %v521
    %v611 = vunpack.c.l.b16 %v522
    %v612 = vunpack.c.h.b16 %v522
    %v613 = vunpack.c.l.b16 %v523
    %v614 = vunpack.c.h.b16 %v523
    %v615 = vunpack.c.l.b16 %v524
    %v616 = vunpack.c.h.b16 %v524
    %v617 = vunpack.c.l.b16 %v525
    %v618 = vunpack.c.h.b16 %v525
    %v619 = vunpack.c.l.b16 %v526
    %v620 = vunpack.c.h.b16 %v526
    %v621 = vunpack.c.l.b16 %v527
    %v622 = vunpack.c.h.b16 %v527
    %v623 = vunpack.c.l.b16 %v528
    %v624 = vunpack.c.h.b16 %v528
    %v625 = vunpack.c.l.b16 %v529
    %v626 = vunpack.c.h.b16 %v529
    %v627 = vunpack.c.l.b16 %v530
    %v628 = vunpack.c.h.b16 %v530
    %v629 = vunpack.c.l.b16 %v531
    %v630 = vunpack.c.h.b16 %v531
    %v631 = vunpack.c.l.b16 %v532
    %v632 = vunpack.c.h.b16 %v532
    %v633 = vunpack.c.l.b16 %v533
    %v634 = vunpack.c.h.b16 %v533
    %v635 = vunpack.c.l.b16 %v534
    %v636 = vunpack.c.h.b16 %v534
    %v637 = vunpack.c.l.b16 %v535
    %v638 = vunpack.c.h.b16 %v535
    %v639 = vunpack.c.l.b16 %v536
    %v640 = vunpack.c.h.b16 %v536
    %v641 = vunpack.c.l.b16 %v537
    %v642 = vunpack.c.h.b16 %v537
    %v643 = vunpack.c.l.b16 %v538
    %v644 = vunpack.c.h.b16 %v538
    %v645 = vpack.c.b16 %v583, %v581
    %v646 = vpack.c.b16 %v584, %v582
    %v647 = vpack.c.b16 %v587, %v585
    %v648 = vpack.c.b16 %v588, %v586
    %v649 = vpack.c.b16 %v591, %v589
    %v650 = vpack.c.b16 %v592, %v590
    %v651 = vpack.c.b16 %v595, %v593
    %v652 = vpack.c.b16 %v596, %v594
    %v653 = vpack.c.b16 %v599, %v597
    %v654 = vpack.c.b16 %v600, %v598
    %v655 = vpack.c.b16 %v603, %v601
    %v656 = vpack.c.b16 %v604, %v602
    %v657 = vpack.c.b16 %v607, %v605
    %v658 = vpack.c.b16 %v608, %v606
    %v659 = vpack.c.b16 %v611, %v609
    %v660 = vpack.c.b16 %v612, %v610
    %v661 = vpack.c.b16 %v615, %v613
    %v662 = vpack.c.b16 %v616, %v614
    %v663 = vpack.c.b16 %v619, %v617
    %v664 = vpack.c.b16 %v620, %v618
    %v665 = vpack.c.b16 %v623, %v621
    %v666 = vpack.c.b16 %v624, %v622
    %v667 = vpack.c.b16 %v627, %v625
    %v668 = vpack.c.b16 %v628, %v626
    %v669 = vpack.c.b16 %v631, %v629
    %v670 = vpack.c.b16 %v632, %v630
    %v671 = vpack.c.b16 %v635, %v633
    %v672 = vpack.c.b16 %v636, %v634
    %v673 = vpack.c.b16 %v639, %v637
    %v674 = vpack.c.b16 %v640, %v638
    %v675 = vpack.c.b16 %v643, %v641
    %v676 = vpack.c.b16 %v644, %v642
    %709 = vmatprep.subr.bf16.mxu0 %v660
    %710 = vmatpush1.bf16.msra.mxu0 %v659
    %711 = vmatprep.subr.bf16.mxu0 %v658
    %712 = vmatpush1.bf16.msra.mxu0 %v657
    %713 = vmatprep.subr.bf16.mxu0 %v656
    %714 = vmatpush1.bf16.msra.mxu0 %v655
    %715 = vmatprep.subr.bf16.mxu0 %v654
    %716 = vmatpush1.bf16.msra.mxu0 %v653
    %717 = vmatprep.subr.bf16.mxu0 %v652
    %718 = vmatpush1.bf16.msra.mxu0 %v651
    %719 = vmatprep.subr.bf16.mxu0 %v650
    %720 = vmatpush1.bf16.msra.mxu0 %v649
    %721 = vmatprep.subr.bf16.mxu0 %v648
    %722 = vmatpush1.bf16.msra.mxu0 %v647
    %723 = vmatprep.subr.bf16.mxu0 %v646
    %724 = vmatpush1.bf16.msra.mxu0 %v645
    %725 = vmatprep.subr.bf16.mxu0 %v676
    %726 = vmatpush2.bf16.msra.mxu0 %v675
    %727 = vmatprep.subr.bf16.mxu0 %v674
    %728 = vmatpush2.bf16.msra.mxu0 %v673
    %729 = vmatprep.subr.bf16.mxu0 %v672
    %730 = vmatpush2.bf16.msra.mxu0 %v671
    %731 = vmatprep.subr.bf16.mxu0 %v670
    %732 = vmatpush2.bf16.msra.mxu0 %v669
    %733 = vmatprep.subr.bf16.mxu0 %v668
    %734 = vmatpush2.bf16.msra.mxu0 %v667
    %735 = vmatprep.subr.bf16.mxu0 %v666
    %736 = vmatpush2.bf16.msra.mxu0 %v665
    %737 = vmatprep.subr.bf16.mxu0 %v664
    %738 = vmatpush2.bf16.msra.mxu0 %v663
    %739 = vmatprep.subr.bf16.mxu0 %v662
    %740 = vmatpush2.bf16.msra.mxu0 %v661
    %741 = vmatprep.mubr.bf16.mxu0 %v546
    %742 = vmatmul.mubr.bf16.gmra.mxu0 %v545
    %v743 = vpop.f32.mrf.mxu0
    %v744 = vadd.f32 0.0, %v743
    %v745 = vpop.f32.mrf.mxu0
    %v746 = vadd.f32 0.0, %v745
    %v747 = vpop.f32.mrf.mxu0
    %v748 = vadd.f32 0.0, %v747
    %v749 = vpop.f32.mrf.mxu0
    %v750 = vadd.f32 0.0, %v749
    %751 = vdwg.mxu0
    %v752 = vsel %vm160, 1, 0
    %v753 = vsel %vm161, 1, 0
    %vm754 = vcmp.eq.s32.totalorder %v752, 1
    %vm755 = vcmp.eq.s32.totalorder %v753, 1
    %v756 = vsel %vm754, %v744, 0.0
    %v757 = vsel %vm754, %v746, 0.0
    %v758 = vsel %vm755, %v748, 0.0
    %v759 = vsel %vm755, %v750, 0.0
    %v792 = vunpack.c.l.b16 %v473
    %v793 = vunpack.c.h.b16 %v473
    %v794 = vunpack.c.l.b16 %v474
    %v795 = vunpack.c.h.b16 %v474
    %v796 = vunpack.c.l.b16 %v475
    %v797 = vunpack.c.h.b16 %v475
    %v798 = vunpack.c.l.b16 %v476
    %v799 = vunpack.c.h.b16 %v476
    %v800 = vunpack.c.l.b16 %v477
    %v801 = vunpack.c.h.b16 %v477
    %v802 = vunpack.c.l.b16 %v478
    %v803 = vunpack.c.h.b16 %v478
    %v804 = vunpack.c.l.b16 %v479
    %v805 = vunpack.c.h.b16 %v479
    %v806 = vunpack.c.l.b16 %v480
    %v807 = vunpack.c.h.b16 %v480
    %v808 = vunpack.c.l.b16 %v481
    %v809 = vunpack.c.h.b16 %v481
    %v810 = vunpack.c.l.b16 %v482
    %v811 = vunpack.c.h.b16 %v482
    %v812 = vunpack.c.l.b16 %v483
    %v813 = vunpack.c.h.b16 %v483
    %v814 = vunpack.c.l.b16 %v484
    %v815 = vunpack.c.h.b16 %v484
    %v816 = vunpack.c.l.b16 %v485
    %v817 = vunpack.c.h.b16 %v485
    %v818 = vunpack.c.l.b16 %v486
    %v819 = vunpack.c.h.b16 %v486
    %v820 = vunpack.c.l.b16 %v487
    %v821 = vunpack.c.h.b16 %v487
    %v822 = vunpack.c.l.b16 %v488
    %v823 = vunpack.c.h.b16 %v488
    %v824 = vunpack.c.l.b16 %v489
    %v825 = vunpack.c.h.b16 %v489
    %v826 = vunpack.c.l.b16 %v490
    %v827 = vunpack.c.h.b16 %v490
    %v828 = vunpack.c.l.b16 %v491
    %v829 = vunpack.c.h.b16 %v491
    %v830 = vunpack.c.l.b16 %v492
    %v831 = vunpack.c.h.b16 %v492
    %v832 = vunpack.c.l.b16 %v493
    %v833 = vunpack.c.h.b16 %v493
    %v834 = vunpack.c.l.b16 %v494
    %v835 = vunpack.c.h.b16 %v494
    %v836 = vunpack.c.l.b16 %v495
    %v837 = vunpack.c.h.b16 %v495
    %v838 = vunpack.c.l.b16 %v496
    %v839 = vunpack.c.h.b16 %v496
    %v840 = vunpack.c.l.b16 %v497
    %v841 = vunpack.c.h.b16 %v497
    %v842 = vunpack.c.l.b16 %v498
    %v843 = vunpack.c.h.b16 %v498
    %v844 = vunpack.c.l.b16 %v499
    %v845 = vunpack.c.h.b16 %v499
    %v846 = vunpack.c.l.b16 %v500
    %v847 = vunpack.c.h.b16 %v500
    %v848 = vunpack.c.l.b16 %v501
    %v849 = vunpack.c.h.b16 %v501
    %v850 = vunpack.c.l.b16 %v502
    %v851 = vunpack.c.h.b16 %v502
    %v852 = vunpack.c.l.b16 %v503
    %v853 = vunpack.c.h.b16 %v503
    %v854 = vunpack.c.l.b16 %v504
    %v855 = vunpack.c.h.b16 %v504
    %v856 = vpack.c.b16 %v794, %v792
    %v857 = vpack.c.b16 %v795, %v793
    %v858 = vpack.c.b16 %v798, %v796
    %v859 = vpack.c.b16 %v799, %v797
    %v860 = vpack.c.b16 %v802, %v800
    %v861 = vpack.c.b16 %v803, %v801
    %v862 = vpack.c.b16 %v806, %v804
    %v863 = vpack.c.b16 %v807, %v805
    %v864 = vpack.c.b16 %v810, %v808
    %v865 = vpack.c.b16 %v811, %v809
    %v866 = vpack.c.b16 %v814, %v812
    %v867 = vpack.c.b16 %v815, %v813
    %v868 = vpack.c.b16 %v818, %v816
    %v869 = vpack.c.b16 %v819, %v817
    %v870 = vpack.c.b16 %v822, %v820
    %v871 = vpack.c.b16 %v823, %v821
    %v872 = vpack.c.b16 %v826, %v824
    %v873 = vpack.c.b16 %v827, %v825
    %v874 = vpack.c.b16 %v830, %v828
    %v875 = vpack.c.b16 %v831, %v829
    %v876 = vpack.c.b16 %v834, %v832
    %v877 = vpack.c.b16 %v835, %v833
    %v878 = vpack.c.b16 %v838, %v836
    %v879 = vpack.c.b16 %v839, %v837
    %v880 = vpack.c.b16 %v842, %v840
    %v881 = vpack.c.b16 %v843, %v841
    %v882 = vpack.c.b16 %v846, %v844
    %v883 = vpack.c.b16 %v847, %v845
    %v884 = vpack.c.b16 %v850, %v848
    %v885 = vpack.c.b16 %v851, %v849
    %v886 = vpack.c.b16 %v854, %v852
    %v887 = vpack.c.b16 %v855, %v853
    %920 = vmatprep.subr.bf16.mxu0 %v871
    %921 = vmatpush1.bf16.msra.mxu0 %v870
    %922 = vmatprep.subr.bf16.mxu0 %v869
    %923 = vmatpush1.bf16.msra.mxu0 %v868
    %924 = vmatprep.subr.bf16.mxu0 %v867
    %925 = vmatpush1.bf16.msra.mxu0 %v866
    %926 = vmatprep.subr.bf16.mxu0 %v865
    %927 = vmatpush1.bf16.msra.mxu0 %v864
    %928 = vmatprep.subr.bf16.mxu0 %v863
    %929 = vmatpush1.bf16.msra.mxu0 %v862
    %930 = vmatprep.subr.bf16.mxu0 %v861
    %931 = vmatpush1.bf16.msra.mxu0 %v860
    %932 = vmatprep.subr.bf16.mxu0 %v859
    %933 = vmatpush1.bf16.msra.mxu0 %v858
    %934 = vmatprep.subr.bf16.mxu0 %v857
    %935 = vmatpush1.bf16.msra.mxu0 %v856
    %936 = vmatprep.subr.bf16.mxu0 %v887
    %937 = vmatpush2.bf16.msra.mxu0 %v886
    %938 = vmatprep.subr.bf16.mxu0 %v885
    %939 = vmatpush2.bf16.msra.mxu0 %v884
    %940 = vmatprep.subr.bf16.mxu0 %v883
    %941 = vmatpush2.bf16.msra.mxu0 %v882
    %942 = vmatprep.subr.bf16.mxu0 %v881
    %943 = vmatpush2.bf16.msra.mxu0 %v880
    %944 = vmatprep.subr.bf16.mxu0 %v879
    %945 = vmatpush2.bf16.msra.mxu0 %v878
    %946 = vmatprep.subr.bf16.mxu0 %v877
    %947 = vmatpush2.bf16.msra.mxu0 %v876
    %948 = vmatprep.subr.bf16.mxu0 %v875
    %949 = vmatpush2.bf16.msra.mxu0 %v874
    %950 = vmatprep.subr.bf16.mxu0 %v873
    %951 = vmatpush2.bf16.msra.mxu0 %v872
    %952 = vmatprep.mubr.bf16.mxu0 %v420
    %953 = vmatmul.mubr.bf16.gmra.mxu0 %v419
    %v954 = vpop.f32.mrf.mxu0
    %v955 = vadd.f32 %v756, %v954
    %v956 = vpop.f32.mrf.mxu0
    %v957 = vadd.f32 %v757, %v956
    %v958 = vpop.f32.mrf.mxu0
    %v959 = vadd.f32 %v758, %v958
    %v960 = vpop.f32.mrf.mxu0
    %v961 = vadd.f32 %v759, %v960
    %962 = vdwg.mxu0
    %v963 = vld [vmem:[#allocation2] sm:$0xee]
    %v964 = vld [vmem:[#allocation2 + $0x8] sm:$0xff]
    %v965 = vld [vmem:[#allocation2 + $0x10] sm:$0x11]
    %s966 = scalar_lea.vmem [#allocation11], 512
    %v967 = vld [vmem:[%s966] sm:$0xff]
    %v968 = vld [vmem:[%s966 + $0x8] sm:$0xff]
    %v969 = vld [vmem:[%s966 + $0x10] sm:$0xff]
    %v970 = vld [vmem:[%s966 + $0x18] sm:$0xff]
    %v971 = vld [vmem:[%s966 + $0x20] sm:$0xff]
    %v972 = vld [vmem:[%s966 + $0x28] sm:$0xff]
    %v973 = vld [vmem:[%s966 + $0x30] sm:$0xff]
    %v974 = vld [vmem:[%s966 + $0x38] sm:$0xff]
    %v975 = vld [vmem:[%s966 + $0x40] sm:$0xff]
    %v976 = vld [vmem:[%s966 + $0x48] sm:$0xff]
    %v977 = vld [vmem:[%s966 + $0x50] sm:$0xff]
    %v978 = vld [vmem:[%s966 + $0x58] sm:$0xff]
    %v979 = vld [vmem:[%s966 + $0x60] sm:$0xff]
    %v980 = vld [vmem:[%s966 + $0x68] sm:$0xff]
    %v981 = vld [vmem:[%s966 + $0x70] sm:$0xff]
    %v982 = vld [vmem:[%s966 + $0x78] sm:$0xff]
    %v983 = vld [vmem:[%s966 + $0x80] sm:$0xff]
    %v984 = vld [vmem:[%s966 + $0x88] sm:$0xff]
    %v985 = vld [vmem:[%s966 + $0x90] sm:$0xff]
    %v986 = vld [vmem:[%s966 + $0x98] sm:$0xff]
    %v987 = vld [vmem:[%s966 + $0xa0] sm:$0xff]
    %v988 = vld [vmem:[%s966 + $0xa8] sm:$0xff]
    %v989 = vld [vmem:[%s966 + $0xb0] sm:$0xff]
    %v990 = vld [vmem:[%s966 + $0xb8] sm:$0xff]
    %v991 = vld [vmem:[%s966 + $0xc0] sm:$0xff]
    %v992 = vld [vmem:[%s966 + $0xc8] sm:$0xff]
    %v993 = vld [vmem:[%s966 + $0xd0] sm:$0xff]
    %v994 = vld [vmem:[%s966 + $0xd8] sm:$0xff]
    %v995 = vld [vmem:[%s966 + $0xe0] sm:$0xff]
    %v996 = vld [vmem:[%s966 + $0xe8] sm:$0xff]
    %v997 = vld [vmem:[%s966 + $0xf0] sm:$0xff]
    %v998 = vld [vmem:[%s966 + $0xf8] sm:$0xff]
    %v1002 = vunpack.c.l.b16 %v963
    %v1003 = vunpack.c.h.b16 %v963
    %v1004 = vunpack.c.l.b16 %v964
    %v1005 = vunpack.c.h.b16 %v964
    %v1006 = vunpack.c.l.b16 %v965
    %v1007 = vunpack.c.h.b16 %v965
    %v1008 = vpack.c.b16 %v1004, %v1002
    %v1009 = vpack.c.b16 %v1005, %v1003
    %v1010 = vpack.c.b16 %v1006, %v1006
    %v1011 = vpack.c.b16 %v1007, %v1007
    %vm1012 = vcmask 1046528
    %v1013 = vrot.slane %v1008, 1
    %v1014 = vrot.slane %v1010, 1
    %v1015 = vsel %vm1012, %v1013, %v1014
    %v1016 = vrot.slane %v1009, 1
    %v1017 = vrot.slane %v1011, 1
    %v1018 = vsel %vm1012, %v1016, %v1017
    %v1053 = vunpack.c.l.b16 %v967
    %v1054 = vunpack.c.h.b16 %v967
    %v1055 = vunpack.c.l.b16 %v968
    %v1056 = vunpack.c.h.b16 %v968
    %v1057 = vunpack.c.l.b16 %v969
    %v1058 = vunpack.c.h.b16 %v969
    %v1059 = vunpack.c.l.b16 %v970
    %v1060 = vunpack.c.h.b16 %v970
    %v1061 = vunpack.c.l.b16 %v971
    %v1062 = vunpack.c.h.b16 %v971
    %v1063 = vunpack.c.l.b16 %v972
    %v1064 = vunpack.c.h.b16 %v972
    %v1065 = vunpack.c.l.b16 %v973
    %v1066 = vunpack.c.h.b16 %v973
    %v1067 = vunpack.c.l.b16 %v974
    %v1068 = vunpack.c.h.b16 %v974
    %v1069 = vunpack.c.l.b16 %v975
    %v1070 = vunpack.c.h.b16 %v975
    %v1071 = vunpack.c.l.b16 %v976
    %v1072 = vunpack.c.h.b16 %v976
    %v1073 = vunpack.c.l.b16 %v977
    %v1074 = vunpack.c.h.b16 %v977
    %v1075 = vunpack.c.l.b16 %v978
    %v1076 = vunpack.c.h.b16 %v978
    %v1077 = vunpack.c.l.b16 %v979
    %v1078 = vunpack.c.h.b16 %v979
    %v1079 = vunpack.c.l.b16 %v980
    %v1080 = vunpack.c.h.b16 %v980
    %v1081 = vunpack.c.l.b16 %v981
    %v1082 = vunpack.c.h.b16 %v981
    %v1083 = vunpack.c.l.b16 %v982
    %v1084 = vunpack.c.h.b16 %v982
    %v1085 = vunpack.c.l.b16 %v983
    %v1086 = vunpack.c.h.b16 %v983
    %v1087 = vunpack.c.l.b16 %v984
    %v1088 = vunpack.c.h.b16 %v984
    %v1089 = vunpack.c.l.b16 %v985
    %v1090 = vunpack.c.h.b16 %v985
    %v1091 = vunpack.c.l.b16 %v986
    %v1092 = vunpack.c.h.b16 %v986
    %v1093 = vunpack.c.l.b16 %v987
    %v1094 = vunpack.c.h.b16 %v987
    %v1095 = vunpack.c.l.b16 %v988
    %v1096 = vunpack.c.h.b16 %v988
    %v1097 = vunpack.c.l.b16 %v989
    %v1098 = vunpack.c.h.b16 %v989
    %v1099 = vunpack.c.l.b16 %v990
    %v1100 = vunpack.c.h.b16 %v990
    %v1101 = vunpack.c.l.b16 %v991
    %v1102 = vunpack.c.h.b16 %v991
    %v1103 = vunpack.c.l.b16 %v992
    %v1104 = vunpack.c.h.b16 %v992
    %v1105 = vunpack.c.l.b16 %v993
    %v1106 = vunpack.c.h.b16 %v993
    %v1107 = vunpack.c.l.b16 %v994
    %v1108 = vunpack.c.h.b16 %v994
    %v1109 = vunpack.c.l.b16 %v995
    %v1110 = vunpack.c.h.b16 %v995
    %v1111 = vunpack.c.l.b16 %v996
    %v1112 = vunpack.c.h.b16 %v996
    %v1113 = vunpack.c.l.b16 %v997
    %v1114 = vunpack.c.h.b16 %v997
    %v1115 = vunpack.c.l.b16 %v998
    %v1116 = vunpack.c.h.b16 %v998
    %v1117 = vpack.c.b16 %v1055, %v1053
    %v1118 = vpack.c.b16 %v1056, %v1054
    %v1119 = vpack.c.b16 %v1059, %v1057
    %v1120 = vpack.c.b16 %v1060, %v1058
    %v1121 = vpack.c.b16 %v1063, %v1061
    %v1122 = vpack.c.b16 %v1064, %v1062
    %v1123 = vpack.c.b16 %v1067, %v1065
    %v1124 = vpack.c.b16 %v1068, %v1066
    %v1125 = vpack.c.b16 %v1071, %v1069
    %v1126 = vpack.c.b16 %v1072, %v1070
    %v1127 = vpack.c.b16 %v1075, %v1073
    %v1128 = vpack.c.b16 %v1076, %v1074
    %v1129 = vpack.c.b16 %v1079, %v1077
    %v1130 = vpack.c.b16 %v1080, %v1078
    %v1131 = vpack.c.b16 %v1083, %v1081
    %v1132 = vpack.c.b16 %v1084, %v1082
    %v1133 = vpack.c.b16 %v1087, %v1085
    %v1134 = vpack.c.b16 %v1088, %v1086
    %v1135 = vpack.c.b16 %v1091, %v1089
    %v1136 = vpack.c.b16 %v1092, %v1090
    %v1137 = vpack.c.b16 %v1095, %v1093
    %v1138 = vpack.c.b16 %v1096, %v1094
    %v1139 = vpack.c.b16 %v1099, %v1097
    %v1140 = vpack.c.b16 %v1100, %v1098
    %v1141 = vpack.c.b16 %v1103, %v1101
    %v1142 = vpack.c.b16 %v1104, %v1102
    %v1143 = vpack.c.b16 %v1107, %v1105
    %v1144 = vpack.c.b16 %v1108, %v1106
    %v1145 = vpack.c.b16 %v1111, %v1109
    %v1146 = vpack.c.b16 %v1112, %v1110
    %v1147 = vpack.c.b16 %v1115, %v1113
    %v1148 = vpack.c.b16 %v1116, %v1114
    %1181 = vmatprep.subr.bf16.mxu0 %v1132
    %1182 = vmatpush1.bf16.msra.mxu0 %v1131
    %1183 = vmatprep.subr.bf16.mxu0 %v1130
    %1184 = vmatpush1.bf16.msra.mxu0 %v1129
    %1185 = vmatprep.subr.bf16.mxu0 %v1128
    %1186 = vmatpush1.bf16.msra.mxu0 %v1127
    %1187 = vmatprep.subr.bf16.mxu0 %v1126
    %1188 = vmatpush1.bf16.msra.mxu0 %v1125
    %1189 = vmatprep.subr.bf16.mxu0 %v1124
    %1190 = vmatpush1.bf16.msra.mxu0 %v1123
    %1191 = vmatprep.subr.bf16.mxu0 %v1122
    %1192 = vmatpush1.bf16.msra.mxu0 %v1121
    %1193 = vmatprep.subr.bf16.mxu0 %v1120
    %1194 = vmatpush1.bf16.msra.mxu0 %v1119
    %1195 = vmatprep.subr.bf16.mxu0 %v1118
    %1196 = vmatpush1.bf16.msra.mxu0 %v1117
    %1197 = vmatprep.subr.bf16.mxu0 %v1148
    %1198 = vmatpush2.bf16.msra.mxu0 %v1147
    %1199 = vmatprep.subr.bf16.mxu0 %v1146
    %1200 = vmatpush2.bf16.msra.mxu0 %v1145
    %1201 = vmatprep.subr.bf16.mxu0 %v1144
    %1202 = vmatpush2.bf16.msra.mxu0 %v1143
    %1203 = vmatprep.subr.bf16.mxu0 %v1142
    %1204 = vmatpush2.bf16.msra.mxu0 %v1141
    %1205 = vmatprep.subr.bf16.mxu0 %v1140
    %1206 = vmatpush2.bf16.msra.mxu0 %v1139
    %1207 = vmatprep.subr.bf16.mxu0 %v1138
    %1208 = vmatpush2.bf16.msra.mxu0 %v1137
    %1209 = vmatprep.subr.bf16.mxu0 %v1136
    %1210 = vmatpush2.bf16.msra.mxu0 %v1135
    %1211 = vmatprep.subr.bf16.mxu0 %v1134
    %1212 = vmatpush2.bf16.msra.mxu0 %v1133
    %1213 = vmatprep.mubr.bf16.mxu0 %v1018
    %1214 = vmatmul.mubr.bf16.gmra.mxu0 %v1015
    %v1215 = vpop.f32.mrf.mxu0
    %v1216 = vadd.f32 0.0, %v1215
    %v1217 = vpop.f32.mrf.mxu0
    %v1218 = vadd.f32 0.0, %v1217
    %v1219 = vpop.f32.mrf.mxu0
    %v1220 = vadd.f32 0.0, %v1219
    %v1221 = vpop.f32.mrf.mxu0
    %v1222 = vadd.f32 0.0, %v1221
    %1223 = vdwg.mxu0
    %v1224 = vsel %vm162, 1, 0
    %v1225 = vsel %vm163, 1, 0
    %vm1226 = vcmp.eq.s32.totalorder %v1224, 1
    %vm1227 = vcmp.eq.s32.totalorder %v1225, 1
    %v1228 = vsel %vm1226, %v1216, 0.0
    %v1229 = vsel %vm1226, %v1218, 0.0
    %v1230 = vsel %vm1227, %v1220, 0.0
    %v1231 = vsel %vm1227, %v1222, 0.0
    %v1232 = vadd.f32 %v955, %v1228
    %v1233 = vadd.f32 %v957, %v1229
    %v1234 = vadd.f32 %v959, %v1230
    %v1235 = vadd.f32 %v961, %v1231
    %v1236 = vld [vmem:[#allocation12] sm:$0x3]
    %v1238 = vlaneseq
    %v1239 = vshrl.u32 %v1238, 7
    %v1240 = vsub.s32 0, %v1239
    %v1241 = vrot.slane %v1236, %v1240
    %v1242 = vlaneseq
    %v1243 = vshrl.u32 %v1242, 7
    %v1244 = vsub.s32 1, %v1243
    %v1245 = vrot.slane %v1236, %v1244
    %v1248 = vadd.f32 %v1232, %v1241
    %v1249 = vadd.f32 %v1233, %v1245
    %v1250 = vadd.f32 %v1234, %v1241
    %v1251 = vadd.f32 %v1235, %v1245
    %vm1252 = vcmp.ge.f32.partialorder %v1248, 0.0
    %vm1253 = vcmp.ge.f32.partialorder %v1249, 0.0
    %vm1254 = vcmp.ge.f32.partialorder %v1250, 0.0
    %vm1255 = vcmp.ge.f32.partialorder %v1251, 0.0
    %v1256 = vmul.f32 %v1248, 0.2
    %v1257 = vmul.f32 %v1249, 0.2
    %v1258 = vmul.f32 %v1250, 0.2
    %v1259 = vmul.f32 %v1251, 0.2
    %v1260 = vsel %vm1252, %v1248, %v1256
    %v1261 = vsel %vm1253, %v1249, %v1257
    %v1262 = vsel %vm1254, %v1250, %v1258
    %v1263 = vsel %vm1255, %v1251, %v1259
    %v1264 = vmul.f32 %v1260, 1.4142135
    %v1265 = vmul.f32 %v1261, 1.4142135
    %v1266 = vmul.f32 %v1262, 1.4142135
    %v1267 = vmul.f32 %v1263, 1.4142135
    %v1268 = vpack.c.bf16 %v1266, %v1264
    %v1269 = vpack.c.bf16 %v1267, %v1265
    %v1272 = vunpack.c.l.b16 %v1268
    %v1273 = vunpack.c.l.b16 %v1269
    %v1274 = vunpack.c.h.b16 %v1268
    %v1275 = vunpack.c.h.b16 %v1269
    %v1276 = vpack.c.b16 %v1273, %v1272
    %v1277 = vpack.c.b16 %v1275, %v1274
    %v1279 = vshrl.u32 %v1276, 16
    %v1281 = vrot.slane %v1279, 7
    %v1282 = vshll.u32 %v1276, 16
    %v1284 = vor.u32 %v1281, %v1282
    %v1285 = vrot.slane %v1281, 4
    %v1287 = vshrl.u32 %v1277, 16
    %v1289 = vrot.slane %v1287, 7
    %v1290 = vshll.u32 %v1277, 16
    %v1292 = vor.u32 %v1289, %v1290
    %v1293 = vsel %vm431, %v1285, %v1292
    %v1294 = vrot.slane %v1289, 4
    %v1298 = vld [vmem:[#allocation3] sm:$0xff]
    %v1299 = vsel %vm458, %v1284, %v1298
    %1300 = vst [vmem:[#allocation3] sm:$0xff] %v1299
    %1301 = vst [vmem:[#allocation3 + $0x8] sm:$0xff] %v1293
    %v1302 = vld [vmem:[#allocation3 + $0x10] sm:$0x11]
    %v1303 = vsel %vm468, %v1294, %v1302
    %1304 = vst [vmem:[#allocation3 + $0x10] sm:$0x11] %v1303
    %s1305 = scalar_lea.vmem [#allocation14], 256
    %v1306 = vld [vmem:[%s1305] sm:$0xff]
    %v1307 = vld [vmem:[%s1305 + $0x8] sm:$0xff]
    %v1308 = vld [vmem:[%s1305 + $0x10] sm:$0xff]
    %v1309 = vld [vmem:[%s1305 + $0x18] sm:$0xff]
    %v1310 = vld [vmem:[%s1305 + $0x20] sm:$0xff]
    %v1311 = vld [vmem:[%s1305 + $0x28] sm:$0xff]
    %v1312 = vld [vmem:[%s1305 + $0x30] sm:$0xff]
    %v1313 = vld [vmem:[%s1305 + $0x38] sm:$0xff]
    %v1314 = vld [vmem:[%s1305 + $0x40] sm:$0xff]
    %v1315 = vld [vmem:[%s1305 + $0x48] sm:$0xff]
    %v1316 = vld [vmem:[%s1305 + $0x50] sm:$0xff]
    %v1317 = vld [vmem:[%s1305 + $0x58] sm:$0xff]
    %v1318 = vld [vmem:[%s1305 + $0x60] sm:$0xff]
    %v1319 = vld [vmem:[%s1305 + $0x68] sm:$0xff]
    %v1320 = vld [vmem:[%s1305 + $0x70] sm:$0xff]
    %v1321 = vld [vmem:[%s1305 + $0x78] sm:$0xff]
    %v1322 = vld [vmem:[%s1305 + $0x80] sm:$0xff]
    %v1323 = vld [vmem:[%s1305 + $0x88] sm:$0xff]
    %v1324 = vld [vmem:[%s1305 + $0x90] sm:$0xff]
    %v1325 = vld [vmem:[%s1305 + $0x98] sm:$0xff]
    %v1326 = vld [vmem:[%s1305 + $0xa0] sm:$0xff]
    %v1327 = vld [vmem:[%s1305 + $0xa8] sm:$0xff]
    %v1328 = vld [vmem:[%s1305 + $0xb0] sm:$0xff]
    %v1329 = vld [vmem:[%s1305 + $0xb8] sm:$0xff]
    %v1330 = vld [vmem:[%s1305 + $0xc0] sm:$0xff]
    %v1331 = vld [vmem:[%s1305 + $0xc8] sm:$0xff]
    %v1332 = vld [vmem:[%s1305 + $0xd0] sm:$0xff]
    %v1333 = vld [vmem:[%s1305 + $0xd8] sm:$0xff]
    %v1334 = vld [vmem:[%s1305 + $0xe0] sm:$0xff]
    %v1335 = vld [vmem:[%s1305 + $0xe8] sm:$0xff]
    %v1336 = vld [vmem:[%s1305 + $0xf0] sm:$0xff]
    %v1337 = vld [vmem:[%s1305 + $0xf8] sm:$0xff]
    %v1338 = vld [vmem:[#allocation3] sm:$0xff]
    %v1339 = vld [vmem:[#allocation3 + $0x8] sm:$0xff]
    %v1340 = vld [vmem:[#allocation14] sm:$0xff]
    %v1341 = vld [vmem:[#allocation14 + $0x8] sm:$0xff]
    %v1342 = vld [vmem:[#allocation14 + $0x10] sm:$0xff]
    %v1343 = vld [vmem:[#allocation14 + $0x18] sm:$0xff]
    %v1344 = vld [vmem:[#allocation14 + $0x20] sm:$0xff]
    %v1345 = vld [vmem:[#allocation14 + $0x28] sm:$0xff]
    %v1346 = vld [vmem:[#allocation14 + $0x30] sm:$0xff]
    %v1347 = vld [vmem:[#allocation14 + $0x38] sm:$0xff]
    %v1348 = vld [vmem:[#allocation14 + $0x40] sm:$0xff]
    %v1349 = vld [vmem:[#allocation14 + $0x48] sm:$0xff]
    %v1350 = vld [vmem:[#allocation14 + $0x50] sm:$0xff]
    %v1351 = vld [vmem:[#allocation14 + $0x58] sm:$0xff]
    %v1352 = vld [vmem:[#allocation14 + $0x60] sm:$0xff]
    %v1353 = vld [vmem:[#allocation14 + $0x68] sm:$0xff]
    %v1354 = vld [vmem:[#allocation14 + $0x70] sm:$0xff]
    %v1355 = vld [vmem:[#allocation14 + $0x78] sm:$0xff]
    %v1356 = vld [vmem:[#allocation14 + $0x80] sm:$0xff]
    %v1357 = vld [vmem:[#allocation14 + $0x88] sm:$0xff]
    %v1358 = vld [vmem:[#allocation14 + $0x90] sm:$0xff]
    %v1359 = vld [vmem:[#allocation14 + $0x98] sm:$0xff]
    %v1360 = vld [vmem:[#allocation14 + $0xa0] sm:$0xff]
    %v1361 = vld [vmem:[#allocation14 + $0xa8] sm:$0xff]
    %v1362 = vld [vmem:[#allocation14 + $0xb0] sm:$0xff]
    %v1363 = vld [vmem:[#allocation14 + $0xb8] sm:$0xff]
    %v1364 = vld [vmem:[#allocation14 + $0xc0] sm:$0xff]
    %v1365 = vld [vmem:[#allocation14 + $0xc8] sm:$0xff]
    %v1366 = vld [vmem:[#allocation14 + $0xd0] sm:$0xff]
    %v1367 = vld [vmem:[#allocation14 + $0xd8] sm:$0xff]
    %v1368 = vld [vmem:[#allocation14 + $0xe0] sm:$0xff]
    %v1369 = vld [vmem:[#allocation14 + $0xe8] sm:$0xff]
    %v1370 = vld [vmem:[#allocation14 + $0xf0] sm:$0xff]
    %v1371 = vld [vmem:[#allocation14 + $0xf8] sm:$0xff]
    %v1374 = vunpack.c.l.b16 %v1338
    %v1375 = vunpack.c.h.b16 %v1338
    %v1376 = vunpack.c.l.b16 %v1339
    %v1377 = vunpack.c.h.b16 %v1339
    %v1378 = vpack.c.b16 %v1376, %v1374
    %v1379 = vpack.c.b16 %v1377, %v1375
    %v1414 = vunpack.c.l.b16 %v1340
    %v1415 = vunpack.c.h.b16 %v1340
    %v1416 = vunpack.c.l.b16 %v1341
    %v1417 = vunpack.c.h.b16 %v1341
    %v1418 = vunpack.c.l.b16 %v1342
    %v1419 = vunpack.c.h.b16 %v1342
    %v1420 = vunpack.c.l.b16 %v1343
    %v1421 = vunpack.c.h.b16 %v1343
    %v1422 = vunpack.c.l.b16 %v1344
    %v1423 = vunpack.c.h.b16 %v1344
    %v1424 = vunpack.c.l.b16 %v1345
    %v1425 = vunpack.c.h.b16 %v1345
    %v1426 = vunpack.c.l.b16 %v1346
    %v1427 = vunpack.c.h.b16 %v1346
    %v1428 = vunpack.c.l.b16 %v1347
    %v1429 = vunpack.c.h.b16 %v1347
    %v1430 = vunpack.c.l.b16 %v1348
    %v1431 = vunpack.c.h.b16 %v1348
    %v1432 = vunpack.c.l.b16 %v1349
    %v1433 = vunpack.c.h.b16 %v1349
    %v1434 = vunpack.c.l.b16 %v1350
    %v1435 = vunpack.c.h.b16 %v1350
    %v1436 = vunpack.c.l.b16 %v1351
    %v1437 = vunpack.c.h.b16 %v1351
    %v1438 = vunpack.c.l.b16 %v1352
    %v1439 = vunpack.c.h.b16 %v1352
    %v1440 = vunpack.c.l.b16 %v1353
    %v1441 = vunpack.c.h.b16 %v1353
    %v1442 = vunpack.c.l.b16 %v1354
    %v1443 = vunpack.c.h.b16 %v1354
    %v1444 = vunpack.c.l.b16 %v1355
    %v1445 = vunpack.c.h.b16 %v1355
    %v1446 = vunpack.c.l.b16 %v1356
    %v1447 = vunpack.c.h.b16 %v1356
    %v1448 = vunpack.c.l.b16 %v1357
    %v1449 = vunpack.c.h.b16 %v1357
    %v1450 = vunpack.c.l.b16 %v1358
    %v1451 = vunpack.c.h.b16 %v1358
    %v1452 = vunpack.c.l.b16 %v1359
    %v1453 = vunpack.c.h.b16 %v1359
    %v1454 = vunpack.c.l.b16 %v1360
    %v1455 = vunpack.c.h.b16 %v1360
    %v1456 = vunpack.c.l.b16 %v1361
    %v1457 = vunpack.c.h.b16 %v1361
    %v1458 = vunpack.c.l.b16 %v1362
    %v1459 = vunpack.c.h.b16 %v1362
    %v1460 = vunpack.c.l.b16 %v1363
    %v1461 = vunpack.c.h.b16 %v1363
    %v1462 = vunpack.c.l.b16 %v1364
    %v1463 = vunpack.c.h.b16 %v1364
    %v1464 = vunpack.c.l.b16 %v1365
    %v1465 = vunpack.c.h.b16 %v1365
    %v1466 = vunpack.c.l.b16 %v1366
    %v1467 = vunpack.c.h.b16 %v1366
    %v1468 = vunpack.c.l.b16 %v1367
    %v1469 = vunpack.c.h.b16 %v1367
    %v1470 = vunpack.c.l.b16 %v1368
    %v1471 = vunpack.c.h.b16 %v1368
    %v1472 = vunpack.c.l.b16 %v1369
    %v1473 = vunpack.c.h.b16 %v1369
    %v1474 = vunpack.c.l.b16 %v1370
    %v1475 = vunpack.c.h.b16 %v1370
    %v1476 = vunpack.c.l.b16 %v1371
    %v1477 = vunpack.c.h.b16 %v1371
    %v1478 = vpack.c.b16 %v1416, %v1414
    %v1479 = vpack.c.b16 %v1417, %v1415
    %v1480 = vpack.c.b16 %v1420, %v1418
    %v1481 = vpack.c.b16 %v1421, %v1419
    %v1482 = vpack.c.b16 %v1424, %v1422
    %v1483 = vpack.c.b16 %v1425, %v1423
    %v1484 = vpack.c.b16 %v1428, %v1426
    %v1485 = vpack.c.b16 %v1429, %v1427
    %v1486 = vpack.c.b16 %v1432, %v1430
    %v1487 = vpack.c.b16 %v1433, %v1431
    %v1488 = vpack.c.b16 %v1436, %v1434
    %v1489 = vpack.c.b16 %v1437, %v1435
    %v1490 = vpack.c.b16 %v1440, %v1438
    %v1491 = vpack.c.b16 %v1441, %v1439
    %v1492 = vpack.c.b16 %v1444, %v1442
    %v1493 = vpack.c.b16 %v1445, %v1443
    %v1494 = vpack.c.b16 %v1448, %v1446
    %v1495 = vpack.c.b16 %v1449, %v1447
    %v1496 = vpack.c.b16 %v1452, %v1450
    %v1497 = vpack.c.b16 %v1453, %v1451
    %v1498 = vpack.c.b16 %v1456, %v1454
    %v1499 = vpack.c.b16 %v1457, %v1455
    %v1500 = vpack.c.b16 %v1460, %v1458
    %v1501 = vpack.c.b16 %v1461, %v1459
    %v1502 = vpack.c.b16 %v1464, %v1462
    %v1503 = vpack.c.b16 %v1465, %v1463
    %v1504 = vpack.c.b16 %v1468, %v1466
    %v1505 = vpack.c.b16 %v1469, %v1467
    %v1506 = vpack.c.b16 %v1472, %v1470
    %v1507 = vpack.c.b16 %v1473, %v1471
    %v1508 = vpack.c.b16 %v1476, %v1474
    %v1509 = vpack.c.b16 %v1477, %v1475
    %1542 = vmatprep.subr.bf16.mxu0 %v1493
    %1543 = vmatpush1.bf16.msra.mxu0 %v1492
    %1544 = vmatprep.subr.bf16.mxu0 %v1491
    %1545 = vmatpush1.bf16.msra.mxu0 %v1490
    %1546 = vmatprep.subr.bf16.mxu0 %v1489
    %1547 = vmatpush1.bf16.msra.mxu0 %v1488
    %1548 = vmatprep.subr.bf16.mxu0 %v1487
    %1549 = vmatpush1.bf16.msra.mxu0 %v1486
    %1550 = vmatprep.subr.bf16.mxu0 %v1485
    %1551 = vmatpush1.bf16.msra.mxu0 %v1484
    %1552 = vmatprep.subr.bf16.mxu0 %v1483
    %1553 = vmatpush1.bf16.msra.mxu0 %v1482
    %1554 = vmatprep.subr.bf16.mxu0 %v1481
    %1555 = vmatpush1.bf16.msra.mxu0 %v1480
    %1556 = vmatprep.subr.bf16.mxu0 %v1479
    %1557 = vmatpush1.bf16.msra.mxu0 %v1478
    %1558 = vmatprep.subr.bf16.mxu0 %v1509
    %1559 = vmatpush2.bf16.msra.mxu0 %v1508
    %1560 = vmatprep.subr.bf16.mxu0 %v1507
    %1561 = vmatpush2.bf16.msra.mxu0 %v1506
    %1562 = vmatprep.subr.bf16.mxu0 %v1505
    %1563 = vmatpush2.bf16.msra.mxu0 %v1504
    %1564 = vmatprep.subr.bf16.mxu0 %v1503
    %1565 = vmatpush2.bf16.msra.mxu0 %v1502
    %1566 = vmatprep.subr.bf16.mxu0 %v1501
    %1567 = vmatpush2.bf16.msra.mxu0 %v1500
    %1568 = vmatprep.subr.bf16.mxu0 %v1499
    %1569 = vmatpush2.bf16.msra.mxu0 %v1498
    %1570 = vmatprep.subr.bf16.mxu0 %v1497
    %1571 = vmatpush2.bf16.msra.mxu0 %v1496
    %1572 = vmatprep.subr.bf16.mxu0 %v1495
    %1573 = vmatpush2.bf16.msra.mxu0 %v1494
    %1574 = vmatprep.mubr.bf16.mxu0 %v1379
    %1575 = vmatmul.mubr.bf16.gmra.mxu0 %v1378
    %v1576 = vpop.f32.mrf.mxu0
    %v1577 = vadd.f32 0.0, %v1576
    %v1578 = vpop.f32.mrf.mxu0
    %v1579 = vadd.f32 0.0, %v1578
    %v1580 = vpop.f32.mrf.mxu0
    %v1581 = vadd.f32 0.0, %v1580
    %v1582 = vpop.f32.mrf.mxu0
    %v1583 = vadd.f32 0.0, %v1582
    %1584 = vdwg.mxu0
    %v1585 = vsel %vm754, %v1577, 0.0
    %v1586 = vsel %vm754, %v1579, 0.0
    %v1587 = vsel %vm755, %v1581, 0.0
    %v1588 = vsel %vm755, %v1583, 0.0
    %v1621 = vunpack.c.l.b16 %v1306
    %v1622 = vunpack.c.h.b16 %v1306
    %v1623 = vunpack.c.l.b16 %v1307
    %v1624 = vunpack.c.h.b16 %v1307
    %v1625 = vunpack.c.l.b16 %v1308
    %v1626 = vunpack.c.h.b16 %v1308
    %v1627 = vunpack.c.l.b16 %v1309
    %v1628 = vunpack.c.h.b16 %v1309
    %v1629 = vunpack.c.l.b16 %v1310
    %v1630 = vunpack.c.h.b16 %v1310
    %v1631 = vunpack.c.l.b16 %v1311
    %v1632 = vunpack.c.h.b16 %v1311
    %v1633 = vunpack.c.l.b16 %v1312
    %v1634 = vunpack.c.h.b16 %v1312
    %v1635 = vunpack.c.l.b16 %v1313
    %v1636 = vunpack.c.h.b16 %v1313
    %v1637 = vunpack.c.l.b16 %v1314
    %v1638 = vunpack.c.h.b16 %v1314
    %v1639 = vunpack.c.l.b16 %v1315
    %v1640 = vunpack.c.h.b16 %v1315
    %v1641 = vunpack.c.l.b16 %v1316
    %v1642 = vunpack.c.h.b16 %v1316
    %v1643 = vunpack.c.l.b16 %v1317
    %v1644 = vunpack.c.h.b16 %v1317
    %v1645 = vunpack.c.l.b16 %v1318
    %v1646 = vunpack.c.h.b16 %v1318
    %v1647 = vunpack.c.l.b16 %v1319
    %v1648 = vunpack.c.h.b16 %v1319
    %v1649 = vunpack.c.l.b16 %v1320
    %v1650 = vunpack.c.h.b16 %v1320
    %v1651 = vunpack.c.l.b16 %v1321
    %v1652 = vunpack.c.h.b16 %v1321
    %v1653 = vunpack.c.l.b16 %v1322
    %v1654 = vunpack.c.h.b16 %v1322
    %v1655 = vunpack.c.l.b16 %v1323
    %v1656 = vunpack.c.h.b16 %v1323
    %v1657 = vunpack.c.l.b16 %v1324
    %v1658 = vunpack.c.h.b16 %v1324
    %v1659 = vunpack.c.l.b16 %v1325
    %v1660 = vunpack.c.h.b16 %v1325
    %v1661 = vunpack.c.l.b16 %v1326
    %v1662 = vunpack.c.h.b16 %v1326
    %v1663 = vunpack.c.l.b16 %v1327
    %v1664 = vunpack.c.h.b16 %v1327
    %v1665 = vunpack.c.l.b16 %v1328
    %v1666 = vunpack.c.h.b16 %v1328
    %v1667 = vunpack.c.l.b16 %v1329
    %v1668 = vunpack.c.h.b16 %v1329
    %v1669 = vunpack.c.l.b16 %v1330
    %v1670 = vunpack.c.h.b16 %v1330
    %v1671 = vunpack.c.l.b16 %v1331
    %v1672 = vunpack.c.h.b16 %v1331
    %v1673 = vunpack.c.l.b16 %v1332
    %v1674 = vunpack.c.h.b16 %v1332
    %v1675 = vunpack.c.l.b16 %v1333
    %v1676 = vunpack.c.h.b16 %v1333
    %v1677 = vunpack.c.l.b16 %v1334
    %v1678 = vunpack.c.h.b16 %v1334
    %v1679 = vunpack.c.l.b16 %v1335
    %v1680 = vunpack.c.h.b16 %v1335
    %v1681 = vunpack.c.l.b16 %v1336
    %v1682 = vunpack.c.h.b16 %v1336
    %v1683 = vunpack.c.l.b16 %v1337
    %v1684 = vunpack.c.h.b16 %v1337
    %v1685 = vpack.c.b16 %v1623, %v1621
    %v1686 = vpack.c.b16 %v1624, %v1622
    %v1687 = vpack.c.b16 %v1627, %v1625
    %v1688 = vpack.c.b16 %v1628, %v1626
    %v1689 = vpack.c.b16 %v1631, %v1629
    %v1690 = vpack.c.b16 %v1632, %v1630
    %v1691 = vpack.c.b16 %v1635, %v1633
    %v1692 = vpack.c.b16 %v1636, %v1634
    %v1693 = vpack.c.b16 %v1639, %v1637
    %v1694 = vpack.c.b16 %v1640, %v1638
    %v1695 = vpack.c.b16 %v1643, %v1641
    %v1696 = vpack.c.b16 %v1644, %v1642
    %v1697 = vpack.c.b16 %v1647, %v1645
    %v1698 = vpack.c.b16 %v1648, %v1646
    %v1699 = vpack.c.b16 %v1651, %v1649
    %v1700 = vpack.c.b16 %v1652, %v1650
    %v1701 = vpack.c.b16 %v1655, %v1653
    %v1702 = vpack.c.b16 %v1656, %v1654
    %v1703 = vpack.c.b16 %v1659, %v1657
    %v1704 = vpack.c.b16 %v1660, %v1658
    %v1705 = vpack.c.b16 %v1663, %v1661
    %v1706 = vpack.c.b16 %v1664, %v1662
    %v1707 = vpack.c.b16 %v1667, %v1665
    %v1708 = vpack.c.b16 %v1668, %v1666
    %v1709 = vpack.c.b16 %v1671, %v1669
    %v1710 = vpack.c.b16 %v1672, %v1670
    %v1711 = vpack.c.b16 %v1675, %v1673
    %v1712 = vpack.c.b16 %v1676, %v1674
    %v1713 = vpack.c.b16 %v1679, %v1677
    %v1714 = vpack.c.b16 %v1680, %v1678
    %v1715 = vpack.c.b16 %v1683, %v1681
    %v1716 = vpack.c.b16 %v1684, %v1682
    %1749 = vmatprep.subr.bf16.mxu0 %v1700
    %1750 = vmatpush1.bf16.msra.mxu0 %v1699
    %1751 = vmatprep.subr.bf16.mxu0 %v1698
    %1752 = vmatpush1.bf16.msra.mxu0 %v1697
    %1753 = vmatprep.subr.bf16.mxu0 %v1696
    %1754 = vmatpush1.bf16.msra.mxu0 %v1695
    %1755 = vmatprep.subr.bf16.mxu0 %v1694
    %1756 = vmatpush1.bf16.msra.mxu0 %v1693
    %1757 = vmatprep.subr.bf16.mxu0 %v1692
    %1758 = vmatpush1.bf16.msra.mxu0 %v1691
    %1759 = vmatprep.subr.bf16.mxu0 %v1690
    %1760 = vmatpush1.bf16.msra.mxu0 %v1689
    %1761 = vmatprep.subr.bf16.mxu0 %v1688
    %1762 = vmatpush1.bf16.msra.mxu0 %v1687
    %1763 = vmatprep.subr.bf16.mxu0 %v1686
    %1764 = vmatpush1.bf16.msra.mxu0 %v1685
    %1765 = vmatprep.subr.bf16.mxu0 %v1716
    %1766 = vmatpush2.bf16.msra.mxu0 %v1715
    %1767 = vmatprep.subr.bf16.mxu0 %v1714
    %1768 = vmatpush2.bf16.msra.mxu0 %v1713
    %1769 = vmatprep.subr.bf16.mxu0 %v1712
    %1770 = vmatpush2.bf16.msra.mxu0 %v1711
    %1771 = vmatprep.subr.bf16.mxu0 %v1710
    %1772 = vmatpush2.bf16.msra.mxu0 %v1709
    %1773 = vmatprep.subr.bf16.mxu0 %v1708
    %1774 = vmatpush2.bf16.msra.mxu0 %v1707
    %1775 = vmatprep.subr.bf16.mxu0 %v1706
    %1776 = vmatpush2.bf16.msra.mxu0 %v1705
    %1777 = vmatprep.subr.bf16.mxu0 %v1704
    %1778 = vmatpush2.bf16.msra.mxu0 %v1703
    %1779 = vmatprep.subr.bf16.mxu0 %v1702
    %1780 = vmatpush2.bf16.msra.mxu0 %v1701
    %1781 = vmatprep.mubr.bf16.mxu0 %v1269
    %1782 = vmatmul.mubr.bf16.gmra.mxu0 %v1268
    %v1783 = vpop.f32.mrf.mxu0
    %v1784 = vadd.f32 %v1585, %v1783
    %v1785 = vpop.f32.mrf.mxu0
    %v1786 = vadd.f32 %v1586, %v1785
    %v1787 = vpop.f32.mrf.mxu0
    %v1788 = vadd.f32 %v1587, %v1787
    %v1789 = vpop.f32.mrf.mxu0
    %v1790 = vadd.f32 %v1588, %v1789
    %1791 = vdwg.mxu0
    %v1792 = vld [vmem:[#allocation3] sm:$0xee]
    %v1793 = vld [vmem:[#allocation3 + $0x8] sm:$0xff]
    %v1794 = vld [vmem:[#allocation3 + $0x10] sm:$0x11]
    %s1795 = scalar_lea.vmem [#allocation14], 512
    %v1796 = vld [vmem:[%s1795] sm:$0xff]
    %v1797 = vld [vmem:[%s1795 + $0x8] sm:$0xff]
    %v1798 = vld [vmem:[%s1795 + $0x10] sm:$0xff]
    %v1799 = vld [vmem:[%s1795 + $0x18] sm:$0xff]
    %v1800 = vld [vmem:[%s1795 + $0x20] sm:$0xff]
    %v1801 = vld [vmem:[%s1795 + $0x28] sm:$0xff]
    %v1802 = vld [vmem:[%s1795 + $0x30] sm:$0xff]
    %v1803 = vld [vmem:[%s1795 + $0x38] sm:$0xff]
    %v1804 = vld [vmem:[%s1795 + $0x40] sm:$0xff]
    %v1805 = vld [vmem:[%s1795 + $0x48] sm:$0xff]
    %v1806 = vld [vmem:[%s1795 + $0x50] sm:$0xff]
    %v1807 = vld [vmem:[%s1795 + $0x58] sm:$0xff]
    %v1808 = vld [vmem:[%s1795 + $0x60] sm:$0xff]
    %v1809 = vld [vmem:[%s1795 + $0x68] sm:$0xff]
    %v1810 = vld [vmem:[%s1795 + $0x70] sm:$0xff]
    %v1811 = vld [vmem:[%s1795 + $0x78] sm:$0xff]
    %v1812 = vld [vmem:[%s1795 + $0x80] sm:$0xff]
    %v1813 = vld [vmem:[%s1795 + $0x88] sm:$0xff]
    %v1814 = vld [vmem:[%s1795 + $0x90] sm:$0xff]
    %v1815 = vld [vmem:[%s1795 + $0x98] sm:$0xff]
    %v1816 = vld [vmem:[%s1795 + $0xa0] sm:$0xff]
    %v1817 = vld [vmem:[%s1795 + $0xa8] sm:$0xff]
    %v1818 = vld [vmem:[%s1795 + $0xb0] sm:$0xff]
    %v1819 = vld [vmem:[%s1795 + $0xb8] sm:$0xff]
    %v1820 = vld [vmem:[%s1795 + $0xc0] sm:$0xff]
    %v1821 = vld [vmem:[%s1795 + $0xc8] sm:$0xff]
    %v1822 = vld [vmem:[%s1795 + $0xd0] sm:$0xff]
    %v1823 = vld [vmem:[%s1795 + $0xd8] sm:$0xff]
    %v1824 = vld [vmem:[%s1795 + $0xe0] sm:$0xff]
    %v1825 = vld [vmem:[%s1795 + $0xe8] sm:$0xff]
    %v1826 = vld [vmem:[%s1795 + $0xf0] sm:$0xff]
    %v1827 = vld [vmem:[%s1795 + $0xf8] sm:$0xff]
    %v1831 = vunpack.c.l.b16 %v1792
    %v1832 = vunpack.c.h.b16 %v1792
    %v1833 = vunpack.c.l.b16 %v1793
    %v1834 = vunpack.c.h.b16 %v1793
    %v1835 = vunpack.c.l.b16 %v1794
    %v1836 = vunpack.c.h.b16 %v1794
    %v1837 = vpack.c.b16 %v1833, %v1831
    %v1838 = vpack.c.b16 %v1834, %v1832
    %v1839 = vpack.c.b16 %v1835, %v1835
    %v1840 = vpack.c.b16 %v1836, %v1836
    %v1841 = vrot.slane %v1837, 1
    %v1842 = vrot.slane %v1839, 1
    %v1843 = vsel %vm1012, %v1841, %v1842
    %v1844 = vrot.slane %v1838, 1
    %v1845 = vrot.slane %v1840, 1
    %v1846 = vsel %vm1012, %v1844, %v1845
    %v1881 = vunpack.c.l.b16 %v1796
    %v1882 = vunpack.c.h.b16 %v1796
    %v1883 = vunpack.c.l.b16 %v1797
    %v1884 = vunpack.c.h.b16 %v1797
    %v1885 = vunpack.c.l.b16 %v1798
    %v1886 = vunpack.c.h.b16 %v1798
    %v1887 = vunpack.c.l.b16 %v1799
    %v1888 = vunpack.c.h.b16 %v1799
    %v1889 = vunpack.c.l.b16 %v1800
    %v1890 = vunpack.c.h.b16 %v1800
    %v1891 = vunpack.c.l.b16 %v1801
    %v1892 = vunpack.c.h.b16 %v1801
    %v1893 = vunpack.c.l.b16 %v1802
    %v1894 = vunpack.c.h.b16 %v1802
    %v1895 = vunpack.c.l.b16 %v1803
    %v1896 = vunpack.c.h.b16 %v1803
    %v1897 = vunpack.c.l.b16 %v1804
    %v1898 = vunpack.c.h.b16 %v1804
    %v1899 = vunpack.c.l.b16 %v1805
    %v1900 = vunpack.c.h.b16 %v1805
    %v1901 = vunpack.c.l.b16 %v1806
    %v1902 = vunpack.c.h.b16 %v1806
    %v1903 = vunpack.c.l.b16 %v1807
    %v1904 = vunpack.c.h.b16 %v1807
    %v1905 = vunpack.c.l.b16 %v1808
    %v1906 = vunpack.c.h.b16 %v1808
    %v1907 = vunpack.c.l.b16 %v1809
    %v1908 = vunpack.c.h.b16 %v1809
    %v1909 = vunpack.c.l.b16 %v1810
    %v1910 = vunpack.c.h.b16 %v1810
    %v1911 = vunpack.c.l.b16 %v1811
    %v1912 = vunpack.c.h.b16 %v1811
    %v1913 = vunpack.c.l.b16 %v1812
    %v1914 = vunpack.c.h.b16 %v1812
    %v1915 = vunpack.c.l.b16 %v1813
    %v1916 = vunpack.c.h.b16 %v1813
    %v1917 = vunpack.c.l.b16 %v1814
    %v1918 = vunpack.c.h.b16 %v1814
    %v1919 = vunpack.c.l.b16 %v1815
    %v1920 = vunpack.c.h.b16 %v1815
    %v1921 = vunpack.c.l.b16 %v1816
    %v1922 = vunpack.c.h.b16 %v1816
    %v1923 = vunpack.c.l.b16 %v1817
    %v1924 = vunpack.c.h.b16 %v1817
    %v1925 = vunpack.c.l.b16 %v1818
    %v1926 = vunpack.c.h.b16 %v1818
    %v1927 = vunpack.c.l.b16 %v1819
    %v1928 = vunpack.c.h.b16 %v1819
    %v1929 = vunpack.c.l.b16 %v1820
    %v1930 = vunpack.c.h.b16 %v1820
    %v1931 = vunpack.c.l.b16 %v1821
    %v1932 = vunpack.c.h.b16 %v1821
    %v1933 = vunpack.c.l.b16 %v1822
    %v1934 = vunpack.c.h.b16 %v1822
    %v1935 = vunpack.c.l.b16 %v1823
    %v1936 = vunpack.c.h.b16 %v1823
    %v1937 = vunpack.c.l.b16 %v1824
    %v1938 = vunpack.c.h.b16 %v1824
    %v1939 = vunpack.c.l.b16 %v1825
    %v1940 = vunpack.c.h.b16 %v1825
    %v1941 = vunpack.c.l.b16 %v1826
    %v1942 = vunpack.c.h.b16 %v1826
    %v1943 = vunpack.c.l.b16 %v1827
    %v1944 = vunpack.c.h.b16 %v1827
    %v1945 = vpack.c.b16 %v1883, %v1881
    %v1946 = vpack.c.b16 %v1884, %v1882
    %v1947 = vpack.c.b16 %v1887, %v1885
    %v1948 = vpack.c.b16 %v1888, %v1886
    %v1949 = vpack.c.b16 %v1891, %v1889
    %v1950 = vpack.c.b16 %v1892, %v1890
    %v1951 = vpack.c.b16 %v1895, %v1893
    %v1952 = vpack.c.b16 %v1896, %v1894
    %v1953 = vpack.c.b16 %v1899, %v1897
    %v1954 = vpack.c.b16 %v1900, %v1898
    %v1955 = vpack.c.b16 %v1903, %v1901
    %v1956 = vpack.c.b16 %v1904, %v1902
    %v1957 = vpack.c.b16 %v1907, %v1905
    %v1958 = vpack.c.b16 %v1908, %v1906
    %v1959 = vpack.c.b16 %v1911, %v1909
    %v1960 = vpack.c.b16 %v1912, %v1910
    %v1961 = vpack.c.b16 %v1915, %v1913
    %v1962 = vpack.c.b16 %v1916, %v1914
    %v1963 = vpack.c.b16 %v1919, %v1917
    %v1964 = vpack.c.b16 %v1920, %v1918
    %v1965 = vpack.c.b16 %v1923, %v1921
    %v1966 = vpack.c.b16 %v1924, %v1922
    %v1967 = vpack.c.b16 %v1927, %v1925
    %v1968 = vpack.c.b16 %v1928, %v1926
    %v1969 = vpack.c.b16 %v1931, %v1929
    %v1970 = vpack.c.b16 %v1932, %v1930
    %v1971 = vpack.c.b16 %v1935, %v1933
    %v1972 = vpack.c.b16 %v1936, %v1934
    %v1973 = vpack.c.b16 %v1939, %v1937
    %v1974 = vpack.c.b16 %v1940, %v1938
    %v1975 = vpack.c.b16 %v1943, %v1941
    %v1976 = vpack.c.b16 %v1944, %v1942
    %2009 = vmatprep.subr.bf16.mxu0 %v1960
    %2010 = vmatpush1.bf16.msra.mxu0 %v1959
    %2011 = vmatprep.subr.bf16.mxu0 %v1958
    %2012 = vmatpush1.bf16.msra.mxu0 %v1957
    %2013 = vmatprep.subr.bf16.mxu0 %v1956
    %2014 = vmatpush1.bf16.msra.mxu0 %v1955
    %2015 = vmatprep.subr.bf16.mxu0 %v1954
    %2016 = vmatpush1.bf16.msra.mxu0 %v1953
    %2017 = vmatprep.subr.bf16.mxu0 %v1952
    %2018 = vmatpush1.bf16.msra.mxu0 %v1951
    %2019 = vmatprep.subr.bf16.mxu0 %v1950
    %2020 = vmatpush1.bf16.msra.mxu0 %v1949
    %2021 = vmatprep.subr.bf16.mxu0 %v1948
    %2022 = vmatpush1.bf16.msra.mxu0 %v1947
    %2023 = vmatprep.subr.bf16.mxu0 %v1946
    %2024 = vmatpush1.bf16.msra.mxu0 %v1945
    %2025 = vmatprep.subr.bf16.mxu0 %v1976
    %2026 = vmatpush2.bf16.msra.mxu0 %v1975
    %2027 = vmatprep.subr.bf16.mxu0 %v1974
    %2028 = vmatpush2.bf16.msra.mxu0 %v1973
    %2029 = vmatprep.subr.bf16.mxu0 %v1972
    %2030 = vmatpush2.bf16.msra.mxu0 %v1971
    %2031 = vmatprep.subr.bf16.mxu0 %v1970
    %2032 = vmatpush2.bf16.msra.mxu0 %v1969
    %2033 = vmatprep.subr.bf16.mxu0 %v1968
    %2034 = vmatpush2.bf16.msra.mxu0 %v1967
    %2035 = vmatprep.subr.bf16.mxu0 %v1966
    %2036 = vmatpush2.bf16.msra.mxu0 %v1965
    %2037 = vmatprep.subr.bf16.mxu0 %v1964
    %2038 = vmatpush2.bf16.msra.mxu0 %v1963
    %2039 = vmatprep.subr.bf16.mxu0 %v1962
    %2040 = vmatpush2.bf16.msra.mxu0 %v1961
    %2041 = vmatprep.mubr.bf16.mxu0 %v1846
    %2042 = vmatmul.mubr.bf16.gmra.mxu0 %v1843
    %v2043 = vpop.f32.mrf.mxu0
    %v2044 = vadd.f32 0.0, %v2043
    %v2045 = vpop.f32.mrf.mxu0
    %v2046 = vadd.f32 0.0, %v2045
    %v2047 = vpop.f32.mrf.mxu0
    %v2048 = vadd.f32 0.0, %v2047
    %v2049 = vpop.f32.mrf.mxu0
    %v2050 = vadd.f32 0.0, %v2049
    %2051 = vdwg.mxu0
    %v2052 = vsel %vm1226, %v2044, 0.0
    %v2053 = vsel %vm1226, %v2046, 0.0
    %v2054 = vsel %vm1227, %v2048, 0.0
    %v2055 = vsel %vm1227, %v2050, 0.0
    %v2056 = vadd.f32 %v1784, %v2052
    %v2057 = vadd.f32 %v1786, %v2053
    %v2058 = vadd.f32 %v1788, %v2054
    %v2059 = vadd.f32 %v1790, %v2055
    %v2060 = vld [vmem:[%s6] sm:$0x3]
    %v2062 = vlaneseq
    %v2063 = vshrl.u32 %v2062, 7
    %v2064 = vsub.s32 0, %v2063
    %v2065 = vrot.slane %v2060, %v2064
    %v2066 = vlaneseq
    %v2067 = vshrl.u32 %v2066, 7
    %v2068 = vsub.s32 1, %v2067
    %v2069 = vrot.slane %v2060, %v2068
    %v2072 = vadd.f32 %v2056, %v2065
    %v2073 = vadd.f32 %v2057, %v2069
    %v2074 = vadd.f32 %v2058, %v2065
    %v2075 = vadd.f32 %v2059, %v2069
    %vm2076 = vcmp.ge.f32.partialorder %v2072, 0.0
    %vm2077 = vcmp.ge.f32.partialorder %v2073, 0.0
    %vm2078 = vcmp.ge.f32.partialorder %v2074, 0.0
    %vm2079 = vcmp.ge.f32.partialorder %v2075, 0.0
    %v2080 = vmul.f32 %v2072, 0.2
    %v2081 = vmul.f32 %v2073, 0.2
    %v2082 = vmul.f32 %v2074, 0.2
    %v2083 = vmul.f32 %v2075, 0.2
    %v2084 = vsel %vm2076, %v2072, %v2080
    %v2085 = vsel %vm2077, %v2073, %v2081
    %v2086 = vsel %vm2078, %v2074, %v2082
    %v2087 = vsel %vm2079, %v2075, %v2083
    %v2088 = vmul.f32 %v2084, 1.4142135
    %v2089 = vmul.f32 %v2085, 1.4142135
    %v2090 = vmul.f32 %v2086, 1.4142135
    %v2091 = vmul.f32 %v2087, 1.4142135
    %v2092 = vpack.c.bf16 %v2090, %v2088
    %v2093 = vpack.c.bf16 %v2091, %v2089
    %v2096 = vunpack.c.l.b16 %v2092
    %v2097 = vunpack.c.l.b16 %v2093
    %v2098 = vunpack.c.h.b16 %v2092
    %v2099 = vunpack.c.h.b16 %v2093
    %v2100 = vpack.c.b16 %v2097, %v2096
    %v2101 = vpack.c.b16 %v2099, %v2098
    %v2103 = vshrl.u32 %v2100, 16
    %v2105 = vrot.slane %v2103, 7
    %v2106 = vshll.u32 %v2100, 16
    %v2108 = vor.u32 %v2105, %v2106
    %v2109 = vrot.slane %v2105, 4
    %v2111 = vshrl.u32 %v2101, 16
    %v2113 = vrot.slane %v2111, 7
    %v2114 = vshll.u32 %v2101, 16
    %v2116 = vor.u32 %v2113, %v2114
    %v2117 = vsel %vm431, %v2109, %v2116
    %v2118 = vrot.slane %v2113, 4
    %v2122 = vld [vmem:[#allocation4] sm:$0xff]
    %v2123 = vsel %vm458, %v2108, %v2122
    %2124 = vst [vmem:[#allocation4] sm:$0xff] %v2123
    %2125 = vst [vmem:[#allocation4 + $0x8] sm:$0xff] %v2117
    %v2126 = vld [vmem:[#allocation4 + $0x10] sm:$0x11]
    %v2127 = vsel %vm468, %v2118, %v2126
    %2128 = vst [vmem:[#allocation4 + $0x10] sm:$0x11] %v2127
    %s2129 = scalar_lea.vmem [#allocation15], 128
    %v2130 = vld [vmem:[%s2129] sm:$0xf]
    %v2131 = vld [vmem:[%s2129 + $0x4] sm:$0xf]
    %v2132 = vld [vmem:[%s2129 + $0x8] sm:$0xf]
    %v2133 = vld [vmem:[%s2129 + $0xc] sm:$0xf]
    %v2134 = vld [vmem:[%s2129 + $0x10] sm:$0xf]
    %v2135 = vld [vmem:[%s2129 + $0x14] sm:$0xf]
    %v2136 = vld [vmem:[%s2129 + $0x18] sm:$0xf]
    %v2137 = vld [vmem:[%s2129 + $0x1c] sm:$0xf]
    %v2138 = vld [vmem:[%s2129 + $0x20] sm:$0xf]
    %v2139 = vld [vmem:[%s2129 + $0x24] sm:$0xf]
    %v2140 = vld [vmem:[%s2129 + $0x28] sm:$0xf]
    %v2141 = vld [vmem:[%s2129 + $0x2c] sm:$0xf]
    %v2142 = vld [vmem:[%s2129 + $0x30] sm:$0xf]
    %v2143 = vld [vmem:[%s2129 + $0x34] sm:$0xf]
    %v2144 = vld [vmem:[%s2129 + $0x38] sm:$0xf]
    %v2145 = vld [vmem:[%s2129 + $0x3c] sm:$0xf]
    %v2146 = vld [vmem:[%s2129 + $0x40] sm:$0xf]
    %v2147 = vld [vmem:[%s2129 + $0x44] sm:$0xf]
    %v2148 = vld [vmem:[%s2129 + $0x48] sm:$0xf]
    %v2149 = vld [vmem:[%s2129 + $0x4c] sm:$0xf]
    %v2150 = vld [vmem:[%s2129 + $0x50] sm:$0xf]
    %v2151 = vld [vmem:[%s2129 + $0x54] sm:$0xf]
    %v2152 = vld [vmem:[%s2129 + $0x58] sm:$0xf]
    %v2153 = vld [vmem:[%s2129 + $0x5c] sm:$0xf]
    %v2154 = vld [vmem:[%s2129 + $0x60] sm:$0xf]
    %v2155 = vld [vmem:[%s2129 + $0x64] sm:$0xf]
    %v2156 = vld [vmem:[%s2129 + $0x68] sm:$0xf]
    %v2157 = vld [vmem:[%s2129 + $0x6c] sm:$0xf]
    %v2158 = vld [vmem:[%s2129 + $0x70] sm:$0xf]
    %v2159 = vld [vmem:[%s2129 + $0x74] sm:$0xf]
    %v2160 = vld [vmem:[%s2129 + $0x78] sm:$0xf]
    %v2161 = vld [vmem:[%s2129 + $0x7c] sm:$0xf]
    %v2162 = vld [vmem:[#allocation4] sm:$0xff]
    %v2163 = vld [vmem:[#allocation4 + $0x8] sm:$0xff]
    %v2164 = vld [vmem:[#allocation15] sm:$0xf]
    %v2165 = vld [vmem:[#allocation15 + $0x4] sm:$0xf]
    %v2166 = vld [vmem:[#allocation15 + $0x8] sm:$0xf]
    %v2167 = vld [vmem:[#allocation15 + $0xc] sm:$0xf]
    %v2168 = vld [vmem:[#allocation15 + $0x10] sm:$0xf]
    %v2169 = vld [vmem:[#allocation15 + $0x14] sm:$0xf]
    %v2170 = vld [vmem:[#allocation15 + $0x18] sm:$0xf]
    %v2171 = vld [vmem:[#allocation15 + $0x1c] sm:$0xf]
    %v2172 = vld [vmem:[#allocation15 + $0x20] sm:$0xf]
    %v2173 = vld [vmem:[#allocation15 + $0x24] sm:$0xf]
    %v2174 = vld [vmem:[#allocation15 + $0x28] sm:$0xf]
    %v2175 = vld [vmem:[#allocation15 + $0x2c] sm:$0xf]
    %v2176 = vld [vmem:[#allocation15 + $0x30] sm:$0xf]
    %v2177 = vld [vmem:[#allocation15 + $0x34] sm:$0xf]
    %v2178 = vld [vmem:[#allocation15 + $0x38] sm:$0xf]
    %v2179 = vld [vmem:[#allocation15 + $0x3c] sm:$0xf]
    %v2180 = vld [vmem:[#allocation15 + $0x40] sm:$0xf]
    %v2181 = vld [vmem:[#allocation15 + $0x44] sm:$0xf]
    %v2182 = vld [vmem:[#allocation15 + $0x48] sm:$0xf]
    %v2183 = vld [vmem:[#allocation15 + $0x4c] sm:$0xf]
    %v2184 = vld [vmem:[#allocation15 + $0x50] sm:$0xf]
    %v2185 = vld [vmem:[#allocation15 + $0x54] sm:$0xf]
    %v2186 = vld [vmem:[#allocation15 + $0x58] sm:$0xf]
    %v2187 = vld [vmem:[#allocation15 + $0x5c] sm:$0xf]
    %v2188 = vld [vmem:[#allocation15 + $0x60] sm:$0xf]
    %v2189 = vld [vmem:[#allocation15 + $0x64] sm:$0xf]
    %v2190 = vld [vmem:[#allocation15 + $0x68] sm:$0xf]
    %v2191 = vld [vmem:[#allocation15 + $0x6c] sm:$0xf]
    %v2192 = vld [vmem:[#allocation15 + $0x70] sm:$0xf]
    %v2193 = vld [vmem:[#allocation15 + $0x74] sm:$0xf]
    %v2194 = vld [vmem:[#allocation15 + $0x78] sm:$0xf]
    %v2195 = vld [vmem:[#allocation15 + $0x7c] sm:$0xf]
    %v2198 = vunpack.c.l.b16 %v2162
    %v2199 = vunpack.c.h.b16 %v2162
    %v2200 = vunpack.c.l.b16 %v2163
    %v2201 = vunpack.c.h.b16 %v2163
    %v2202 = vpack.c.b16 %v2200, %v2198
    %v2203 = vpack.c.b16 %v2201, %v2199
    %v2238 = vunpack.c.l.b16 %v2164
    %v2239 = vunpack.c.l.b16 %v2165
    %v2240 = vunpack.c.l.b16 %v2166
    %v2241 = vunpack.c.l.b16 %v2167
    %v2242 = vunpack.c.l.b16 %v2168
    %v2243 = vunpack.c.l.b16 %v2169
    %v2244 = vunpack.c.l.b16 %v2170
    %v2245 = vunpack.c.l.b16 %v2171
    %v2246 = vunpack.c.l.b16 %v2172
    %v2247 = vunpack.c.l.b16 %v2173
    %v2248 = vunpack.c.l.b16 %v2174
    %v2249 = vunpack.c.l.b16 %v2175
    %v2250 = vunpack.c.l.b16 %v2176
    %v2251 = vunpack.c.l.b16 %v2177
    %v2252 = vunpack.c.l.b16 %v2178
    %v2253 = vunpack.c.l.b16 %v2179
    %v2254 = vunpack.c.l.b16 %v2180
    %v2255 = vunpack.c.l.b16 %v2181
    %v2256 = vunpack.c.l.b16 %v2182
    %v2257 = vunpack.c.l.b16 %v2183
    %v2258 = vunpack.c.l.b16 %v2184
    %v2259 = vunpack.c.l.b16 %v2185
    %v2260 = vunpack.c.l.b16 %v2186
    %v2261 = vunpack.c.l.b16 %v2187
    %v2262 = vunpack.c.l.b16 %v2188
    %v2263 = vunpack.c.l.b16 %v2189
    %v2264 = vunpack.c.l.b16 %v2190
    %v2265 = vunpack.c.l.b16 %v2191
    %v2266 = vunpack.c.l.b16 %v2192
    %v2267 = vunpack.c.l.b16 %v2193
    %v2268 = vunpack.c.l.b16 %v2194
    %v2269 = vunpack.c.l.b16 %v2195
    %v2270 = vpack.c.b16 %v2239, %v2238
    %v2271 = vpack.c.b16 %v2241, %v2240
    %v2272 = vpack.c.b16 %v2243, %v2242
    %v2273 = vpack.c.b16 %v2245, %v2244
    %v2274 = vpack.c.b16 %v2247, %v2246
    %v2275 = vpack.c.b16 %v2249, %v2248
    %v2276 = vpack.c.b16 %v2251, %v2250
    %v2277 = vpack.c.b16 %v2253, %v2252
    %v2278 = vpack.c.b16 %v2255, %v2254
    %v2279 = vpack.c.b16 %v2257, %v2256
    %v2280 = vpack.c.b16 %v2259, %v2258
    %v2281 = vpack.c.b16 %v2261, %v2260
    %v2282 = vpack.c.b16 %v2263, %v2262
    %v2283 = vpack.c.b16 %v2265, %v2264
    %v2284 = vpack.c.b16 %v2267, %v2266
    %v2285 = vpack.c.b16 %v2269, %v2268
    %2302 = vmatprep.subr.bf16.mxu0 0
    %2303 = vmatpush1.bf16.msra.mxu0 %v2277
    %2304 = vmatprep.subr.bf16.mxu0 0
    %2305 = vmatpush1.bf16.msra.mxu0 %v2276
    %2306 = vmatprep.subr.bf16.mxu0 0
    %2307 = vmatpush1.bf16.msra.mxu0 %v2275
    %2308 = vmatprep.subr.bf16.mxu0 0
    %2309 = vmatpush1.bf16.msra.mxu0 %v2274
    %2310 = vmatprep.subr.bf16.mxu0 0
    %2311 = vmatpush1.bf16.msra.mxu0 %v2273
    %2312 = vmatprep.subr.bf16.mxu0 0
    %2313 = vmatpush1.bf16.msra.mxu0 %v2272
    %2314 = vmatprep.subr.bf16.mxu0 0
    %2315 = vmatpush1.bf16.msra.mxu0 %v2271
    %2316 = vmatprep.subr.bf16.mxu0 0
    %2317 = vmatpush1.bf16.msra.mxu0 %v2270
    %2318 = vmatprep.subr.bf16.mxu0 0
    %2319 = vmatpush2.bf16.msra.mxu0 %v2285
    %2320 = vmatprep.subr.bf16.mxu0 0
    %2321 = vmatpush2.bf16.msra.mxu0 %v2284
    %2322 = vmatprep.subr.bf16.mxu0 0
    %2323 = vmatpush2.bf16.msra.mxu0 %v2283
    %2324 = vmatprep.subr.bf16.mxu0 0
    %2325 = vmatpush2.bf16.msra.mxu0 %v2282
    %2326 = vmatprep.subr.bf16.mxu0 0
    %2327 = vmatpush2.bf16.msra.mxu0 %v2281
    %2328 = vmatprep.subr.bf16.mxu0 0
    %2329 = vmatpush2.bf16.msra.mxu0 %v2280
    %2330 = vmatprep.subr.bf16.mxu0 0
    %2331 = vmatpush2.bf16.msra.mxu0 %v2279
    %2332 = vmatprep.subr.bf16.mxu0 0
    %2333 = vmatpush2.bf16.msra.mxu0 %v2278
    %2334 = vmatprep.mubr.bf16.mxu0 %v2203
    %2335 = vmatmul.mubr.bf16.gmra.mxu0 %v2202
    %v2336 = vpop.f32.mrf.mxu0
    %v2337 = vadd.f32 0.0, %v2336
    %v2338 = vpop.f32.mrf.mxu0
    %v2339 = vpop.f32.mrf.mxu0
    %v2340 = vadd.f32 0.0, %v2339
    %v2341 = vpop.f32.mrf.mxu0
    %2342 = vdwg.mxu0
    %v2343 = vsel %vm754, %v2337, 0.0
    %v2344 = vsel %vm755, %v2340, 0.0
    %v2377 = vunpack.c.l.b16 %v2130
    %v2378 = vunpack.c.l.b16 %v2131
    %v2379 = vunpack.c.l.b16 %v2132
    %v2380 = vunpack.c.l.b16 %v2133
    %v2381 = vunpack.c.l.b16 %v2134
    %v2382 = vunpack.c.l.b16 %v2135
    %v2383 = vunpack.c.l.b16 %v2136
    %v2384 = vunpack.c.l.b16 %v2137
    %v2385 = vunpack.c.l.b16 %v2138
    %v2386 = vunpack.c.l.b16 %v2139
    %v2387 = vunpack.c.l.b16 %v2140
    %v2388 = vunpack.c.l.b16 %v2141
    %v2389 = vunpack.c.l.b16 %v2142
    %v2390 = vunpack.c.l.b16 %v2143
    %v2391 = vunpack.c.l.b16 %v2144
    %v2392 = vunpack.c.l.b16 %v2145
    %v2393 = vunpack.c.l.b16 %v2146
    %v2394 = vunpack.c.l.b16 %v2147
    %v2395 = vunpack.c.l.b16 %v2148
    %v2396 = vunpack.c.l.b16 %v2149
    %v2397 = vunpack.c.l.b16 %v2150
    %v2398 = vunpack.c.l.b16 %v2151
    %v2399 = vunpack.c.l.b16 %v2152
    %v2400 = vunpack.c.l.b16 %v2153
    %v2401 = vunpack.c.l.b16 %v2154
    %v2402 = vunpack.c.l.b16 %v2155
    %v2403 = vunpack.c.l.b16 %v2156
    %v2404 = vunpack.c.l.b16 %v2157
    %v2405 = vunpack.c.l.b16 %v2158
    %v2406 = vunpack.c.l.b16 %v2159
    %v2407 = vunpack.c.l.b16 %v2160
    %v2408 = vunpack.c.l.b16 %v2161
    %v2409 = vpack.c.b16 %v2378, %v2377
    %v2410 = vpack.c.b16 %v2380, %v2379
    %v2411 = vpack.c.b16 %v2382, %v2381
    %v2412 = vpack.c.b16 %v2384, %v2383
    %v2413 = vpack.c.b16 %v2386, %v2385
    %v2414 = vpack.c.b16 %v2388, %v2387
    %v2415 = vpack.c.b16 %v2390, %v2389
    %v2416 = vpack.c.b16 %v2392, %v2391
    %v2417 = vpack.c.b16 %v2394, %v2393
    %v2418 = vpack.c.b16 %v2396, %v2395
    %v2419 = vpack.c.b16 %v2398, %v2397
    %v2420 = vpack.c.b16 %v2400, %v2399
    %v2421 = vpack.c.b16 %v2402, %v2401
    %v2422 = vpack.c.b16 %v2404, %v2403
    %v2423 = vpack.c.b16 %v2406, %v2405
    %v2424 = vpack.c.b16 %v2408, %v2407
    %2441 = vmatprep.subr.bf16.mxu0 0
    %2442 = vmatpush1.bf16.msra.mxu0 %v2416
    %2443 = vmatprep.subr.bf16.mxu0 0
    %2444 = vmatpush1.bf16.msra.mxu0 %v2415
    %2445 = vmatprep.subr.bf16.mxu0 0
    %2446 = vmatpush1.bf16.msra.mxu0 %v2414
    %2447 = vmatprep.subr.bf16.mxu0 0
    %2448 = vmatpush1.bf16.msra.mxu0 %v2413
    %2449 = vmatprep.subr.bf16.mxu0 0
    %2450 = vmatpush1.bf16.msra.mxu0 %v2412
    %2451 = vmatprep.subr.bf16.mxu0 0
    %2452 = vmatpush1.bf16.msra.mxu0 %v2411
    %2453 = vmatprep.subr.bf16.mxu0 0
    %2454 = vmatpush1.bf16.msra.mxu0 %v2410
    %2455 = vmatprep.subr.bf16.mxu0 0
    %2456 = vmatpush1.bf16.msra.mxu0 %v2409
    %2457 = vmatprep.subr.bf16.mxu0 0
    %2458 = vmatpush2.bf16.msra.mxu0 %v2424
    %2459 = vmatprep.subr.bf16.mxu0 0
    %2460 = vmatpush2.bf16.msra.mxu0 %v2423
    %2461 = vmatprep.subr.bf16.mxu0 0
    %2462 = vmatpush2.bf16.msra.mxu0 %v2422
    %2463 = vmatprep.subr.bf16.mxu0 0
    %2464 = vmatpush2.bf16.msra.mxu0 %v2421
    %2465 = vmatprep.subr.bf16.mxu0 0
    %2466 = vmatpush2.bf16.msra.mxu0 %v2420
    %2467 = vmatprep.subr.bf16.mxu0 0
    %2468 = vmatpush2.bf16.msra.mxu0 %v2419
    %2469 = vmatprep.subr.bf16.mxu0 0
    %2470 = vmatpush2.bf16.msra.mxu0 %v2418
    %2471 = vmatprep.subr.bf16.mxu0 0
    %2472 = vmatpush2.bf16.msra.mxu0 %v2417
    %2473 = vmatprep.mubr.bf16.mxu0 %v2093
    %2474 = vmatmul.mubr.bf16.gmra.mxu0 %v2092
    %v2475 = vpop.f32.mrf.mxu0
    %v2476 = vadd.f32 %v2343, %v2475
    %v2477 = vpop.f32.mrf.mxu0
    %v2478 = vpop.f32.mrf.mxu0
    %v2479 = vadd.f32 %v2344, %v2478
    %v2480 = vpop.f32.mrf.mxu0
    %2481 = vdwg.mxu0
    %v2482 = vld [vmem:[#allocation4] sm:$0xee]
    %v2483 = vld [vmem:[#allocation4 + $0x8] sm:$0xff]
    %v2484 = vld [vmem:[#allocation4 + $0x10] sm:$0x11]
    %s2485 = scalar_lea.vmem [#allocation15], 256
    %v2486 = vld [vmem:[%s2485] sm:$0xf]
    %v2487 = vld [vmem:[%s2485 + $0x4] sm:$0xf]
    %v2488 = vld [vmem:[%s2485 + $0x8] sm:$0xf]
    %v2489 = vld [vmem:[%s2485 + $0xc] sm:$0xf]
    %v2490 = vld [vmem:[%s2485 + $0x10] sm:$0xf]
    %v2491 = vld [vmem:[%s2485 + $0x14] sm:$0xf]
    %v2492 = vld [vmem:[%s2485 + $0x18] sm:$0xf]
    %v2493 = vld [vmem:[%s2485 + $0x1c] sm:$0xf]
    %v2494 = vld [vmem:[%s2485 + $0x20] sm:$0xf]
    %v2495 = vld [vmem:[%s2485 + $0x24] sm:$0xf]
    %v2496 = vld [vmem:[%s2485 + $0x28] sm:$0xf]
    %v2497 = vld [vmem:[%s2485 + $0x2c] sm:$0xf]
    %v2498 = vld [vmem:[%s2485 + $0x30] sm:$0xf]
    %v2499 = vld [vmem:[%s2485 + $0x34] sm:$0xf]
    %v2500 = vld [vmem:[%s2485 + $0x38] sm:$0xf]
    %v2501 = vld [vmem:[%s2485 + $0x3c] sm:$0xf]
    %v2502 = vld [vmem:[%s2485 + $0x40] sm:$0xf]
    %v2503 = vld [vmem:[%s2485 + $0x44] sm:$0xf]
    %v2504 = vld [vmem:[%s2485 + $0x48] sm:$0xf]
    %v2505 = vld [vmem:[%s2485 + $0x4c] sm:$0xf]
    %v2506 = vld [vmem:[%s2485 + $0x50] sm:$0xf]
    %v2507 = vld [vmem:[%s2485 + $0x54] sm:$0xf]
    %v2508 = vld [vmem:[%s2485 + $0x58] sm:$0xf]
    %v2509 = vld [vmem:[%s2485 + $0x5c] sm:$0xf]
    %v2510 = vld [vmem:[%s2485 + $0x60] sm:$0xf]
    %v2511 = vld [vmem:[%s2485 + $0x64] sm:$0xf]
    %v2512 = vld [vmem:[%s2485 + $0x68] sm:$0xf]
    %v2513 = vld [vmem:[%s2485 + $0x6c] sm:$0xf]
    %v2514 = vld [vmem:[%s2485 + $0x70] sm:$0xf]
    %v2515 = vld [vmem:[%s2485 + $0x74] sm:$0xf]
    %v2516 = vld [vmem:[%s2485 + $0x78] sm:$0xf]
    %v2517 = vld [vmem:[%s2485 + $0x7c] sm:$0xf]
    %v2521 = vunpack.c.l.b16 %v2482
    %v2522 = vunpack.c.h.b16 %v2482
    %v2523 = vunpack.c.l.b16 %v2483
    %v2524 = vunpack.c.h.b16 %v2483
    %v2525 = vunpack.c.l.b16 %v2484
    %v2526 = vunpack.c.h.b16 %v2484
    %v2527 = vpack.c.b16 %v2523, %v2521
    %v2528 = vpack.c.b16 %v2524, %v2522
    %v2529 = vpack.c.b16 %v2525, %v2525
    %v2530 = vpack.c.b16 %v2526, %v2526
    %v2531 = vrot.slane %v2527, 1
    %v2532 = vrot.slane %v2529, 1
    %v2533 = vsel %vm1012, %v2531, %v2532
    %v2534 = vrot.slane %v2528, 1
    %v2535 = vrot.slane %v2530, 1
    %v2536 = vsel %vm1012, %v2534, %v2535
    %v2571 = vunpack.c.l.b16 %v2486
    %v2572 = vunpack.c.l.b16 %v2487
    %v2573 = vunpack.c.l.b16 %v2488
    %v2574 = vunpack.c.l.b16 %v2489
    %v2575 = vunpack.c.l.b16 %v2490
    %v2576 = vunpack.c.l.b16 %v2491
    %v2577 = vunpack.c.l.b16 %v2492
    %v2578 = vunpack.c.l.b16 %v2493
    %v2579 = vunpack.c.l.b16 %v2494
    %v2580 = vunpack.c.l.b16 %v2495
    %v2581 = vunpack.c.l.b16 %v2496
    %v2582 = vunpack.c.l.b16 %v2497
    %v2583 = vunpack.c.l.b16 %v2498
    %v2584 = vunpack.c.l.b16 %v2499
    %v2585 = vunpack.c.l.b16 %v2500
    %v2586 = vunpack.c.l.b16 %v2501
    %v2587 = vunpack.c.l.b16 %v2502
    %v2588 = vunpack.c.l.b16 %v2503
    %v2589 = vunpack.c.l.b16 %v2504
    %v2590 = vunpack.c.l.b16 %v2505
    %v2591 = vunpack.c.l.b16 %v2506
    %v2592 = vunpack.c.l.b16 %v2507
    %v2593 = vunpack.c.l.b16 %v2508
    %v2594 = vunpack.c.l.b16 %v2509
    %v2595 = vunpack.c.l.b16 %v2510
    %v2596 = vunpack.c.l.b16 %v2511
    %v2597 = vunpack.c.l.b16 %v2512
    %v2598 = vunpack.c.l.b16 %v2513
    %v2599 = vunpack.c.l.b16 %v2514
    %v2600 = vunpack.c.l.b16 %v2515
    %v2601 = vunpack.c.l.b16 %v2516
    %v2602 = vunpack.c.l.b16 %v2517
    %v2603 = vpack.c.b16 %v2572, %v2571
    %v2604 = vpack.c.b16 %v2574, %v2573
    %v2605 = vpack.c.b16 %v2576, %v2575
    %v2606 = vpack.c.b16 %v2578, %v2577
    %v2607 = vpack.c.b16 %v2580, %v2579
    %v2608 = vpack.c.b16 %v2582, %v2581
    %v2609 = vpack.c.b16 %v2584, %v2583
    %v2610 = vpack.c.b16 %v2586, %v2585
    %v2611 = vpack.c.b16 %v2588, %v2587
    %v2612 = vpack.c.b16 %v2590, %v2589
    %v2613 = vpack.c.b16 %v2592, %v2591
    %v2614 = vpack.c.b16 %v2594, %v2593
    %v2615 = vpack.c.b16 %v2596, %v2595
    %v2616 = vpack.c.b16 %v2598, %v2597
    %v2617 = vpack.c.b16 %v2600, %v2599
    %v2618 = vpack.c.b16 %v2602, %v2601
    %2635 = vmatprep.subr.bf16.mxu0 0
    %2636 = vmatpush1.bf16.msra.mxu0 %v2610
    %2637 = vmatprep.subr.bf16.mxu0 0
    %2638 = vmatpush1.bf16.msra.mxu0 %v2609
    %2639 = vmatprep.subr.bf16.mxu0 0
    %2640 = vmatpush1.bf16.msra.mxu0 %v2608
    %2641 = vmatprep.subr.bf16.mxu0 0
    %2642 = vmatpush1.bf16.msra.mxu0 %v2607
    %2643 = vmatprep.subr.bf16.mxu0 0
    %2644 = vmatpush1.bf16.msra.mxu0 %v2606
    %2645 = vmatprep.subr.bf16.mxu0 0
    %2646 = vmatpush1.bf16.msra.mxu0 %v2605
    %2647 = vmatprep.subr.bf16.mxu0 0
    %2648 = vmatpush1.bf16.msra.mxu0 %v2604
    %2649 = vmatprep.subr.bf16.mxu0 0
    %2650 = vmatpush1.bf16.msra.mxu0 %v2603
    %2651 = vmatprep.subr.bf16.mxu0 0
    %2652 = vmatpush2.bf16.msra.mxu0 %v2618
    %2653 = vmatprep.subr.bf16.mxu0 0
    %2654 = vmatpush2.bf16.msra.mxu0 %v2617
    %2655 = vmatprep.subr.bf16.mxu0 0
    %2656 = vmatpush2.bf16.msra.mxu0 %v2616
    %2657 = vmatprep.subr.bf16.mxu0 0
    %2658 = vmatpush2.bf16.msra.mxu0 %v2615
    %2659 = vmatprep.subr.bf16.mxu0 0
    %2660 = vmatpush2.bf16.msra.mxu0 %v2614
    %2661 = vmatprep.subr.bf16.mxu0 0
    %2662 = vmatpush2.bf16.msra.mxu0 %v2613
    %2663 = vmatprep.subr.bf16.mxu0 0
    %2664 = vmatpush2.bf16.msra.mxu0 %v2612
    %2665 = vmatprep.subr.bf16.mxu0 0
    %2666 = vmatpush2.bf16.msra.mxu0 %v2611
    %2667 = vmatprep.mubr.bf16.mxu0 %v2536
    %2668 = vmatmul.mubr.bf16.gmra.mxu0 %v2533
    %v2669 = vpop.f32.mrf.mxu0
    %v2670 = vadd.f32 0.0, %v2669
    %v2671 = vpop.f32.mrf.mxu0
    %v2672 = vpop.f32.mrf.mxu0
    %v2673 = vadd.f32 0.0, %v2672
    %v2674 = vpop.f32.mrf.mxu0
    %2675 = vdwg.mxu0
    %v2676 = vsel %vm1226, %v2670, 0.0
    %v2677 = vsel %vm1227, %v2673, 0.0
    %v2678 = vadd.f32 %v2476, %v2676
    %v2679 = vadd.f32 %v2479, %v2677
    %v2680 = vld [vmem:[%s8] sm:$0x1]
    %v2682 = vlaneseq
    %v2683 = vshrl.u32 %v2682, 7
    %v2684 = vsub.s32 0, %v2683
    %v2685 = vrot.slane %v2680, %v2684
    %v2687 = vadd.f32 %v2678, %v2685
    %v2688 = vadd.f32 %v2679, %v2685
    %vm2689 = vcmp.ge.f32.partialorder %v2687, 0.0
    %vm2690 = vcmp.ge.f32.partialorder %v2688, 0.0
    %v2691 = vmul.f32 %v2687, 0.2
    %v2692 = vmul.f32 %v2688, 0.2
    %v2693 = vsel %vm2689, %v2687, %v2691
    %v2694 = vsel %vm2690, %v2688, %v2692
    %v2695 = vmul.f32 %v2693, 1.4142135
    %v2696 = vmul.f32 %v2694, 1.4142135
    %v2697 = vpack.c.bf16 %v2696, %v2695
    %v2699 = vunpack.c.l.b16 %v2697
    %v2700 = vunpack.c.h.b16 %v2697
    %v2701 = vpack.c.b16 %v2699, %v2699
    %v2702 = vpack.c.b16 %v2700, %v2700
    %v2704 = vshrl.u32 %v2701, 16
    %v2706 = vrot.slane %v2704, 7
    %v2707 = vshll.u32 %v2701, 16
    %v2709 = vor.u32 %v2706, %v2707
    %v2710 = vrot.slane %v2706, 4
    %v2712 = vshrl.u32 %v2702, 16
    %v2714 = vrot.slane %v2712, 7
    %v2715 = vshll.u32 %v2702, 16
    %v2717 = vor.u32 %v2714, %v2715
    %v2718 = vsel %vm431, %v2710, %v2717
    %v2719 = vrot.slane %v2714, 4
    %v2723 = vld [vmem:[#allocation5] sm:$0xf]
    %v2724 = vsel %vm454, %v2709, %v2723
    %2725 = vst [vmem:[#allocation5] sm:$0xf] %v2724
    %2726 = vst [vmem:[#allocation5 + $0x4] sm:$0xf] %v2718
    %v2727 = vld [vmem:[#allocation5 + $0x8] sm:$0x1]
    %v2728 = vsel %vm464, %v2719, %v2727
    %2729 = vst [vmem:[#allocation5 + $0x8] sm:$0x1] %v2728
    %s2730 = scalar_lea.vmem [#allocation17], 256
    %v2731 = vld [vmem:[%s2730] sm:$0xff]
    %v2732 = vld [vmem:[%s2730 + $0x8] sm:$0xff]
    %v2733 = vld [vmem:[%s2730 + $0x10] sm:$0xff]
    %v2734 = vld [vmem:[%s2730 + $0x18] sm:$0xff]
    %v2735 = vld [vmem:[%s2730 + $0x20] sm:$0xff]
    %v2736 = vld [vmem:[%s2730 + $0x28] sm:$0xff]
    %v2737 = vld [vmem:[%s2730 + $0x30] sm:$0xff]
    %v2738 = vld [vmem:[%s2730 + $0x38] sm:$0xff]
    %v2739 = vld [vmem:[%s2730 + $0x40] sm:$0xff]
    %v2740 = vld [vmem:[%s2730 + $0x48] sm:$0xff]
    %v2741 = vld [vmem:[%s2730 + $0x50] sm:$0xff]
    %v2742 = vld [vmem:[%s2730 + $0x58] sm:$0xff]
    %v2743 = vld [vmem:[%s2730 + $0x60] sm:$0xff]
    %v2744 = vld [vmem:[%s2730 + $0x68] sm:$0xff]
    %v2745 = vld [vmem:[%s2730 + $0x70] sm:$0xff]
    %v2746 = vld [vmem:[%s2730 + $0x78] sm:$0xff]
    %v2747 = vld [vmem:[%s2730 + $0x80] sm:$0xff]
    %v2748 = vld [vmem:[%s2730 + $0x88] sm:$0xff]
    %v2749 = vld [vmem:[%s2730 + $0x90] sm:$0xff]
    %v2750 = vld [vmem:[%s2730 + $0x98] sm:$0xff]
    %v2751 = vld [vmem:[%s2730 + $0xa0] sm:$0xff]
    %v2752 = vld [vmem:[%s2730 + $0xa8] sm:$0xff]
    %v2753 = vld [vmem:[%s2730 + $0xb0] sm:$0xff]
    %v2754 = vld [vmem:[%s2730 + $0xb8] sm:$0xff]
    %v2755 = vld [vmem:[%s2730 + $0xc0] sm:$0xff]
    %v2756 = vld [vmem:[%s2730 + $0xc8] sm:$0xff]
    %v2757 = vld [vmem:[%s2730 + $0xd0] sm:$0xff]
    %v2758 = vld [vmem:[%s2730 + $0xd8] sm:$0xff]
    %v2759 = vld [vmem:[%s2730 + $0xe0] sm:$0xff]
    %v2760 = vld [vmem:[%s2730 + $0xe8] sm:$0xff]
    %v2761 = vld [vmem:[%s2730 + $0xf0] sm:$0xff]
    %v2762 = vld [vmem:[%s2730 + $0xf8] sm:$0xff]
    %v2763 = vld [vmem:[#allocation5] sm:$0xf]
    %v2764 = vld [vmem:[#allocation5 + $0x4] sm:$0xf]
    %v2765 = vld [vmem:[#allocation17] sm:$0xff]
    %v2766 = vld [vmem:[#allocation17 + $0x8] sm:$0xff]
    %v2767 = vld [vmem:[#allocation17 + $0x10] sm:$0xff]
    %v2768 = vld [vmem:[#allocation17 + $0x18] sm:$0xff]
    %v2769 = vld [vmem:[#allocation17 + $0x20] sm:$0xff]
    %v2770 = vld [vmem:[#allocation17 + $0x28] sm:$0xff]
    %v2771 = vld [vmem:[#allocation17 + $0x30] sm:$0xff]
    %v2772 = vld [vmem:[#allocation17 + $0x38] sm:$0xff]
    %v2773 = vld [vmem:[#allocation17 + $0x40] sm:$0xff]
    %v2774 = vld [vmem:[#allocation17 + $0x48] sm:$0xff]
    %v2775 = vld [vmem:[#allocation17 + $0x50] sm:$0xff]
    %v2776 = vld [vmem:[#allocation17 + $0x58] sm:$0xff]
    %v2777 = vld [vmem:[#allocation17 + $0x60] sm:$0xff]
    %v2778 = vld [vmem:[#allocation17 + $0x68] sm:$0xff]
    %v2779 = vld [vmem:[#allocation17 + $0x70] sm:$0xff]
    %v2780 = vld [vmem:[#allocation17 + $0x78] sm:$0xff]
    %v2781 = vld [vmem:[#allocation17 + $0x80] sm:$0xff]
    %v2782 = vld [vmem:[#allocation17 + $0x88] sm:$0xff]
    %v2783 = vld [vmem:[#allocation17 + $0x90] sm:$0xff]
    %v2784 = vld [vmem:[#allocation17 + $0x98] sm:$0xff]
    %v2785 = vld [vmem:[#allocation17 + $0xa0] sm:$0xff]
    %v2786 = vld [vmem:[#allocation17 + $0xa8] sm:$0xff]
    %v2787 = vld [vmem:[#allocation17 + $0xb0] sm:$0xff]
    %v2788 = vld [vmem:[#allocation17 + $0xb8] sm:$0xff]
    %v2789 = vld [vmem:[#allocation17 + $0xc0] sm:$0xff]
    %v2790 = vld [vmem:[#allocation17 + $0xc8] sm:$0xff]
    %v2791 = vld [vmem:[#allocation17 + $0xd0] sm:$0xff]
    %v2792 = vld [vmem:[#allocation17 + $0xd8] sm:$0xff]
    %v2793 = vld [vmem:[#allocation17 + $0xe0] sm:$0xff]
    %v2794 = vld [vmem:[#allocation17 + $0xe8] sm:$0xff]
    %v2795 = vld [vmem:[#allocation17 + $0xf0] sm:$0xff]
    %v2796 = vld [vmem:[#allocation17 + $0xf8] sm:$0xff]
    %v2799 = vunpack.c.l.b16 %v2763
    %v2800 = vunpack.c.l.b16 %v2764
    %v2801 = vpack.c.b16 %v2800, %v2799
    %v2835 = vunpack.c.l.b16 %v2765
    %v2836 = vunpack.c.h.b16 %v2765
    %v2837 = vunpack.c.l.b16 %v2766
    %v2838 = vunpack.c.h.b16 %v2766
    %v2839 = vunpack.c.l.b16 %v2767
    %v2840 = vunpack.c.h.b16 %v2767
    %v2841 = vunpack.c.l.b16 %v2768
    %v2842 = vunpack.c.h.b16 %v2768
    %v2843 = vunpack.c.l.b16 %v2769
    %v2844 = vunpack.c.h.b16 %v2769
    %v2845 = vunpack.c.l.b16 %v2770
    %v2846 = vunpack.c.h.b16 %v2770
    %v2847 = vunpack.c.l.b16 %v2771
    %v2848 = vunpack.c.h.b16 %v2771
    %v2849 = vunpack.c.l.b16 %v2772
    %v2850 = vunpack.c.h.b16 %v2772
    %v2851 = vunpack.c.l.b16 %v2773
    %v2852 = vunpack.c.h.b16 %v2773
    %v2853 = vunpack.c.l.b16 %v2774
    %v2854 = vunpack.c.h.b16 %v2774
    %v2855 = vunpack.c.l.b16 %v2775
    %v2856 = vunpack.c.h.b16 %v2775
    %v2857 = vunpack.c.l.b16 %v2776
    %v2858 = vunpack.c.h.b16 %v2776
    %v2859 = vunpack.c.l.b16 %v2777
    %v2860 = vunpack.c.h.b16 %v2777
    %v2861 = vunpack.c.l.b16 %v2778
    %v2862 = vunpack.c.h.b16 %v2778
    %v2863 = vunpack.c.l.b16 %v2779
    %v2864 = vunpack.c.h.b16 %v2779
    %v2865 = vunpack.c.l.b16 %v2780
    %v2866 = vunpack.c.h.b16 %v2780
    %v2867 = vunpack.c.l.b16 %v2781
    %v2868 = vunpack.c.h.b16 %v2781
    %v2869 = vunpack.c.l.b16 %v2782
    %v2870 = vunpack.c.h.b16 %v2782
    %v2871 = vunpack.c.l.b16 %v2783
    %v2872 = vunpack.c.h.b16 %v2783
    %v2873 = vunpack.c.l.b16 %v2784
    %v2874 = vunpack.c.h.b16 %v2784
    %v2875 = vunpack.c.l.b16 %v2785
    %v2876 = vunpack.c.h.b16 %v2785
    %v2877 = vunpack.c.l.b16 %v2786
    %v2878 = vunpack.c.h.b16 %v2786
    %v2879 = vunpack.c.l.b16 %v2787
    %v2880 = vunpack.c.h.b16 %v2787
    %v2881 = vunpack.c.l.b16 %v2788
    %v2882 = vunpack.c.h.b16 %v2788
    %v2883 = vunpack.c.l.b16 %v2789
    %v2884 = vunpack.c.h.b16 %v2789
    %v2885 = vunpack.c.l.b16 %v2790
    %v2886 = vunpack.c.h.b16 %v2790
    %v2887 = vunpack.c.l.b16 %v2791
    %v2888 = vunpack.c.h.b16 %v2791
    %v2889 = vunpack.c.l.b16 %v2792
    %v2890 = vunpack.c.h.b16 %v2792
    %v2891 = vunpack.c.l.b16 %v2793
    %v2892 = vunpack.c.h.b16 %v2793
    %v2893 = vunpack.c.l.b16 %v2794
    %v2894 = vunpack.c.h.b16 %v2794
    %v2895 = vunpack.c.l.b16 %v2795
    %v2896 = vunpack.c.h.b16 %v2795
    %v2897 = vunpack.c.l.b16 %v2796
    %v2898 = vunpack.c.h.b16 %v2796
    %v2899 = vpack.c.b16 %v2839, %v2835
    %v2900 = vpack.c.b16 %v2840, %v2836
    %v2901 = vpack.c.b16 %v2841, %v2837
    %v2902 = vpack.c.b16 %v2842, %v2838
    %v2903 = vpack.c.b16 %v2847, %v2843
    %v2904 = vpack.c.b16 %v2848, %v2844
    %v2905 = vpack.c.b16 %v2849, %v2845
    %v2906 = vpack.c.b16 %v2850, %v2846
    %v2907 = vpack.c.b16 %v2855, %v2851
    %v2908 = vpack.c.b16 %v2856, %v2852
    %v2909 = vpack.c.b16 %v2857, %v2853
    %v2910 = vpack.c.b16 %v2858, %v2854
    %v2911 = vpack.c.b16 %v2863, %v2859
    %v2912 = vpack.c.b16 %v2864, %v2860
    %v2913 = vpack.c.b16 %v2865, %v2861
    %v2914 = vpack.c.b16 %v2866, %v2862
    %v2915 = vpack.c.b16 %v2871, %v2867
    %v2916 = vpack.c.b16 %v2872, %v2868
    %v2917 = vpack.c.b16 %v2873, %v2869
    %v2918 = vpack.c.b16 %v2874, %v2870
    %v2919 = vpack.c.b16 %v2879, %v2875
    %v2920 = vpack.c.b16 %v2880, %v2876
    %v2921 = vpack.c.b16 %v2881, %v2877
    %v2922 = vpack.c.b16 %v2882, %v2878
    %v2923 = vpack.c.b16 %v2887, %v2883
    %v2924 = vpack.c.b16 %v2888, %v2884
    %v2925 = vpack.c.b16 %v2889, %v2885
    %v2926 = vpack.c.b16 %v2890, %v2886
    %v2927 = vpack.c.b16 %v2895, %v2891
    %v2928 = vpack.c.b16 %v2896, %v2892
    %v2929 = vpack.c.b16 %v2897, %v2893
    %v2930 = vpack.c.b16 %v2898, %v2894
    %2963 = vmatprep.subr.bf16.mxu0 %v2928
    %2964 = vmatpush1.bf16.msra.mxu0 %v2927
    %2965 = vmatprep.subr.bf16.mxu0 %v2924
    %2966 = vmatpush1.bf16.msra.mxu0 %v2923
    %2967 = vmatprep.subr.bf16.mxu0 %v2920
    %2968 = vmatpush1.bf16.msra.mxu0 %v2919
    %2969 = vmatprep.subr.bf16.mxu0 %v2916
    %2970 = vmatpush1.bf16.msra.mxu0 %v2915
    %2971 = vmatprep.subr.bf16.mxu0 %v2912
    %2972 = vmatpush1.bf16.msra.mxu0 %v2911
    %2973 = vmatprep.subr.bf16.mxu0 %v2908
    %2974 = vmatpush1.bf16.msra.mxu0 %v2907
    %2975 = vmatprep.subr.bf16.mxu0 %v2904
    %2976 = vmatpush1.bf16.msra.mxu0 %v2903
    %2977 = vmatprep.subr.bf16.mxu0 %v2900
    %2978 = vmatpush1.bf16.msra.mxu0 %v2899
    %2979 = vmatprep.subr.bf16.mxu0 0
    %2980 = vmatpush2.bf16.msra.mxu0 0
    %2981 = vmatprep.subr.bf16.mxu0 0
    %2982 = vmatpush2.bf16.msra.mxu0 0
    %2983 = vmatprep.subr.bf16.mxu0 0
    %2984 = vmatpush2.bf16.msra.mxu0 0
    %2985 = vmatprep.subr.bf16.mxu0 0
    %2986 = vmatpush2.bf16.msra.mxu0 0
    %2987 = vmatprep.subr.bf16.mxu0 0
    %2988 = vmatpush2.bf16.msra.mxu0 0
    %2989 = vmatprep.subr.bf16.mxu0 0
    %2990 = vmatpush2.bf16.msra.mxu0 0
    %2991 = vmatprep.subr.bf16.mxu0 0
    %2992 = vmatpush2.bf16.msra.mxu0 0
    %2993 = vmatprep.subr.bf16.mxu0 0
    %2994 = vmatpush2.bf16.msra.mxu0 0
    %2995 = vmatprep.mubr.bf16.mxu0 0
    %2996 = vmatmul.mubr.bf16.gmra.mxu0 %v2801
    %v2997 = vpop.f32.mrf.mxu0
    %v2998 = vadd.f32 0.0, %v2997
    %v2999 = vpop.f32.mrf.mxu0
    %v3000 = vadd.f32 0.0, %v2999
    %v3001 = vpop.f32.mrf.mxu0
    %v3002 = vadd.f32 0.0, %v3001
    %v3003 = vpop.f32.mrf.mxu0
    %v3004 = vadd.f32 0.0, %v3003
    %3005 = vdwg.mxu0
    %3006 = vmatprep.subr.bf16.mxu0 %v2930
    %3007 = vmatpush1.bf16.msra.mxu0 %v2929
    %3008 = vmatprep.subr.bf16.mxu0 %v2926
    %3009 = vmatpush1.bf16.msra.mxu0 %v2925
    %3010 = vmatprep.subr.bf16.mxu0 %v2922
    %3011 = vmatpush1.bf16.msra.mxu0 %v2921
    %3012 = vmatprep.subr.bf16.mxu0 %v2918
    %3013 = vmatpush1.bf16.msra.mxu0 %v2917
    %3014 = vmatprep.subr.bf16.mxu0 %v2914
    %3015 = vmatpush1.bf16.msra.mxu0 %v2913
    %3016 = vmatprep.subr.bf16.mxu0 %v2910
    %3017 = vmatpush1.bf16.msra.mxu0 %v2909
    %3018 = vmatprep.subr.bf16.mxu0 %v2906
    %3019 = vmatpush1.bf16.msra.mxu0 %v2905
    %3020 = vmatprep.subr.bf16.mxu0 %v2902
    %3021 = vmatpush1.bf16.msra.mxu0 %v2901
    %3022 = vmatprep.subr.bf16.mxu0 0
    %3023 = vmatpush2.bf16.msra.mxu0 0
    %3024 = vmatprep.subr.bf16.mxu0 0
    %3025 = vmatpush2.bf16.msra.mxu0 0
    %3026 = vmatprep.subr.bf16.mxu0 0
    %3027 = vmatpush2.bf16.msra.mxu0 0
    %3028 = vmatprep.subr.bf16.mxu0 0
    %3029 = vmatpush2.bf16.msra.mxu0 0
    %3030 = vmatprep.subr.bf16.mxu0 0
    %3031 = vmatpush2.bf16.msra.mxu0 0
    %3032 = vmatprep.subr.bf16.mxu0 0
    %3033 = vmatpush2.bf16.msra.mxu0 0
    %3034 = vmatprep.subr.bf16.mxu0 0
    %3035 = vmatpush2.bf16.msra.mxu0 0
    %3036 = vmatprep.subr.bf16.mxu0 0
    %3037 = vmatpush2.bf16.msra.mxu0 0
    %3038 = vmatprep.mubr.bf16.mxu0 0
    %3039 = vmatmul.mubr.bf16.gmra.mxu0 %v2801
    %v3040 = vpop.f32.mrf.mxu0
    %v3041 = vadd.f32 0.0, %v3040
    %v3042 = vpop.f32.mrf.mxu0
    %v3043 = vadd.f32 0.0, %v3042
    %v3044 = vpop.f32.mrf.mxu0
    %v3045 = vadd.f32 0.0, %v3044
    %v3046 = vpop.f32.mrf.mxu0
    %v3047 = vadd.f32 0.0, %v3046
    %3048 = vdwg.mxu0
    %v3049 = vsel %vm754, %v2998, 0.0
    %v3050 = vsel %vm754, %v3000, 0.0
    %v3051 = vsel %vm754, %v3041, 0.0
    %v3052 = vsel %vm754, %v3043, 0.0
    %v3053 = vsel %vm755, %v3002, 0.0
    %v3054 = vsel %vm755, %v3004, 0.0
    %v3055 = vsel %vm755, %v3045, 0.0
    %v3056 = vsel %vm755, %v3047, 0.0
    %v3089 = vunpack.c.l.b16 %v2731
    %v3090 = vunpack.c.h.b16 %v2731
    %v3091 = vunpack.c.l.b16 %v2732
    %v3092 = vunpack.c.h.b16 %v2732
    %v3093 = vunpack.c.l.b16 %v2733
    %v3094 = vunpack.c.h.b16 %v2733
    %v3095 = vunpack.c.l.b16 %v2734
    %v3096 = vunpack.c.h.b16 %v2734
    %v3097 = vunpack.c.l.b16 %v2735
    %v3098 = vunpack.c.h.b16 %v2735
    %v3099 = vunpack.c.l.b16 %v2736
    %v3100 = vunpack.c.h.b16 %v2736
    %v3101 = vunpack.c.l.b16 %v2737
    %v3102 = vunpack.c.h.b16 %v2737
    %v3103 = vunpack.c.l.b16 %v2738
    %v3104 = vunpack.c.h.b16 %v2738
    %v3105 = vunpack.c.l.b16 %v2739
    %v3106 = vunpack.c.h.b16 %v2739
    %v3107 = vunpack.c.l.b16 %v2740
    %v3108 = vunpack.c.h.b16 %v2740
    %v3109 = vunpack.c.l.b16 %v2741
    %v3110 = vunpack.c.h.b16 %v2741
    %v3111 = vunpack.c.l.b16 %v2742
    %v3112 = vunpack.c.h.b16 %v2742
    %v3113 = vunpack.c.l.b16 %v2743
    %v3114 = vunpack.c.h.b16 %v2743
    %v3115 = vunpack.c.l.b16 %v2744
    %v3116 = vunpack.c.h.b16 %v2744
    %v3117 = vunpack.c.l.b16 %v2745
    %v3118 = vunpack.c.h.b16 %v2745
    %v3119 = vunpack.c.l.b16 %v2746
    %v3120 = vunpack.c.h.b16 %v2746
    %v3121 = vunpack.c.l.b16 %v2747
    %v3122 = vunpack.c.h.b16 %v2747
    %v3123 = vunpack.c.l.b16 %v2748
    %v3124 = vunpack.c.h.b16 %v2748
    %v3125 = vunpack.c.l.b16 %v2749
    %v3126 = vunpack.c.h.b16 %v2749
    %v3127 = vunpack.c.l.b16 %v2750
    %v3128 = vunpack.c.h.b16 %v2750
    %v3129 = vunpack.c.l.b16 %v2751
    %v3130 = vunpack.c.h.b16 %v2751
    %v3131 = vunpack.c.l.b16 %v2752
    %v3132 = vunpack.c.h.b16 %v2752
    %v3133 = vunpack.c.l.b16 %v2753
    %v3134 = vunpack.c.h.b16 %v2753
    %v3135 = vunpack.c.l.b16 %v2754
    %v3136 = vunpack.c.h.b16 %v2754
    %v3137 = vunpack.c.l.b16 %v2755
    %v3138 = vunpack.c.h.b16 %v2755
    %v3139 = vunpack.c.l.b16 %v2756
    %v3140 = vunpack.c.h.b16 %v2756
    %v3141 = vunpack.c.l.b16 %v2757
    %v3142 = vunpack.c.h.b16 %v2757
    %v3143 = vunpack.c.l.b16 %v2758
    %v3144 = vunpack.c.h.b16 %v2758
    %v3145 = vunpack.c.l.b16 %v2759
    %v3146 = vunpack.c.h.b16 %v2759
    %v3147 = vunpack.c.l.b16 %v2760
    %v3148 = vunpack.c.h.b16 %v2760
    %v3149 = vunpack.c.l.b16 %v2761
    %v3150 = vunpack.c.h.b16 %v2761
    %v3151 = vunpack.c.l.b16 %v2762
    %v3152 = vunpack.c.h.b16 %v2762
    %v3153 = vpack.c.b16 %v3093, %v3089
    %v3154 = vpack.c.b16 %v3094, %v3090
    %v3155 = vpack.c.b16 %v3095, %v3091
    %v3156 = vpack.c.b16 %v3096, %v3092
    %v3157 = vpack.c.b16 %v3101, %v3097
    %v3158 = vpack.c.b16 %v3102, %v3098
    %v3159 = vpack.c.b16 %v3103, %v3099
    %v3160 = vpack.c.b16 %v3104, %v3100
    %v3161 = vpack.c.b16 %v3109, %v3105
    %v3162 = vpack.c.b16 %v3110, %v3106
    %v3163 = vpack.c.b16 %v3111, %v3107
    %v3164 = vpack.c.b16 %v3112, %v3108
    %v3165 = vpack.c.b16 %v3117, %v3113
    %v3166 = vpack.c.b16 %v3118, %v3114
    %v3167 = vpack.c.b16 %v3119, %v3115
    %v3168 = vpack.c.b16 %v3120, %v3116
    %v3169 = vpack.c.b16 %v3125, %v3121
    %v3170 = vpack.c.b16 %v3126, %v3122
    %v3171 = vpack.c.b16 %v3127, %v3123
    %v3172 = vpack.c.b16 %v3128, %v3124
    %v3173 = vpack.c.b16 %v3133, %v3129
    %v3174 = vpack.c.b16 %v3134, %v3130
    %v3175 = vpack.c.b16 %v3135, %v3131
    %v3176 = vpack.c.b16 %v3136, %v3132
    %v3177 = vpack.c.b16 %v3141, %v3137
    %v3178 = vpack.c.b16 %v3142, %v3138
    %v3179 = vpack.c.b16 %v3143, %v3139
    %v3180 = vpack.c.b16 %v3144, %v3140
    %v3181 = vpack.c.b16 %v3149, %v3145
    %v3182 = vpack.c.b16 %v3150, %v3146
    %v3183 = vpack.c.b16 %v3151, %v3147
    %v3184 = vpack.c.b16 %v3152, %v3148
    %3217 = vmatprep.subr.bf16.mxu0 %v3182
    %3218 = vmatpush1.bf16.msra.mxu0 %v3181
    %3219 = vmatprep.subr.bf16.mxu0 %v3178
    %3220 = vmatpush1.bf16.msra.mxu0 %v3177
    %3221 = vmatprep.subr.bf16.mxu0 %v3174
    %3222 = vmatpush1.bf16.msra.mxu0 %v3173
    %3223 = vmatprep.subr.bf16.mxu0 %v3170
    %3224 = vmatpush1.bf16.msra.mxu0 %v3169
    %3225 = vmatprep.subr.bf16.mxu0 %v3166
    %3226 = vmatpush1.bf16.msra.mxu0 %v3165
    %3227 = vmatprep.subr.bf16.mxu0 %v3162
    %3228 = vmatpush1.bf16.msra.mxu0 %v3161
    %3229 = vmatprep.subr.bf16.mxu0 %v3158
    %3230 = vmatpush1.bf16.msra.mxu0 %v3157
    %3231 = vmatprep.subr.bf16.mxu0 %v3154
    %3232 = vmatpush1.bf16.msra.mxu0 %v3153
    %3233 = vmatprep.subr.bf16.mxu0 0
    %3234 = vmatpush2.bf16.msra.mxu0 0
    %3235 = vmatprep.subr.bf16.mxu0 0
    %3236 = vmatpush2.bf16.msra.mxu0 0
    %3237 = vmatprep.subr.bf16.mxu0 0
    %3238 = vmatpush2.bf16.msra.mxu0 0
    %3239 = vmatprep.subr.bf16.mxu0 0
    %3240 = vmatpush2.bf16.msra.mxu0 0
    %3241 = vmatprep.subr.bf16.mxu0 0
    %3242 = vmatpush2.bf16.msra.mxu0 0
    %3243 = vmatprep.subr.bf16.mxu0 0
    %3244 = vmatpush2.bf16.msra.mxu0 0
    %3245 = vmatprep.subr.bf16.mxu0 0
    %3246 = vmatpush2.bf16.msra.mxu0 0
    %3247 = vmatprep.subr.bf16.mxu0 0
    %3248 = vmatpush2.bf16.msra.mxu0 0
    %3249 = vmatprep.mubr.bf16.mxu0 0
    %3250 = vmatmul.mubr.bf16.gmra.mxu0 %v2697
    %v3251 = vpop.f32.mrf.mxu0
    %v3252 = vadd.f32 %v3049, %v3251
    %v3253 = vpop.f32.mrf.mxu0
    %v3254 = vadd.f32 %v3050, %v3253
    %v3255 = vpop.f32.mrf.mxu0
    %v3256 = vadd.f32 %v3053, %v3255
    %v3257 = vpop.f32.mrf.mxu0
    %v3258 = vadd.f32 %v3054, %v3257
    %3259 = vdwg.mxu0
    %3260 = vmatprep.subr.bf16.mxu0 %v3184
    %3261 = vmatpush1.bf16.msra.mxu0 %v3183
    %3262 = vmatprep.subr.bf16.mxu0 %v3180
    %3263 = vmatpush1.bf16.msra.mxu0 %v3179
    %3264 = vmatprep.subr.bf16.mxu0 %v3176
    %3265 = vmatpush1.bf16.msra.mxu0 %v3175
    %3266 = vmatprep.subr.bf16.mxu0 %v3172
    %3267 = vmatpush1.bf16.msra.mxu0 %v3171
    %3268 = vmatprep.subr.bf16.mxu0 %v3168
    %3269 = vmatpush1.bf16.msra.mxu0 %v3167
    %3270 = vmatprep.subr.bf16.mxu0 %v3164
    %3271 = vmatpush1.bf16.msra.mxu0 %v3163
    %3272 = vmatprep.subr.bf16.mxu0 %v3160
    %3273 = vmatpush1.bf16.msra.mxu0 %v3159
    %3274 = vmatprep.subr.bf16.mxu0 %v3156
    %3275 = vmatpush1.bf16.msra.mxu0 %v3155
    %3276 = vmatprep.subr.bf16.mxu0 0
    %3277 = vmatpush2.bf16.msra.mxu0 0
    %3278 = vmatprep.subr.bf16.mxu0 0
    %3279 = vmatpush2.bf16.msra.mxu0 0
    %3280 = vmatprep.subr.bf16.mxu0 0
    %3281 = vmatpush2.bf16.msra.mxu0 0
    %3282 = vmatprep.subr.bf16.mxu0 0
    %3283 = vmatpush2.bf16.msra.mxu0 0
    %3284 = vmatprep.subr.bf16.mxu0 0
    %3285 = vmatpush2.bf16.msra.mxu0 0
    %3286 = vmatprep.subr.bf16.mxu0 0
    %3287 = vmatpush2.bf16.msra.mxu0 0
    %3288 = vmatprep.subr.bf16.mxu0 0
    %3289 = vmatpush2.bf16.msra.mxu0 0
    %3290 = vmatprep.subr.bf16.mxu0 0
    %3291 = vmatpush2.bf16.msra.mxu0 0
    %3292 = vmatprep.mubr.bf16.mxu0 0
    %3293 = vmatmul.mubr.bf16.gmra.mxu0 %v2697
    %v3294 = vpop.f32.mrf.mxu0
    %v3295 = vadd.f32 %v3051, %v3294
    %v3296 = vpop.f32.mrf.mxu0
    %v3297 = vadd.f32 %v3052, %v3296
    %v3298 = vpop.f32.mrf.mxu0
    %v3299 = vadd.f32 %v3055, %v3298
    %v3300 = vpop.f32.mrf.mxu0
    %v3301 = vadd.f32 %v3056, %v3300
    %3302 = vdwg.mxu0
    %v3303 = vld [vmem:[#allocation5] sm:$0xe]
    %v3304 = vld [vmem:[#allocation5 + $0x4] sm:$0xf]
    %v3305 = vld [vmem:[#allocation5 + $0x8] sm:$0x1]
    %s3306 = scalar_lea.vmem [#allocation17], 512
    %v3307 = vld [vmem:[%s3306] sm:$0xff]
    %v3308 = vld [vmem:[%s3306 + $0x8] sm:$0xff]
    %v3309 = vld [vmem:[%s3306 + $0x10] sm:$0xff]
    %v3310 = vld [vmem:[%s3306 + $0x18] sm:$0xff]
    %v3311 = vld [vmem:[%s3306 + $0x20] sm:$0xff]
    %v3312 = vld [vmem:[%s3306 + $0x28] sm:$0xff]
    %v3313 = vld [vmem:[%s3306 + $0x30] sm:$0xff]
    %v3314 = vld [vmem:[%s3306 + $0x38] sm:$0xff]
    %v3315 = vld [vmem:[%s3306 + $0x40] sm:$0xff]
    %v3316 = vld [vmem:[%s3306 + $0x48] sm:$0xff]
    %v3317 = vld [vmem:[%s3306 + $0x50] sm:$0xff]
    %v3318 = vld [vmem:[%s3306 + $0x58] sm:$0xff]
    %v3319 = vld [vmem:[%s3306 + $0x60] sm:$0xff]
    %v3320 = vld [vmem:[%s3306 + $0x68] sm:$0xff]
    %v3321 = vld [vmem:[%s3306 + $0x70] sm:$0xff]
    %v3322 = vld [vmem:[%s3306 + $0x78] sm:$0xff]
    %v3323 = vld [vmem:[%s3306 + $0x80] sm:$0xff]
    %v3324 = vld [vmem:[%s3306 + $0x88] sm:$0xff]
    %v3325 = vld [vmem:[%s3306 + $0x90] sm:$0xff]
    %v3326 = vld [vmem:[%s3306 + $0x98] sm:$0xff]
    %v3327 = vld [vmem:[%s3306 + $0xa0] sm:$0xff]
    %v3328 = vld [vmem:[%s3306 + $0xa8] sm:$0xff]
    %v3329 = vld [vmem:[%s3306 + $0xb0] sm:$0xff]
    %v3330 = vld [vmem:[%s3306 + $0xb8] sm:$0xff]
    %v3331 = vld [vmem:[%s3306 + $0xc0] sm:$0xff]
    %v3332 = vld [vmem:[%s3306 + $0xc8] sm:$0xff]
    %v3333 = vld [vmem:[%s3306 + $0xd0] sm:$0xff]
    %v3334 = vld [vmem:[%s3306 + $0xd8] sm:$0xff]
    %v3335 = vld [vmem:[%s3306 + $0xe0] sm:$0xff]
    %v3336 = vld [vmem:[%s3306 + $0xe8] sm:$0xff]
    %v3337 = vld [vmem:[%s3306 + $0xf0] sm:$0xff]
    %v3338 = vld [vmem:[%s3306 + $0xf8] sm:$0xff]
    %v3342 = vunpack.c.l.b16 %v3303
    %v3343 = vunpack.c.l.b16 %v3304
    %v3344 = vunpack.c.l.b16 %v3305
    %v3345 = vpack.c.b16 %v3343, %v3342
    %v3346 = vpack.c.b16 %v3344, %v3344
    %v3347 = vrot.slane %v3345, 1
    %v3348 = vrot.slane %v3346, 1
    %v3349 = vsel %vm1012, %v3347, %v3348
    %v3383 = vunpack.c.l.b16 %v3307
    %v3384 = vunpack.c.h.b16 %v3307
    %v3385 = vunpack.c.l.b16 %v3308
    %v3386 = vunpack.c.h.b16 %v3308
    %v3387 = vunpack.c.l.b16 %v3309
    %v3388 = vunpack.c.h.b16 %v3309
    %v3389 = vunpack.c.l.b16 %v3310
    %v3390 = vunpack.c.h.b16 %v3310
    %v3391 = vunpack.c.l.b16 %v3311
    %v3392 = vunpack.c.h.b16 %v3311
    %v3393 = vunpack.c.l.b16 %v3312
    %v3394 = vunpack.c.h.b16 %v3312
    %v3395 = vunpack.c.l.b16 %v3313
    %v3396 = vunpack.c.h.b16 %v3313
    %v3397 = vunpack.c.l.b16 %v3314
    %v3398 = vunpack.c.h.b16 %v3314
    %v3399 = vunpack.c.l.b16 %v3315
    %v3400 = vunpack.c.h.b16 %v3315
    %v3401 = vunpack.c.l.b16 %v3316
    %v3402 = vunpack.c.h.b16 %v3316
    %v3403 = vunpack.c.l.b16 %v3317
    %v3404 = vunpack.c.h.b16 %v3317
    %v3405 = vunpack.c.l.b16 %v3318
    %v3406 = vunpack.c.h.b16 %v3318
    %v3407 = vunpack.c.l.b16 %v3319
    %v3408 = vunpack.c.h.b16 %v3319
    %v3409 = vunpack.c.l.b16 %v3320
    %v3410 = vunpack.c.h.b16 %v3320
    %v3411 = vunpack.c.l.b16 %v3321
    %v3412 = vunpack.c.h.b16 %v3321
    %v3413 = vunpack.c.l.b16 %v3322
    %v3414 = vunpack.c.h.b16 %v3322
    %v3415 = vunpack.c.l.b16 %v3323
    %v3416 = vunpack.c.h.b16 %v3323
    %v3417 = vunpack.c.l.b16 %v3324
    %v3418 = vunpack.c.h.b16 %v3324
    %v3419 = vunpack.c.l.b16 %v3325
    %v3420 = vunpack.c.h.b16 %v3325
    %v3421 = vunpack.c.l.b16 %v3326
    %v3422 = vunpack.c.h.b16 %v3326
    %v3423 = vunpack.c.l.b16 %v3327
    %v3424 = vunpack.c.h.b16 %v3327
    %v3425 = vunpack.c.l.b16 %v3328
    %v3426 = vunpack.c.h.b16 %v3328
    %v3427 = vunpack.c.l.b16 %v3329
    %v3428 = vunpack.c.h.b16 %v3329
    %v3429 = vunpack.c.l.b16 %v3330
    %v3430 = vunpack.c.h.b16 %v3330
    %v3431 = vunpack.c.l.b16 %v3331
    %v3432 = vunpack.c.h.b16 %v3331
    %v3433 = vunpack.c.l.b16 %v3332
    %v3434 = vunpack.c.h.b16 %v3332
    %v3435 = vunpack.c.l.b16 %v3333
    %v3436 = vunpack.c.h.b16 %v3333
    %v3437 = vunpack.c.l.b16 %v3334
    %v3438 = vunpack.c.h.b16 %v3334
    %v3439 = vunpack.c.l.b16 %v3335
    %v3440 = vunpack.c.h.b16 %v3335
    %v3441 = vunpack.c.l.b16 %v3336
    %v3442 = vunpack.c.h.b16 %v3336
    %v3443 = vunpack.c.l.b16 %v3337
    %v3444 = vunpack.c.h.b16 %v3337
    %v3445 = vunpack.c.l.b16 %v3338
    %v3446 = vunpack.c.h.b16 %v3338
    %v3447 = vpack.c.b16 %v3387, %v3383
    %v3448 = vpack.c.b16 %v3388, %v3384
    %v3449 = vpack.c.b16 %v3389, %v3385
    %v3450 = vpack.c.b16 %v3390, %v3386
    %v3451 = vpack.c.b16 %v3395, %v3391
    %v3452 = vpack.c.b16 %v3396, %v3392
    %v3453 = vpack.c.b16 %v3397, %v3393
    %v3454 = vpack.c.b16 %v3398, %v3394
    %v3455 = vpack.c.b16 %v3403, %v3399
    %v3456 = vpack.c.b16 %v3404, %v3400
    %v3457 = vpack.c.b16 %v3405, %v3401
    %v3458 = vpack.c.b16 %v3406, %v3402
    %v3459 = vpack.c.b16 %v3411, %v3407
    %v3460 = vpack.c.b16 %v3412, %v3408
    %v3461 = vpack.c.b16 %v3413, %v3409
    %v3462 = vpack.c.b16 %v3414, %v3410
    %v3463 = vpack.c.b16 %v3419, %v3415
    %v3464 = vpack.c.b16 %v3420, %v3416
    %v3465 = vpack.c.b16 %v3421, %v3417
    %v3466 = vpack.c.b16 %v3422, %v3418
    %v3467 = vpack.c.b16 %v3427, %v3423
    %v3468 = vpack.c.b16 %v3428, %v3424
    %v3469 = vpack.c.b16 %v3429, %v3425
    %v3470 = vpack.c.b16 %v3430, %v3426
    %v3471 = vpack.c.b16 %v3435, %v3431
    %v3472 = vpack.c.b16 %v3436, %v3432
    %v3473 = vpack.c.b16 %v3437, %v3433
    %v3474 = vpack.c.b16 %v3438, %v3434
    %v3475 = vpack.c.b16 %v3443, %v3439
    %v3476 = vpack.c.b16 %v3444, %v3440
    %v3477 = vpack.c.b16 %v3445, %v3441
    %v3478 = vpack.c.b16 %v3446, %v3442
    %3511 = vmatprep.subr.bf16.mxu0 %v3476
    %3512 = vmatpush1.bf16.msra.mxu0 %v3475
    %3513 = vmatprep.subr.bf16.mxu0 %v3472
    %3514 = vmatpush1.bf16.msra.mxu0 %v3471
    %3515 = vmatprep.subr.bf16.mxu0 %v3468
    %3516 = vmatpush1.bf16.msra.mxu0 %v3467
    %3517 = vmatprep.subr.bf16.mxu0 %v3464
    %3518 = vmatpush1.bf16.msra.mxu0 %v3463
    %3519 = vmatprep.subr.bf16.mxu0 %v3460
    %3520 = vmatpush1.bf16.msra.mxu0 %v3459
    %3521 = vmatprep.subr.bf16.mxu0 %v3456
    %3522 = vmatpush1.bf16.msra.mxu0 %v3455
    %3523 = vmatprep.subr.bf16.mxu0 %v3452
    %3524 = vmatpush1.bf16.msra.mxu0 %v3451
    %3525 = vmatprep.subr.bf16.mxu0 %v3448
    %3526 = vmatpush1.bf16.msra.mxu0 %v3447
    %3527 = vmatprep.subr.bf16.mxu0 0
    %3528 = vmatpush2.bf16.msra.mxu0 0
    %3529 = vmatprep.subr.bf16.mxu0 0
    %3530 = vmatpush2.bf16.msra.mxu0 0
    %3531 = vmatprep.subr.bf16.mxu0 0
    %3532 = vmatpush2.bf16.msra.mxu0 0
    %3533 = vmatprep.subr.bf16.mxu0 0
    %3534 = vmatpush2.bf16.msra.mxu0 0
    %3535 = vmatprep.subr.bf16.mxu0 0
    %3536 = vmatpush2.bf16.msra.mxu0 0
    %3537 = vmatprep.subr.bf16.mxu0 0
    %3538 = vmatpush2.bf16.msra.mxu0 0
    %3539 = vmatprep.subr.bf16.mxu0 0
    %3540 = vmatpush2.bf16.msra.mxu0 0
    %3541 = vmatprep.subr.bf16.mxu0 0
    %3542 = vmatpush2.bf16.msra.mxu0 0
    %3543 = vmatprep.mubr.bf16.mxu0 0
    %3544 = vmatmul.mubr.bf16.gmra.mxu0 %v3349
    %v3545 = vpop.f32.mrf.mxu0
    %v3546 = vadd.f32 0.0, %v3545
    %v3547 = vpop.f32.mrf.mxu0
    %v3548 = vadd.f32 0.0, %v3547
    %v3549 = vpop.f32.mrf.mxu0
    %v3550 = vadd.f32 0.0, %v3549
    %v3551 = vpop.f32.mrf.mxu0
    %v3552 = vadd.f32 0.0, %v3551
    %3553 = vdwg.mxu0
    %3554 = vmatprep.subr.bf16.mxu0 %v3478
    %3555 = vmatpush1.bf16.msra.mxu0 %v3477
    %3556 = vmatprep.subr.bf16.mxu0 %v3474
    %3557 = vmatpush1.bf16.msra.mxu0 %v3473
    %3558 = vmatprep.subr.bf16.mxu0 %v3470
    %3559 = vmatpush1.bf16.msra.mxu0 %v3469
    %3560 = vmatprep.subr.bf16.mxu0 %v3466
    %3561 = vmatpush1.bf16.msra.mxu0 %v3465
    %3562 = vmatprep.subr.bf16.mxu0 %v3462
    %3563 = vmatpush1.bf16.msra.mxu0 %v3461
    %3564 = vmatprep.subr.bf16.mxu0 %v3458
    %3565 = vmatpush1.bf16.msra.mxu0 %v3457
    %3566 = vmatprep.subr.bf16.mxu0 %v3454
    %3567 = vmatpush1.bf16.msra.mxu0 %v3453
    %3568 = vmatprep.subr.bf16.mxu0 %v3450
    %3569 = vmatpush1.bf16.msra.mxu0 %v3449
    %3570 = vmatprep.subr.bf16.mxu0 0
    %3571 = vmatpush2.bf16.msra.mxu0 0
    %3572 = vmatprep.subr.bf16.mxu0 0
    %3573 = vmatpush2.bf16.msra.mxu0 0
    %3574 = vmatprep.subr.bf16.mxu0 0
    %3575 = vmatpush2.bf16.msra.mxu0 0
    %3576 = vmatprep.subr.bf16.mxu0 0
    %3577 = vmatpush2.bf16.msra.mxu0 0
    %3578 = vmatprep.subr.bf16.mxu0 0
    %3579 = vmatpush2.bf16.msra.mxu0 0
    %3580 = vmatprep.subr.bf16.mxu0 0
    %3581 = vmatpush2.bf16.msra.mxu0 0
    %3582 = vmatprep.subr.bf16.mxu0 0
    %3583 = vmatpush2.bf16.msra.mxu0 0
    %3584 = vmatprep.subr.bf16.mxu0 0
    %3585 = vmatpush2.bf16.msra.mxu0 0
    %3586 = vmatprep.mubr.bf16.mxu0 0
    %3587 = vmatmul.mubr.bf16.gmra.mxu0 %v3349
    %v3588 = vpop.f32.mrf.mxu0
    %v3589 = vadd.f32 0.0, %v3588
    %v3590 = vpop.f32.mrf.mxu0
    %v3591 = vadd.f32 0.0, %v3590
    %v3592 = vpop.f32.mrf.mxu0
    %v3593 = vadd.f32 0.0, %v3592
    %v3594 = vpop.f32.mrf.mxu0
    %v3595 = vadd.f32 0.0, %v3594
    %3596 = vdwg.mxu0
    %v3597 = vsel %vm1226, %v3546, 0.0
    %v3598 = vsel %vm1226, %v3548, 0.0
    %v3599 = vsel %vm1226, %v3589, 0.0
    %v3600 = vsel %vm1226, %v3591, 0.0
    %v3601 = vsel %vm1227, %v3550, 0.0
    %v3602 = vsel %vm1227, %v3552, 0.0
    %v3603 = vsel %vm1227, %v3593, 0.0
    %v3604 = vsel %vm1227, %v3595, 0.0
    %v3605 = vadd.f32 %v3252, %v3597
    %v3606 = vadd.f32 %v3254, %v3598
    %v3607 = vadd.f32 %v3295, %v3599
    %v3608 = vadd.f32 %v3297, %v3600
    %v3609 = vadd.f32 %v3256, %v3601
    %v3610 = vadd.f32 %v3258, %v3602
    %v3611 = vadd.f32 %v3299, %v3603
    %v3612 = vadd.f32 %v3301, %v3604
    %v3613 = vld [vmem:[%s10] sm:$0xf]
    %v3615 = vlaneseq
    %v3616 = vshrl.u32 %v3615, 7
    %v3617 = vsub.s32 0, %v3616
    %v3618 = vrot.slane %v3613, %v3617
    %v3619 = vlaneseq
    %v3620 = vshrl.u32 %v3619, 7
    %v3621 = vsub.s32 1, %v3620
    %v3622 = vrot.slane %v3613, %v3621
    %v3623 = vlaneseq
    %v3624 = vshrl.u32 %v3623, 7
    %v3625 = vsub.s32 2, %v3624
    %v3626 = vrot.slane %v3613, %v3625
    %v3627 = vlaneseq
    %v3628 = vshrl.u32 %v3627, 7
    %v3629 = vsub.s32 3, %v3628
    %v3630 = vrot.slane %v3613, %v3629
    %v3635 = vadd.f32 %v3605, %v3618
    %v3636 = vadd.f32 %v3606, %v3622
    %v3637 = vadd.f32 %v3607, %v3626
    %v3638 = vadd.f32 %v3608, %v3630
    %v3639 = vadd.f32 %v3609, %v3618
    %v3640 = vadd.f32 %v3610, %v3622
    %v3641 = vadd.f32 %v3611, %v3626
    %v3642 = vadd.f32 %v3612, %v3630
    %3643 = vst [vmem:[#allocation18] sm:$0xff] %v3635
    %3644 = vst [vmem:[#allocation18 + $0x8] sm:$0xff] %v3636
    %3645 = vst [vmem:[#allocation18 + $0x10] sm:$0xff] %v3637
    %3646 = vst [vmem:[#allocation18 + $0x18] sm:$0xff] %v3638
    %3647 = vst [vmem:[#allocation18 + $0x20] sm:$0xff] %v3639
    %3648 = vst [vmem:[#allocation18 + $0x28] sm:$0xff] %v3640
    %3649 = vst [vmem:[#allocation18 + $0x30] sm:$0xff] %v3641
    %3650 = vst [vmem:[#allocation18 + $0x38] sm:$0xff] %v3642
    // Predicated region
    $region74: #{tpu_custom_call.1} parent=1 // pred_check
      _
    $region75: #{tpu_custom_call.1} parent=1 // pred_check_branch
      %3652 = sbr.rel (0) target = $region77
    $region76: #{tpu_custom_call.1} parent=1 // pred_region
      %s3654 = ssub.s32 1024, 1024
      %3655 = vsyncadd [#allocation8], %s3654
      %s3656 = sshll.u32 [#allocation18], 4
      %s3657 = int_to_ptr.vmem [resolvable:$true] %s3656
      %3662 = dma.vmem_to_hbm [thread:$0]  %s3657, 1024, %s11, [#allocation8], 512, 512, 32
    $region77: #{tpu_custom_call.1} parent=1 // pred_fallthru
      _
    // Predicated region
    $region78: #{tpu_custom_call.1} parent=1 // pred_check
      _
    $region79: #{tpu_custom_call.1} parent=1 // pred_check_branch
      %3664 = sbr.rel (0) target = $region81
    $region80: #{tpu_custom_call.1} parent=1 // pred_region
      %3665 = dma.done [#allocation8], 1024
    $region81: #{tpu_custom_call.1} parent=1 // pred_fallthru
      _
    %3666 = vsyncpa [#allocation7], 1
    %3667 = vsyncpa [#allocation10], 1
    %3668 = vsyncpa [#allocation13], 1
    %3669 = vsyncpa [#allocation16], 1
    %3670 = vsyncpa [#allocation8], 1

</llo_original>
